<compile_context>
chip_gen: v7x
topology: tpu7x:2x2x1
jax: 0.10.0
libtpu: 0.0.40
codegen_flags: <defaults>
</compile_context>

<pallas_src>
import numpy as np
import jax
import jax.numpy as jnp
from jax import lax
from jax.experimental import pallas as pl
from jax.experimental.pallas import tpu as pltpu

_EPS = 1e-5
_KSTRIDE = 32     # per-tap K stride of the folded (Cout, 9*32) weight layout (max channels)
_MARGIN = 128     # lane offset of the slab inside the staging scratch (keeps stores aligned)


# ---------------------------------------------------------------------------
# Layer / geometry configuration
# ---------------------------------------------------------------------------
def _layer_specs(in_ch, base):
    # (name, cin, cout, kind)  kind in {"s1", "s2", "up", "out"}
    return [
        ("enc1", in_ch,    base,     "s1"),
        ("enc2", base,     2 * base, "s2"),
        ("enc3", 2 * base, 4 * base, "s2"),
        ("dec1", 4 * base, 2 * base, "up"),
        ("dec2", 2 * base, base,     "up"),
        ("out",  base,     in_ch,    "out"),
    ]


def _pad16(c):
    return max(16, -(-c // 16) * 16)


def _geometry(h, w):
    assert h % 4 == 0 and w % 4 == 0, "spatial dims must be divisible by 4"
    dims = []
    for hh, ww in ((h, w), (h // 2, w // 2), (h // 4, w // 4)):
        dims.append((hh, ww, ww + 2, (hh + 2) * (ww + 2)))   # (H, W, Wp, S=Hp*Wp)
    return dims


def _slab_idx(y, x, wp):
    # flat index of unpadded pixel (y, x) inside the zero-bordered (Hp, Wp) slab
    return (y + 1) * wp + (x + 1)


def _make_constants(h, w):
    """Masks + 0/1 selection matrices (stride-2 pick, nearest-2x upsample, final crop)."""
    (h1, w1, wp1, s1), (h2, w2, wp2, s2), (h3, w3, wp3, s3) = _geometry(h, w)

    masks = np.zeros((4, s1), np.float32)        # rows: M1, SM1, M2, SM2
    for y in range(h1):
        for x in range(w1):
            masks[0, _slab_idx(y, x, wp1)] = 1.0
            if y % 2 == 0 and x % 2 == 0:
                masks[1, _slab_idx(y, x, wp1)] = 1.0
    for y in range(h2):
        for x in range(w2):
            masks[2, _slab_idx(y, x, wp2)] = 1.0
            if y % 2 == 0 and x % 2 == 0:
                masks[3, _slab_idx(y, x, wp2)] = 1.0

    d1 = np.zeros((s1, s2), np.float32)          # stride-2 pick, r1 slab -> r2 slab
    for y in range(h2):
        for x in range(w2):
            d1[_slab_idx(2 * y, 2 * x, wp1), _slab_idx(y, x, wp2)] = 1.0
    d2 = np.zeros((s2, s3), np.float32)          # stride-2 pick, r2 slab -> r3 slab
    for y in range(h3):
        for x in range(w3):
            d2[_slab_idx(2 * y, 2 * x, wp2), _slab_idx(y, x, wp3)] = 1.0
    u1 = np.zeros((s3, s2), np.float32)          # nearest 2x upsample, r3 -> r2
    for y in range(h2):
        for x in range(w2):
            u1[_slab_idx(y // 2, x // 2, wp3), _slab_idx(y, x, wp2)] = 1.0
    u2 = np.zeros((s2, s1), np.float32)          # nearest 2x upsample, r2 -> r1
    for y in range(h1):
        for x in range(w1):
            u2[_slab_idx(y // 2, x // 2, wp2), _slab_idx(y, x, wp1)] = 1.0
    crop = np.zeros((s1, h1 * w1), np.float32)   # r1 padded slab -> dense (H*W) output
    for y in range(h1):
        for x in range(w1):
            crop[_slab_idx(y, x, wp1), y * w1 + x] = 1.0

    bf = jnp.bfloat16
    return (jnp.asarray(masks),
            jnp.asarray(d1, bf), jnp.asarray(d2, bf),
            jnp.asarray(u1, bf), jnp.asarray(u2, bf), jnp.asarray(crop, bf))


# ---------------------------------------------------------------------------
# Fused whole-generator kernel
# ---------------------------------------------------------------------------
def _make_generator_kernel(h, w):
    (h1, w1, wp1, s1), (h2, w2, wp2, s2), (h3, w3, wp3, s3) = _geometry(h, w)
    assert wp1 + 1 <= _MARGIN

    def kernel(x_ref, msk_ref, d1_ref, d2_ref, u1_ref, u2_ref, crop_ref,
               w1_ref, p1_ref, w2_ref, p2_ref, w3_ref, p3_ref,
               w4_ref, p4_ref, w5_ref, p5_ref, w6_ref, p6_ref,
               o_ref, ext_ref, patch_ref):
        f32 = jnp.float32
        bf16 = jnp.bfloat16

        # Garbage lanes are masked later, but NaN * 0 = NaN -> scratch must start finite.
        ext_ref[...] = jnp.zeros(ext_ref.shape, bf16)
        patch_ref[...] = jnp.zeros(patch_ref.shape, bf16)

        masks = msk_ref[...]                       # (4, S1) f32, fetched once (index fixed)
        m1 = masks[0:1, :]                         # full interior mask, r1 slab
        sm1 = masks[1:2, :]                        # stride-2 (even) interior mask, r1 slab
        m2 = masks[2:3, 0:s2]
        sm2 = masks[3:4, 0:s2]

        def conv(slab_bf, w_ref_, p_ref_, wp, s):
            """3x3 conv (pad 1, stride 1) over a zero-bordered (Cs, S) bf16 slab.
            Single K-folded MXU dot; returns (conv + bias) in f32.  Values at
            non-interior slab positions are finite garbage, masked/dropped later."""
            cs = slab_bf.shape[0]
            # stage the slab once at a lane-aligned offset (bf16 cast happened once already)
            ext_ref[0:cs, _MARGIN:_MARGIN + s] = slab_bf
            for dy in range(3):
                for dx in range(3):
                    t = dy * 3 + dx
                    off = dy * wp + dx - (wp + 1)            # tap shift in [-(wp+1), wp+1]
                    patch_ref[t * _KSTRIDE:t * _KSTRIDE + cs, 0:s] = (
                        ext_ref[0:cs, _MARGIN + off:_MARGIN + off + s])
            wmat = w_ref_[0]                                  # (Cout_pad, 9*32) bf16
            prm = p_ref_[0]                                   # (Cout_pad, 3) f32
            raw = jnp.dot(wmat, patch_ref[:, 0:s],
                          preferred_element_type=f32)         # one MXU dot, K = 288
            return raw + prm[:, 0:1], prm

        def inorm_relu(x, prm, mask, count):
            """Masked one-pass instance norm (+affine) and ReLU, all in f32."""
            inv = 1.0 / count
            ssum = jnp.sum(x * mask, axis=1, keepdims=True)
            ssq = jnp.sum((x * x) * mask, axis=1, keepdims=True)
            mean = ssum * inv
            var = jnp.maximum(ssq * inv - mean * mean, 0.0)
            scale = lax.rsqrt(var + _EPS) * prm[:, 1:2]
            shift = prm[:, 2:3] - mean * scale
            return jnp.maximum(x * scale + shift, 0.0)

        # ------------------------------ encoder ------------------------------
        a = x_ref[0, 0].astype(bf16)                                        # (16, S1)

        raw, prm = conv(a, w1_ref, p1_ref, wp1, s1)                         # enc1 @ r1
        a = (inorm_relu(raw, prm, m1, float(h1 * w1)) * m1).astype(bf16)

        raw, prm = conv(a, w2_ref, p2_ref, wp1, s1)                         # enc2 (stride 2)
        y = inorm_relu(raw, prm, sm1, float(h2 * w2))                       # stats on strided taps
        a = jnp.dot(y.astype(bf16), d1_ref[...],
                    preferred_element_type=f32).astype(bf16)                # (16, S2)

        raw, prm = conv(a, w3_ref, p3_ref, wp2, s2)                         # enc3 (stride 2)
        y = inorm_relu(raw, prm, sm2, float(h3 * w3))
        a = jnp.dot(y.astype(bf16), d2_ref[...],
                    preferred_element_type=f32).astype(bf16)                # (32, S3)

        # ------------------------------ decoder ------------------------------
        a = jnp.dot(a, u1_ref[...], preferred_element_type=f32).astype(bf16)   # NN 2x -> r2
        raw, prm = conv(a, w4_ref, p4_ref, wp2, s2)                         # dec1
        a = (inorm_relu(raw, prm, m2, float(h2 * w2)) * m2).astype(bf16)

        a = jnp.dot(a, u2_ref[...], preferred_element_type=f32).astype(bf16)   # NN 2x -> r1
        raw, prm = conv(a, w5_ref, p5_ref, wp1, s1)                         # dec2
        a = (inorm_relu(raw, prm, m1, float(h1 * w1)) * m1).astype(bf16)

        raw, _ = conv(a, w6_ref, p6_ref, wp1, s1)                           # output conv
        z = jnp.dot(raw.astype(bf16), crop_ref[...],                        # drop padded lanes
                    preferred_element_type=f32)                             # (C, H*W), lane-dense
        o_ref[0, 0] = jnp.tanh(z)                                           # f32 epilogue

    return kernel


# ---------------------------------------------------------------------------
# Wrapper (layout prep only; all math runs inside the single Pallas kernel)
# ---------------------------------------------------------------------------
def travelgan_forward(weights, prms, x_a, x_b):
    """TravelGAN.forward(x_a, x_b) -> (gen_ab(x_a), gen_ba(x_b)), one pallas_call."""
    assert x_a.shape == x_b.shape
    n, c, h, w = x_a.shape
    (h1, w1, wp1, s1), _, _ = _geometry(h, w)
    cin_pad = _pad16(c)

    # One-time tiny input prep (the only wrapper-side data movement):
    # stack both domains, zero-pad channels to the slab channel count, add the 1-px zero
    # border of the first conv and flatten to the (C, Hp*Wp) slab layout.
    x = jnp.stack([x_a, x_b]).astype(jnp.float32)                  # (2, N, C, H, W)
    x = jnp.pad(x, ((0, 0), (0, 0), (0, cin_pad - c), (1, 1), (1, 1)))
    x = x.reshape(2, n, cin_pad, s1)

    masks, d1, d2, u1, u2, crop = _make_constants(h, w)

    const_specs = [
        pl.BlockSpec(masks.shape, lambda g, i: (0, 0)),
        pl.BlockSpec(d1.shape, lambda g, i: (0, 0)),
        pl.BlockSpec(d2.shape, lambda g, i: (0, 0)),
        pl.BlockSpec(u1.shape, lambda g, i: (0, 0)),
        pl.BlockSpec(u2.shape, lambda g, i: (0, 0)),
        pl.BlockSpec(crop.shape, lambda g, i: (0, 0)),
    ]
    wp_args, wp_specs = [], []
    for wl, pr in zip(weights, prms):
        wp_args += [wl, pr]
        wp_specs += [
            pl.BlockSpec((1,) + wl.shape[1:], lambda g, i: (g, 0, 0)),
            pl.BlockSpec((1,) + pr.shape[1:], lambda g, i: (g, 0, 0)),
        ]

    kernel = _make_generator_kernel(h, w)
    ext_w = _MARGIN + s1 + wp1 + 2
    out = pl.pallas_call(
        kernel,
        out_shape=jax.ShapeDtypeStruct((2, n, c, h * w), jnp.float32),
        grid=(2, n),                                        # (generator, sample) >= 4 steps
        in_specs=[pl.BlockSpec((1, 1, cin_pad, s1), lambda g, i: (g, i, 0, 0))]
                 + const_specs + wp_specs,
        out_specs=pl.BlockSpec((1, 1, c, h * w), lambda g, i: (g, i, 0, 0)),
        scratch_shapes=[
            pltpu.VMEM((_KSTRIDE, ext_w), jnp.bfloat16),        # staging slab (+margins)
            pltpu.VMEM((9 * _KSTRIDE, s1), jnp.bfloat16),       # K-folded im2col operand
        ],
        compiler_params=pltpu.CompilerParams(
            dimension_semantics=("parallel", "parallel"),       # megacore / v7x 2 TCs
            vmem_limit_bytes=32 * 1024 * 1024,
        ),
    )(x, masks, d1, d2, u1, u2, crop, *wp_args)

    out = out.reshape(2, n, c, h, w)
    return out[0], out[1]


# ---------------------------------------------------------------------------
# Parameters (canonical generator) and packing into the kernel layout
# ---------------------------------------------------------------------------
def init_generator_params(key, in_ch=4, base=8):
    params = []
    for i, (name, cin, cout, kind) in enumerate(_layer_specs(in_ch, base)):
        kw = jax.random.fold_in(key, i)
        fan_in = 9 * cin
        params.append({
            "name": name, "kind": kind,
            "w": jax.random.normal(kw, (3, 3, cin, cout), jnp.float32) * (2.0 / fan_in) ** 0.5,
            "b": 0.1 * jax.random.normal(jax.random.fold_in(kw, 1), (cout,), jnp.float32),
            # InstanceNorm2d default is affine=False; gamma=1 / beta=0 is equivalent.
            "gamma": jnp.ones((cout,), jnp.float32),
            "beta": jnp.zeros((cout,), jnp.float32),
        })
    return params


def _pack_weight(w, cout_pad):
    # (3,3,Cin,Cout) HWIO -> (Cout_pad, 9*32) bf16, column (dy*3+dx)*32 + ci
    _, _, cin, cout = w.shape
    wk = jnp.transpose(w, (3, 0, 1, 2))                           # (Cout, 3, 3, Cin)
    wk = jnp.pad(wk, ((0, cout_pad - cout), (0, 0), (0, 0), (0, _KSTRIDE - cin)))
    return wk.reshape(cout_pad, 9 * _KSTRIDE).astype(jnp.bfloat16)


def _pack_prm(layer, cout_pad):
    cout = layer["b"].shape[0]
    prm = jnp.stack([layer["b"], layer["gamma"], layer["beta"]], axis=1)   # (Cout, 3)
    if cout_pad > cout:
        pad = jnp.tile(jnp.asarray([[0.0, 1.0, 0.0]], jnp.float32), (cout_pad - cout, 1))
        prm = jnp.concatenate([prm, pad], axis=0)
    return prm


def pack_travelgan_params(params_ab, params_ba):
    weights, prms = [], []
    for la, lb in zip(params_ab, params_ba):
        cout = la["w"].shape[-1]
        cpad = cout if la["kind"] == "out" else _pad16(cout)
        weights.append(jnp.stack([_pack_weight(la["w"], cpad), _pack_weight(lb["w"], cpad)]))
        prms.append(jnp.stack([_pack_prm(la, cpad), _pack_prm(lb, cpad)]))
    return weights, prms


# ---------------------------------------------------------------------------
# Plain-JAX reference (same numerics: bf16 matmul operands, f32 accumulate/epilogue)
# ---------------------------------------------------------------------------
def _conv_ref(x, w, b, stride):
    y = lax.conv_general_dilated(
        x.astype(jnp.bfloat16), w.astype(jnp.bfloat16),
        window_strides=(stride, stride), padding=((1, 1), (1, 1)),
        dimension_numbers=("NCHW", "HWIO", "NCHW"),
        preferred_element_type=jnp.float32)
    return y + b.reshape(1, -1, 1, 1)


def _inorm_relu_ref(y, gamma, beta):
    mean = jnp.mean(y, axis=(2, 3), keepdims=True)
    var = jnp.mean(jnp.square(y - mean), axis=(2, 3), keepdims=True)   # biased, like PyTorch
    y = (y - mean) * lax.rsqrt(var + _EPS)
    y = y * gamma.reshape(1, -1, 1, 1) + beta.reshape(1, -1, 1, 1)
    return jnp.maximum(y, 0.0)


def generator_reference(params, x):
    a = x.astype(jnp.float32)
    for layer in params:
        kind = layer["kind"]
        if kind == "up":
            a = jnp.repeat(jnp.repeat(a, 2, axis=2), 2, axis=3)    # nearest 2x
        stride = 2 if kind == "s2" else 1
        y = _conv_ref(a, layer["w"], layer["b"], stride)
        if kind == "out":
            return jnp.tanh(y)
        a = _inorm_relu_ref(y, layer["gamma"], layer["beta"]).astype(jnp.bfloat16)


# ---------------------------------------------------------------------------
if __name__ == "__main__":
    key = jax.random.PRNGKey(0)
    k_ab, k_ba, k_xa, k_xb = jax.random.split(key, 4)
    params_ab = init_generator_params(k_ab, in_ch=4, base=8)
    params_ba = init_generator_params(k_ba, in_ch=4, base=8)
    weights, prms = pack_travelgan_params(params_ab, params_ba)

    x_a = jax.random.normal(k_xa, (2, 4, 16, 16), jnp.float32)
    x_b = jax.random.normal(k_xb, (2, 4, 16, 16), jnp.float32)

    fwd = jax.jit(travelgan_forward)
    x_ab, x_ba = fwd(weights, prms, x_a, x_b)
    jax.block_until_ready((x_ab, x_ba))

    assert x_ab.shape == x_a.shape and x_ba.shape == x_b.shape
    assert x_ab.dtype == jnp.float32 and x_ba.dtype == jnp.float32
    assert bool(jnp.all(jnp.isfinite(x_ab))) and bool(jnp.all(jnp.isfinite(x_ba)))

    # Numerical check against the plain-JAX reference (catches border/stride/tap bugs).
    r_ab = generator_reference(params_ab, x_a)
    r_ba = generator_reference(params_ba, x_b)
    assert bool(jnp.allclose(x_ab, r_ab, rtol=2.5e-2, atol=2.5e-2))
    assert bool(jnp.allclose(x_ba, r_ba, rtol=2.5e-2, atol=2.5e-2))

    print("KERNEL_OK")
</pallas_src>

<mosaic_0001>
module attributes {stable_mosaic.version = 11 : i64} {
  func.func @kernel(%arg0: i32, %arg1: i32, %arg2: memref<1x1x16x324xf32, #tpu.memory_space<vmem>>, %arg3: memref<4x324xf32, #tpu.memory_space<vmem>>, %arg4: memref<324x100xbf16, #tpu.memory_space<vmem>>, %arg5: memref<100x36xbf16, #tpu.memory_space<vmem>>, %arg6: memref<36x100xbf16, #tpu.memory_space<vmem>>, %arg7: memref<100x324xbf16, #tpu.memory_space<vmem>>, %arg8: memref<324x256xbf16, #tpu.memory_space<vmem>>, %arg9: memref<1x16x288xbf16, #tpu.memory_space<vmem>>, %arg10: memref<1x16x3xf32, #tpu.memory_space<vmem>>, %arg11: memref<1x16x288xbf16, #tpu.memory_space<vmem>>, %arg12: memref<1x16x3xf32, #tpu.memory_space<vmem>>, %arg13: memref<1x32x288xbf16, #tpu.memory_space<vmem>>, %arg14: memref<1x32x3xf32, #tpu.memory_space<vmem>>, %arg15: memref<1x16x288xbf16, #tpu.memory_space<vmem>>, %arg16: memref<1x16x3xf32, #tpu.memory_space<vmem>>, %arg17: memref<1x16x288xbf16, #tpu.memory_space<vmem>>, %arg18: memref<1x16x3xf32, #tpu.memory_space<vmem>>, %arg19: memref<1x4x288xbf16, #tpu.memory_space<vmem>>, %arg20: memref<1x4x3xf32, #tpu.memory_space<vmem>>, %arg21: memref<1x1x4x256xf32, #tpu.memory_space<vmem>>, %arg22: memref<32x472xbf16, #tpu.memory_space<vmem>>, %arg23: memref<288x324xbf16, #tpu.memory_space<vmem>>) attributes {dimension_semantics = [#tpu.dimension_semantics<parallel>, #tpu.dimension_semantics<parallel>], iteration_bounds = array<i64: 2, 2>, scalar_prefetch = 0 : i64, scratch_operands = 2 : i64, tpu.core_type = #tpu.core_type<tc>, window_params = [{transform_indices = @transform_0, window_bounds = array<i64: 1, 1, 16, 324>}, {pipeline_mode = #tpu.pipeline_mode<synchronous>, transform_indices = @transform_1, window_bounds = array<i64: 4, 324>}, {pipeline_mode = #tpu.pipeline_mode<synchronous>, transform_indices = @transform_2, window_bounds = array<i64: 324, 100>}, {pipeline_mode = #tpu.pipeline_mode<synchronous>, transform_indices = @transform_3, window_bounds = array<i64: 100, 36>}, {pipeline_mode = #tpu.pipeline_mode<synchronous>, transform_indices = @transform_4, window_bounds = array<i64: 36, 100>}, {pipeline_mode = #tpu.pipeline_mode<synchronous>, transform_indices = @transform_5, window_bounds = array<i64: 100, 324>}, {pipeline_mode = #tpu.pipeline_mode<synchronous>, transform_indices = @transform_6, window_bounds = array<i64: 324, 256>}, {transform_indices = @transform_7, window_bounds = array<i64: 1, 16, 288>}, {transform_indices = @transform_8, window_bounds = array<i64: 1, 16, 3>}, {transform_indices = @transform_9, window_bounds = array<i64: 1, 16, 288>}, {transform_indices = @transform_10, window_bounds = array<i64: 1, 16, 3>}, {transform_indices = @transform_11, window_bounds = array<i64: 1, 32, 288>}, {transform_indices = @transform_12, window_bounds = array<i64: 1, 32, 3>}, {transform_indices = @transform_13, window_bounds = array<i64: 1, 16, 288>}, {transform_indices = @transform_14, window_bounds = array<i64: 1, 16, 3>}, {transform_indices = @transform_15, window_bounds = array<i64: 1, 16, 288>}, {transform_indices = @transform_16, window_bounds = array<i64: 1, 16, 3>}, {transform_indices = @transform_17, window_bounds = array<i64: 1, 4, 288>}, {transform_indices = @transform_18, window_bounds = array<i64: 1, 4, 3>}, {transform_indices = @transform_19, window_bounds = array<i64: 1, 1, 4, 256>}]} {
    %cst = arith.constant 0.000000e+00 : bf16
    %0 = vector.broadcast %cst : bf16 to vector<32x472xbf16>
    %c0 = arith.constant 0 : index
    %c0_0 = arith.constant 0 : index
    %1 = vector.load %arg22[%c0, %c0_0] : memref<32x472xbf16, #tpu.memory_space<vmem>>, vector<32x472xbf16>
    tpu.vector_store %arg22[%c0, %c0_0], %0 {strides = array<i32>} : memref<32x472xbf16, #tpu.memory_space<vmem>>, vector<32x472xbf16>,
    %cst_1 = arith.constant 0.000000e+00 : bf16
    %2 = vector.broadcast %cst_1 : bf16 to vector<288x324xbf16>
    %c0_2 = arith.constant 0 : index
    %c0_3 = arith.constant 0 : index
    %3 = vector.load %arg23[%c0_2, %c0_3] : memref<288x324xbf16, #tpu.memory_space<vmem>>, vector<288x324xbf16>
    tpu.vector_store %arg23[%c0_2, %c0_3], %2 {strides = array<i32>} : memref<288x324xbf16, #tpu.memory_space<vmem>>, vector<288x324xbf16>,
    %c0_4 = arith.constant 0 : index
    %c0_5 = arith.constant 0 : index
    %4 = vector.load %arg3[%c0_4, %c0_5] : memref<4x324xf32, #tpu.memory_space<vmem>>, vector<4x324xf32>
    %5 = vector.extract_strided_slice %4 {offsets = [0, 0], sizes = [1, 324], strides = [1, 1]} : vector<4x324xf32> to vector<1x324xf32>
    %6 = vector.extract_strided_slice %4 {offsets = [1, 0], sizes = [1, 324], strides = [1, 1]} : vector<4x324xf32> to vector<1x324xf32>
    %7 = vector.extract_strided_slice %4 {offsets = [2, 0], sizes = [1, 100], strides = [1, 1]} : vector<4x324xf32> to vector<1x100xf32>
    %8 = vector.extract_strided_slice %4 {offsets = [3, 0], sizes = [1, 100], strides = [1, 1]} : vector<4x324xf32> to vector<1x100xf32>
    %c0_6 = arith.constant 0 : index
    %c0_7 = arith.constant 0 : index
    %c0_8 = arith.constant 0 : index
    %c0_9 = arith.constant 0 : index
    %9 = vector.load %arg2[%c0_6, %c0_7, %c0_8, %c0_9] : memref<1x1x16x324xf32, #tpu.memory_space<vmem>>, vector<1x1x16x324xf32>
    %10 = vector.shape_cast %9 : vector<1x1x16x324xf32> to vector<16x324xf32>
    %11 = arith.truncf %10 : vector<16x324xf32> to vector<16x324xbf16>
    %c0_10 = arith.constant 0 : index
    %c128 = arith.constant 128 : index
    %12 = vector.load %arg22[%c0_10, %c128] : memref<32x472xbf16, #tpu.memory_space<vmem>>, vector<16x324xbf16>
    tpu.vector_store %arg22[%c0_10, %c128], %11 {strides = array<i32>} : memref<32x472xbf16, #tpu.memory_space<vmem>>, vector<16x324xbf16>,
    %c0_11 = arith.constant 0 : index
    %c109 = arith.constant 109 : index
    %13 = vector.load %arg22[%c0_11, %c109] : memref<32x472xbf16, #tpu.memory_space<vmem>>, vector<16x324xbf16>
    %c0_12 = arith.constant 0 : index
    %c0_13 = arith.constant 0 : index
    %14 = vector.load %arg23[%c0_12, %c0_13] : memref<288x324xbf16, #tpu.memory_space<vmem>>, vector<16x324xbf16>
    tpu.vector_store %arg23[%c0_12, %c0_13], %13 {strides = array<i32>} : memref<288x324xbf16, #tpu.memory_space<vmem>>, vector<16x324xbf16>,
    %c0_14 = arith.constant 0 : index
    %c110 = arith.constant 110 : index
    %15 = vector.load %arg22[%c0_14, %c110] : memref<32x472xbf16, #tpu.memory_space<vmem>>, vector<16x324xbf16>
    %c32 = arith.constant 32 : index
    %c0_15 = arith.constant 0 : index
    %16 = vector.load %arg23[%c32, %c0_15] : memref<288x324xbf16, #tpu.memory_space<vmem>>, vector<16x324xbf16>
    tpu.vector_store %arg23[%c32, %c0_15], %15 {strides = array<i32>} : memref<288x324xbf16, #tpu.memory_space<vmem>>, vector<16x324xbf16>,
    %c0_16 = arith.constant 0 : index
    %c111 = arith.constant 111 : index
    %17 = vector.load %arg22[%c0_16, %c111] : memref<32x472xbf16, #tpu.memory_space<vmem>>, vector<16x324xbf16>
    %c64 = arith.constant 64 : index
    %c0_17 = arith.constant 0 : index
    %18 = vector.load %arg23[%c64, %c0_17] : memref<288x324xbf16, #tpu.memory_space<vmem>>, vector<16x324xbf16>
    tpu.vector_store %arg23[%c64, %c0_17], %17 {strides = array<i32>} : memref<288x324xbf16, #tpu.memory_space<vmem>>, vector<16x324xbf16>,
    %c0_18 = arith.constant 0 : index
    %c127 = arith.constant 127 : index
    %19 = vector.load %arg22[%c0_18, %c127] : memref<32x472xbf16, #tpu.memory_space<vmem>>, vector<16x324xbf16>
    %c96 = arith.constant 96 : index
    %c0_19 = arith.constant 0 : index
    %20 = vector.load %arg23[%c96, %c0_19] : memref<288x324xbf16, #tpu.memory_space<vmem>>, vector<16x324xbf16>
    tpu.vector_store %arg23[%c96, %c0_19], %19 {strides = array<i32>} : memref<288x324xbf16, #tpu.memory_space<vmem>>, vector<16x324xbf16>,
    %c0_20 = arith.constant 0 : index
    %c128_21 = arith.constant 128 : index
    %21 = vector.load %arg22[%c0_20, %c128_21] : memref<32x472xbf16, #tpu.memory_space<vmem>>, vector<16x324xbf16>
    %c128_22 = arith.constant 128 : index
    %c0_23 = arith.constant 0 : index
    %22 = vector.load %arg23[%c128_22, %c0_23] : memref<288x324xbf16, #tpu.memory_space<vmem>>, vector<16x324xbf16>
    tpu.vector_store %arg23[%c128_22, %c0_23], %21 {strides = array<i32>} : memref<288x324xbf16, #tpu.memory_space<vmem>>, vector<16x324xbf16>,
    %c0_24 = arith.constant 0 : index
    %c129 = arith.constant 129 : index
    %23 = vector.load %arg22[%c0_24, %c129] : memref<32x472xbf16, #tpu.memory_space<vmem>>, vector<16x324xbf16>
    %c160 = arith.constant 160 : index
    %c0_25 = arith.constant 0 : index
    %24 = vector.load %arg23[%c160, %c0_25] : memref<288x324xbf16, #tpu.memory_space<vmem>>, vector<16x324xbf16>
    tpu.vector_store %arg23[%c160, %c0_25], %23 {strides = array<i32>} : memref<288x324xbf16, #tpu.memory_space<vmem>>, vector<16x324xbf16>,
    %c0_26 = arith.constant 0 : index
    %c145 = arith.constant 145 : index
    %25 = vector.load %arg22[%c0_26, %c145] : memref<32x472xbf16, #tpu.memory_space<vmem>>, vector<16x324xbf16>
    %c192 = arith.constant 192 : index
    %c0_27 = arith.constant 0 : index
    %26 = vector.load %arg23[%c192, %c0_27] : memref<288x324xbf16, #tpu.memory_space<vmem>>, vector<16x324xbf16>
    tpu.vector_store %arg23[%c192, %c0_27], %25 {strides = array<i32>} : memref<288x324xbf16, #tpu.memory_space<vmem>>, vector<16x324xbf16>,
    %c0_28 = arith.constant 0 : index
    %c146 = arith.constant 146 : index
    %27 = vector.load %arg22[%c0_28, %c146] : memref<32x472xbf16, #tpu.memory_space<vmem>>, vector<16x324xbf16>
    %c224 = arith.constant 224 : index
    %c0_29 = arith.constant 0 : index
    %28 = vector.load %arg23[%c224, %c0_29] : memref<288x324xbf16, #tpu.memory_space<vmem>>, vector<16x324xbf16>
    tpu.vector_store %arg23[%c224, %c0_29], %27 {strides = array<i32>} : memref<288x324xbf16, #tpu.memory_space<vmem>>, vector<16x324xbf16>,
    %c0_30 = arith.constant 0 : index
    %c147 = arith.constant 147 : index
    %29 = vector.load %arg22[%c0_30, %c147] : memref<32x472xbf16, #tpu.memory_space<vmem>>, vector<16x324xbf16>
    %c256 = arith.constant 256 : index
    %c0_31 = arith.constant 0 : index
    %30 = vector.load %arg23[%c256, %c0_31] : memref<288x324xbf16, #tpu.memory_space<vmem>>, vector<16x324xbf16>
    tpu.vector_store %arg23[%c256, %c0_31], %29 {strides = array<i32>} : memref<288x324xbf16, #tpu.memory_space<vmem>>, vector<16x324xbf16>,
    %c0_32 = arith.constant 0 : index
    %c0_33 = arith.constant 0 : index
    %c0_34 = arith.constant 0 : index
    %31 = vector.load %arg9[%c0_32, %c0_33, %c0_34] : memref<1x16x288xbf16, #tpu.memory_space<vmem>>, vector<1x16x288xbf16>
    %32 = vector.shape_cast %31 : vector<1x16x288xbf16> to vector<16x288xbf16>
    %c0_35 = arith.constant 0 : index
    %c0_36 = arith.constant 0 : index
    %c0_37 = arith.constant 0 : index
    %33 = vector.load %arg10[%c0_35, %c0_36, %c0_37] : memref<1x16x3xf32, #tpu.memory_space<vmem>>, vector<1x16x3xf32>
    %34 = vector.shape_cast %33 : vector<1x16x3xf32> to vector<16x3xf32>
    %c0_38 = arith.constant 0 : index
    %c0_39 = arith.constant 0 : index
    %35 = vector.load %arg23[%c0_38, %c0_39] : memref<288x324xbf16, #tpu.memory_space<vmem>>, vector<288x324xbf16>
    %cst_40 = arith.constant dense<0.000000e+00> : vector<16x324xf32>
    %36 = tpu.matmul %32, %35, %cst_40 {dimension_numbers = #tpu.dot_dimension_numbers<[1], [0], [0], [1], [0, 0, 1, 1], [], []>} : vector<16x288xbf16>, vector<288x324xbf16>, vector<16x324xf32> -> vector<16x324xf32>
    %37 = vector.extract_strided_slice %34 {offsets = [0, 0], sizes = [16, 1], strides = [1, 1]} : vector<16x3xf32> to vector<16x1xf32>
    %38 = vector.broadcast %37 : vector<16x1xf32> to vector<16x324xf32>
    %39 = arith.addf %36, %38 : vector<16x324xf32>
    %40 = vector.broadcast %5 : vector<1x324xf32> to vector<16x324xf32>
    %41 = arith.mulf %39, %40 : vector<16x324xf32>
    %cst_41 = arith.constant dense<0.000000e+00> : vector<16xf32>
    %42 = vector.multi_reduction <add>, %41, %cst_41 [1] : vector<16x324xf32> to vector<16xf32>
    %43 = vector.shape_cast %42 : vector<16xf32> to vector<16x1xf32>
    %44 = arith.mulf %39, %39 : vector<16x324xf32>
    %45 = vector.broadcast %5 : vector<1x324xf32> to vector<16x324xf32>
    %46 = arith.mulf %44, %45 : vector<16x324xf32>
    %cst_42 = arith.constant dense<0.000000e+00> : vector<16xf32>
    %47 = vector.multi_reduction <add>, %46, %cst_42 [1] : vector<16x324xf32> to vector<16xf32>
    %48 = vector.shape_cast %47 : vector<16xf32> to vector<16x1xf32>
    %cst_43 = arith.constant 3.906250e-03 : f32
    %49 = vector.broadcast %cst_43 : f32 to vector<16x1xf32>
    %50 = arith.mulf %43, %49 : vector<16x1xf32>
    %cst_44 = arith.constant 3.906250e-03 : f32
    %51 = vector.broadcast %cst_44 : f32 to vector<16x1xf32>
    %52 = arith.mulf %48, %51 : vector<16x1xf32>
    %53 = arith.mulf %50, %50 : vector<16x1xf32>
    %54 = arith.subf %52, %53 : vector<16x1xf32>
    %cst_45 = arith.constant 0.000000e+00 : f32
    %55 = vector.broadcast %cst_45 : f32 to vector<16x1xf32>
    %56 = arith.maximumf %54, %55 : vector<16x1xf32>
    %cst_46 = arith.constant 9.99999974E-6 : f32
    %57 = vector.broadcast %cst_46 : f32 to vector<16x1xf32>
    %58 = arith.addf %56, %57 : vector<16x1xf32>
    %59 = math.rsqrt %58 : vector<16x1xf32>
    %60 = vector.extract_strided_slice %34 {offsets = [0, 1], sizes = [16, 1], strides = [1, 1]} : vector<16x3xf32> to vector<16x1xf32>
    %61 = arith.mulf %59, %60 : vector<16x1xf32>
    %62 = vector.extract_strided_slice %34 {offsets = [0, 2], sizes = [16, 1], strides = [1, 1]} : vector<16x3xf32> to vector<16x1xf32>
    %63 = arith.mulf %50, %61 : vector<16x1xf32>
    %64 = arith.subf %62, %63 : vector<16x1xf32>
    %65 = vector.broadcast %61 : vector<16x1xf32> to vector<16x324xf32>
    %66 = arith.mulf %39, %65 : vector<16x324xf32>
    %67 = vector.broadcast %64 : vector<16x1xf32> to vector<16x324xf32>
    %68 = arith.addf %66, %67 : vector<16x324xf32>
    %cst_47 = arith.constant 0.000000e+00 : f32
    %69 = vector.broadcast %cst_47 : f32 to vector<16x324xf32>
    %70 = arith.maximumf %68, %69 : vector<16x324xf32>
    %71 = vector.broadcast %5 : vector<1x324xf32> to vector<16x324xf32>
    %72 = arith.mulf %70, %71 : vector<16x324xf32>
    %73 = arith.truncf %72 : vector<16x324xf32> to vector<16x324xbf16>
    %c0_48 = arith.constant 0 : index
    %c128_49 = arith.constant 128 : index
    %74 = vector.load %arg22[%c0_48, %c128_49] : memref<32x472xbf16, #tpu.memory_space<vmem>>, vector<16x324xbf16>
    tpu.vector_store %arg22[%c0_48, %c128_49], %73 {strides = array<i32>} : memref<32x472xbf16, #tpu.memory_space<vmem>>, vector<16x324xbf16>,
    %c0_50 = arith.constant 0 : index
    %c109_51 = arith.constant 109 : index
    %75 = vector.load %arg22[%c0_50, %c109_51] : memref<32x472xbf16, #tpu.memory_space<vmem>>, vector<16x324xbf16>
    %c0_52 = arith.constant 0 : index
    %c0_53 = arith.constant 0 : index
    %76 = vector.load %arg23[%c0_52, %c0_53] : memref<288x324xbf16, #tpu.memory_space<vmem>>, vector<16x324xbf16>
    tpu.vector_store %arg23[%c0_52, %c0_53], %75 {strides = array<i32>} : memref<288x324xbf16, #tpu.memory_space<vmem>>, vector<16x324xbf16>,
    %c0_54 = arith.constant 0 : index
    %c110_55 = arith.constant 110 : index
    %77 = vector.load %arg22[%c0_54, %c110_55] : memref<32x472xbf16, #tpu.memory_space<vmem>>, vector<16x324xbf16>
    %c32_56 = arith.constant 32 : index
    %c0_57 = arith.constant 0 : index
    %78 = vector.load %arg23[%c32_56, %c0_57] : memref<288x324xbf16, #tpu.memory_space<vmem>>, vector<16x324xbf16>
    tpu.vector_store %arg23[%c32_56, %c0_57], %77 {strides = array<i32>} : memref<288x324xbf16, #tpu.memory_space<vmem>>, vector<16x324xbf16>,
    %c0_58 = arith.constant 0 : index
    %c111_59 = arith.constant 111 : index
    %79 = vector.load %arg22[%c0_58, %c111_59] : memref<32x472xbf16, #tpu.memory_space<vmem>>, vector<16x324xbf16>
    %c64_60 = arith.constant 64 : index
    %c0_61 = arith.constant 0 : index
    %80 = vector.load %arg23[%c64_60, %c0_61] : memref<288x324xbf16, #tpu.memory_space<vmem>>, vector<16x324xbf16>
    tpu.vector_store %arg23[%c64_60, %c0_61], %79 {strides = array<i32>} : memref<288x324xbf16, #tpu.memory_space<vmem>>, vector<16x324xbf16>,
    %c0_62 = arith.constant 0 : index
    %c127_63 = arith.constant 127 : index
    %81 = vector.load %arg22[%c0_62, %c127_63] : memref<32x472xbf16, #tpu.memory_space<vmem>>, vector<16x324xbf16>
    %c96_64 = arith.constant 96 : index
    %c0_65 = arith.constant 0 : index
    %82 = vector.load %arg23[%c96_64, %c0_65] : memref<288x324xbf16, #tpu.memory_space<vmem>>, vector<16x324xbf16>
    tpu.vector_store %arg23[%c96_64, %c0_65], %81 {strides = array<i32>} : memref<288x324xbf16, #tpu.memory_space<vmem>>, vector<16x324xbf16>,
    %c0_66 = arith.constant 0 : index
    %c128_67 = arith.constant 128 : index
    %83 = vector.load %arg22[%c0_66, %c128_67] : memref<32x472xbf16, #tpu.memory_space<vmem>>, vector<16x324xbf16>
    %c128_68 = arith.constant 128 : index
    %c0_69 = arith.constant 0 : index
    %84 = vector.load %arg23[%c128_68, %c0_69] : memref<288x324xbf16, #tpu.memory_space<vmem>>, vector<16x324xbf16>
    tpu.vector_store %arg23[%c128_68, %c0_69], %83 {strides = array<i32>} : memref<288x324xbf16, #tpu.memory_space<vmem>>, vector<16x324xbf16>,
    %c0_70 = arith.constant 0 : index
    %c129_71 = arith.constant 129 : index
    %85 = vector.load %arg22[%c0_70, %c129_71] : memref<32x472xbf16, #tpu.memory_space<vmem>>, vector<16x324xbf16>
    %c160_72 = arith.constant 160 : index
    %c0_73 = arith.constant 0 : index
    %86 = vector.load %arg23[%c160_72, %c0_73] : memref<288x324xbf16, #tpu.memory_space<vmem>>, vector<16x324xbf16>
    tpu.vector_store %arg23[%c160_72, %c0_73], %85 {strides = array<i32>} : memref<288x324xbf16, #tpu.memory_space<vmem>>, vector<16x324xbf16>,
    %c0_74 = arith.constant 0 : index
    %c145_75 = arith.constant 145 : index
    %87 = vector.load %arg22[%c0_74, %c145_75] : memref<32x472xbf16, #tpu.memory_space<vmem>>, vector<16x324xbf16>
    %c192_76 = arith.constant 192 : index
    %c0_77 = arith.constant 0 : index
    %88 = vector.load %arg23[%c192_76, %c0_77] : memref<288x324xbf16, #tpu.memory_space<vmem>>, vector<16x324xbf16>
    tpu.vector_store %arg23[%c192_76, %c0_77], %87 {strides = array<i32>} : memref<288x324xbf16, #tpu.memory_space<vmem>>, vector<16x324xbf16>,
    %c0_78 = arith.constant 0 : index
    %c146_79 = arith.constant 146 : index
    %89 = vector.load %arg22[%c0_78, %c146_79] : memref<32x472xbf16, #tpu.memory_space<vmem>>, vector<16x324xbf16>
    %c224_80 = arith.constant 224 : index
    %c0_81 = arith.constant 0 : index
    %90 = vector.load %arg23[%c224_80, %c0_81] : memref<288x324xbf16, #tpu.memory_space<vmem>>, vector<16x324xbf16>
    tpu.vector_store %arg23[%c224_80, %c0_81], %89 {strides = array<i32>} : memref<288x324xbf16, #tpu.memory_space<vmem>>, vector<16x324xbf16>,
    %c0_82 = arith.constant 0 : index
    %c147_83 = arith.constant 147 : index
    %91 = vector.load %arg22[%c0_82, %c147_83] : memref<32x472xbf16, #tpu.memory_space<vmem>>, vector<16x324xbf16>
    %c256_84 = arith.constant 256 : index
    %c0_85 = arith.constant 0 : index
    %92 = vector.load %arg23[%c256_84, %c0_85] : memref<288x324xbf16, #tpu.memory_space<vmem>>, vector<16x324xbf16>
    tpu.vector_store %arg23[%c256_84, %c0_85], %91 {strides = array<i32>} : memref<288x324xbf16, #tpu.memory_space<vmem>>, vector<16x324xbf16>,
    %c0_86 = arith.constant 0 : index
    %c0_87 = arith.constant 0 : index
    %c0_88 = arith.constant 0 : index
    %93 = vector.load %arg11[%c0_86, %c0_87, %c0_88] : memref<1x16x288xbf16, #tpu.memory_space<vmem>>, vector<1x16x288xbf16>
    %94 = vector.shape_cast %93 : vector<1x16x288xbf16> to vector<16x288xbf16>
    %c0_89 = arith.constant 0 : index
    %c0_90 = arith.constant 0 : index
    %c0_91 = arith.constant 0 : index
    %95 = vector.load %arg12[%c0_89, %c0_90, %c0_91] : memref<1x16x3xf32, #tpu.memory_space<vmem>>, vector<1x16x3xf32>
    %96 = vector.shape_cast %95 : vector<1x16x3xf32> to vector<16x3xf32>
    %c0_92 = arith.constant 0 : index
    %c0_93 = arith.constant 0 : index
    %97 = vector.load %arg23[%c0_92, %c0_93] : memref<288x324xbf16, #tpu.memory_space<vmem>>, vector<288x324xbf16>
    %cst_94 = arith.constant dense<0.000000e+00> : vector<16x324xf32>
    %98 = tpu.matmul %94, %97, %cst_94 {dimension_numbers = #tpu.dot_dimension_numbers<[1], [0], [0], [1], [0, 0, 1, 1], [], []>} : vector<16x288xbf16>, vector<288x324xbf16>, vector<16x324xf32> -> vector<16x324xf32>
    %99 = vector.extract_strided_slice %96 {offsets = [0, 0], sizes = [16, 1], strides = [1, 1]} : vector<16x3xf32> to vector<16x1xf32>
    %100 = vector.broadcast %99 : vector<16x1xf32> to vector<16x324xf32>
    %101 = arith.addf %98, %100 : vector<16x324xf32>
    %102 = vector.broadcast %6 : vector<1x324xf32> to vector<16x324xf32>
    %103 = arith.mulf %101, %102 : vector<16x324xf32>
    %cst_95 = arith.constant dense<0.000000e+00> : vector<16xf32>
    %104 = vector.multi_reduction <add>, %103, %cst_95 [1] : vector<16x324xf32> to vector<16xf32>
    %105 = vector.shape_cast %104 : vector<16xf32> to vector<16x1xf32>
    %106 = arith.mulf %101, %101 : vector<16x324xf32>
    %107 = vector.broadcast %6 : vector<1x324xf32> to vector<16x324xf32>
    %108 = arith.mulf %106, %107 : vector<16x324xf32>
    %cst_96 = arith.constant dense<0.000000e+00> : vector<16xf32>
    %109 = vector.multi_reduction <add>, %108, %cst_96 [1] : vector<16x324xf32> to vector<16xf32>
    %110 = vector.shape_cast %109 : vector<16xf32> to vector<16x1xf32>
    %cst_97 = arith.constant 1.562500e-02 : f32
    %111 = vector.broadcast %cst_97 : f32 to vector<16x1xf32>
    %112 = arith.mulf %105, %111 : vector<16x1xf32>
    %cst_98 = arith.constant 1.562500e-02 : f32
    %113 = vector.broadcast %cst_98 : f32 to vector<16x1xf32>
    %114 = arith.mulf %110, %113 : vector<16x1xf32>
    %115 = arith.mulf %112, %112 : vector<16x1xf32>
    %116 = arith.subf %114, %115 : vector<16x1xf32>
    %cst_99 = arith.constant 0.000000e+00 : f32
    %117 = vector.broadcast %cst_99 : f32 to vector<16x1xf32>
    %118 = arith.maximumf %116, %117 : vector<16x1xf32>
    %cst_100 = arith.constant 9.99999974E-6 : f32
    %119 = vector.broadcast %cst_100 : f32 to vector<16x1xf32>
    %120 = arith.addf %118, %119 : vector<16x1xf32>
    %121 = math.rsqrt %120 : vector<16x1xf32>
    %122 = vector.extract_strided_slice %96 {offsets = [0, 1], sizes = [16, 1], strides = [1, 1]} : vector<16x3xf32> to vector<16x1xf32>
    %123 = arith.mulf %121, %122 : vector<16x1xf32>
    %124 = vector.extract_strided_slice %96 {offsets = [0, 2], sizes = [16, 1], strides = [1, 1]} : vector<16x3xf32> to vector<16x1xf32>
    %125 = arith.mulf %112, %123 : vector<16x1xf32>
    %126 = arith.subf %124, %125 : vector<16x1xf32>
    %127 = vector.broadcast %123 : vector<16x1xf32> to vector<16x324xf32>
    %128 = arith.mulf %101, %127 : vector<16x324xf32>
    %129 = vector.broadcast %126 : vector<16x1xf32> to vector<16x324xf32>
    %130 = arith.addf %128, %129 : vector<16x324xf32>
    %cst_101 = arith.constant 0.000000e+00 : f32
    %131 = vector.broadcast %cst_101 : f32 to vector<16x324xf32>
    %132 = arith.maximumf %130, %131 : vector<16x324xf32>
    %133 = arith.truncf %132 : vector<16x324xf32> to vector<16x324xbf16>
    %c0_102 = arith.constant 0 : index
    %c0_103 = arith.constant 0 : index
    %134 = vector.load %arg4[%c0_102, %c0_103] : memref<324x100xbf16, #tpu.memory_space<vmem>>, vector<324x100xbf16>
    %cst_104 = arith.constant dense<0.000000e+00> : vector<16x100xf32>
    %135 = tpu.matmul %133, %134, %cst_104 {dimension_numbers = #tpu.dot_dimension_numbers<[1], [0], [0], [1], [0, 0, 1, 1], [], []>} : vector<16x324xbf16>, vector<324x100xbf16>, vector<16x100xf32> -> vector<16x100xf32>
    %136 = arith.truncf %135 : vector<16x100xf32> to vector<16x100xbf16>
    %c0_105 = arith.constant 0 : index
    %c128_106 = arith.constant 128 : index
    %137 = vector.load %arg22[%c0_105, %c128_106] : memref<32x472xbf16, #tpu.memory_space<vmem>>, vector<16x100xbf16>
    tpu.vector_store %arg22[%c0_105, %c128_106], %136 {strides = array<i32>} : memref<32x472xbf16, #tpu.memory_space<vmem>>, vector<16x100xbf16>,
    %c0_107 = arith.constant 0 : index
    %c117 = arith.constant 117 : index
    %138 = vector.load %arg22[%c0_107, %c117] : memref<32x472xbf16, #tpu.memory_space<vmem>>, vector<16x100xbf16>
    %c0_108 = arith.constant 0 : index
    %c0_109 = arith.constant 0 : index
    %139 = vector.load %arg23[%c0_108, %c0_109] : memref<288x324xbf16, #tpu.memory_space<vmem>>, vector<16x100xbf16>
    tpu.vector_store %arg23[%c0_108, %c0_109], %138 {strides = array<i32>} : memref<288x324xbf16, #tpu.memory_space<vmem>>, vector<16x100xbf16>,
    %c0_110 = arith.constant 0 : index
    %c118 = arith.constant 118 : index
    %140 = vector.load %arg22[%c0_110, %c118] : memref<32x472xbf16, #tpu.memory_space<vmem>>, vector<16x100xbf16>
    %c32_111 = arith.constant 32 : index
    %c0_112 = arith.constant 0 : index
    %141 = vector.load %arg23[%c32_111, %c0_112] : memref<288x324xbf16, #tpu.memory_space<vmem>>, vector<16x100xbf16>
    tpu.vector_store %arg23[%c32_111, %c0_112], %140 {strides = array<i32>} : memref<288x324xbf16, #tpu.memory_space<vmem>>, vector<16x100xbf16>,
    %c0_113 = arith.constant 0 : index
    %c119 = arith.constant 119 : index
    %142 = vector.load %arg22[%c0_113, %c119] : memref<32x472xbf16, #tpu.memory_space<vmem>>, vector<16x100xbf16>
    %c64_114 = arith.constant 64 : index
    %c0_115 = arith.constant 0 : index
    %143 = vector.load %arg23[%c64_114, %c0_115] : memref<288x324xbf16, #tpu.memory_space<vmem>>, vector<16x100xbf16>
    tpu.vector_store %arg23[%c64_114, %c0_115], %142 {strides = array<i32>} : memref<288x324xbf16, #tpu.memory_space<vmem>>, vector<16x100xbf16>,
    %c0_116 = arith.constant 0 : index
    %c127_117 = arith.constant 127 : index
    %144 = vector.load %arg22[%c0_116, %c127_117] : memref<32x472xbf16, #tpu.memory_space<vmem>>, vector<16x100xbf16>
    %c96_118 = arith.constant 96 : index
    %c0_119 = arith.constant 0 : index
    %145 = vector.load %arg23[%c96_118, %c0_119] : memref<288x324xbf16, #tpu.memory_space<vmem>>, vector<16x100xbf16>
    tpu.vector_store %arg23[%c96_118, %c0_119], %144 {strides = array<i32>} : memref<288x324xbf16, #tpu.memory_space<vmem>>, vector<16x100xbf16>,
    %c0_120 = arith.constant 0 : index
    %c128_121 = arith.constant 128 : index
    %146 = vector.load %arg22[%c0_120, %c128_121] : memref<32x472xbf16, #tpu.memory_space<vmem>>, vector<16x100xbf16>
    %c128_122 = arith.constant 128 : index
    %c0_123 = arith.constant 0 : index
    %147 = vector.load %arg23[%c128_122, %c0_123] : memref<288x324xbf16, #tpu.memory_space<vmem>>, vector<16x100xbf16>
    tpu.vector_store %arg23[%c128_122, %c0_123], %146 {strides = array<i32>} : memref<288x324xbf16, #tpu.memory_space<vmem>>, vector<16x100xbf16>,
    %c0_124 = arith.constant 0 : index
    %c129_125 = arith.constant 129 : index
    %148 = vector.load %arg22[%c0_124, %c129_125] : memref<32x472xbf16, #tpu.memory_space<vmem>>, vector<16x100xbf16>
    %c160_126 = arith.constant 160 : index
    %c0_127 = arith.constant 0 : index
    %149 = vector.load %arg23[%c160_126, %c0_127] : memref<288x324xbf16, #tpu.memory_space<vmem>>, vector<16x100xbf16>
    tpu.vector_store %arg23[%c160_126, %c0_127], %148 {strides = array<i32>} : memref<288x324xbf16, #tpu.memory_space<vmem>>, vector<16x100xbf16>,
    %c0_128 = arith.constant 0 : index
    %c137 = arith.constant 137 : index
    %150 = vector.load %arg22[%c0_128, %c137] : memref<32x472xbf16, #tpu.memory_space<vmem>>, vector<16x100xbf16>
    %c192_129 = arith.constant 192 : index
    %c0_130 = arith.constant 0 : index
    %151 = vector.load %arg23[%c192_129, %c0_130] : memref<288x324xbf16, #tpu.memory_space<vmem>>, vector<16x100xbf16>
    tpu.vector_store %arg23[%c192_129, %c0_130], %150 {strides = array<i32>} : memref<288x324xbf16, #tpu.memory_space<vmem>>, vector<16x100xbf16>,
    %c0_131 = arith.constant 0 : index
    %c138 = arith.constant 138 : index
    %152 = vector.load %arg22[%c0_131, %c138] : memref<32x472xbf16, #tpu.memory_space<vmem>>, vector<16x100xbf16>
    %c224_132 = arith.constant 224 : index
    %c0_133 = arith.constant 0 : index
    %153 = vector.load %arg23[%c224_132, %c0_133] : memref<288x324xbf16, #tpu.memory_space<vmem>>, vector<16x100xbf16>
    tpu.vector_store %arg23[%c224_132, %c0_133], %152 {strides = array<i32>} : memref<288x324xbf16, #tpu.memory_space<vmem>>, vector<16x100xbf16>,
    %c0_134 = arith.constant 0 : index
    %c139 = arith.constant 139 : index
    %154 = vector.load %arg22[%c0_134, %c139] : memref<32x472xbf16, #tpu.memory_space<vmem>>, vector<16x100xbf16>
    %c256_135 = arith.constant 256 : index
    %c0_136 = arith.constant 0 : index
    %155 = vector.load %arg23[%c256_135, %c0_136] : memref<288x324xbf16, #tpu.memory_space<vmem>>, vector<16x100xbf16>
    tpu.vector_store %arg23[%c256_135, %c0_136], %154 {strides = array<i32>} : memref<288x324xbf16, #tpu.memory_space<vmem>>, vector<16x100xbf16>,
    %c0_137 = arith.constant 0 : index
    %c0_138 = arith.constant 0 : index
    %c0_139 = arith.constant 0 : index
    %156 = vector.load %arg13[%c0_137, %c0_138, %c0_139] : memref<1x32x288xbf16, #tpu.memory_space<vmem>>, vector<1x32x288xbf16>
    %157 = vector.shape_cast %156 : vector<1x32x288xbf16> to vector<32x288xbf16>
    %c0_140 = arith.constant 0 : index
    %c0_141 = arith.constant 0 : index
    %c0_142 = arith.constant 0 : index
    %158 = vector.load %arg14[%c0_140, %c0_141, %c0_142] : memref<1x32x3xf32, #tpu.memory_space<vmem>>, vector<1x32x3xf32>
    %159 = vector.shape_cast %158 : vector<1x32x3xf32> to vector<32x3xf32>
    %c0_143 = arith.constant 0 : index
    %c0_144 = arith.constant 0 : index
    %160 = vector.load %arg23[%c0_143, %c0_144] : memref<288x324xbf16, #tpu.memory_space<vmem>>, vector<288x100xbf16>
    %cst_145 = arith.constant dense<0.000000e+00> : vector<32x100xf32>
    %161 = tpu.matmul %157, %160, %cst_145 {dimension_numbers = #tpu.dot_dimension_numbers<[1], [0], [0], [1], [0, 0, 1, 1], [], []>} : vector<32x288xbf16>, vector<288x100xbf16>, vector<32x100xf32> -> vector<32x100xf32>
    %162 = vector.extract_strided_slice %159 {offsets = [0, 0], sizes = [32, 1], strides = [1, 1]} : vector<32x3xf32> to vector<32x1xf32>
    %163 = vector.broadcast %162 : vector<32x1xf32> to vector<32x100xf32>
    %164 = arith.addf %161, %163 : vector<32x100xf32>
    %165 = vector.broadcast %8 : vector<1x100xf32> to vector<32x100xf32>
    %166 = arith.mulf %164, %165 : vector<32x100xf32>
    %cst_146 = arith.constant dense<0.000000e+00> : vector<32xf32>
    %167 = vector.multi_reduction <add>, %166, %cst_146 [1] : vector<32x100xf32> to vector<32xf32>
    %168 = vector.shape_cast %167 : vector<32xf32> to vector<32x1xf32>
    %169 = arith.mulf %164, %164 : vector<32x100xf32>
    %170 = vector.broadcast %8 : vector<1x100xf32> to vector<32x100xf32>
    %171 = arith.mulf %169, %170 : vector<32x100xf32>
    %cst_147 = arith.constant dense<0.000000e+00> : vector<32xf32>
    %172 = vector.multi_reduction <add>, %171, %cst_147 [1] : vector<32x100xf32> to vector<32xf32>
    %173 = vector.shape_cast %172 : vector<32xf32> to vector<32x1xf32>
    %cst_148 = arith.constant 6.250000e-02 : f32
    %174 = vector.broadcast %cst_148 : f32 to vector<32x1xf32>
    %175 = arith.mulf %168, %174 : vector<32x1xf32>
    %cst_149 = arith.constant 6.250000e-02 : f32
    %176 = vector.broadcast %cst_149 : f32 to vector<32x1xf32>
    %177 = arith.mulf %173, %176 : vector<32x1xf32>
    %178 = arith.mulf %175, %175 : vector<32x1xf32>
    %179 = arith.subf %177, %178 : vector<32x1xf32>
    %cst_150 = arith.constant 0.000000e+00 : f32
    %180 = vector.broadcast %cst_150 : f32 to vector<32x1xf32>
    %181 = arith.maximumf %179, %180 : vector<32x1xf32>
    %cst_151 = arith.constant 9.99999974E-6 : f32
    %182 = vector.broadcast %cst_151 : f32 to vector<32x1xf32>
    %183 = arith.addf %181, %182 : vector<32x1xf32>
    %184 = math.rsqrt %183 : vector<32x1xf32>
    %185 = vector.extract_strided_slice %159 {offsets = [0, 1], sizes = [32, 1], strides = [1, 1]} : vector<32x3xf32> to vector<32x1xf32>
    %186 = arith.mulf %184, %185 : vector<32x1xf32>
    %187 = vector.extract_strided_slice %159 {offsets = [0, 2], sizes = [32, 1], strides = [1, 1]} : vector<32x3xf32> to vector<32x1xf32>
    %188 = arith.mulf %175, %186 : vector<32x1xf32>
    %189 = arith.subf %187, %188 : vector<32x1xf32>
    %190 = vector.broadcast %186 : vector<32x1xf32> to vector<32x100xf32>
    %191 = arith.mulf %164, %190 : vector<32x100xf32>
    %192 = vector.broadcast %189 : vector<32x1xf32> to vector<32x100xf32>
    %193 = arith.addf %191, %192 : vector<32x100xf32>
    %cst_152 = arith.constant 0.000000e+00 : f32
    %194 = vector.broadcast %cst_152 : f32 to vector<32x100xf32>
    %195 = arith.maximumf %193, %194 : vector<32x100xf32>
    %196 = arith.truncf %195 : vector<32x100xf32> to vector<32x100xbf16>
    %c0_153 = arith.constant 0 : index
    %c0_154 = arith.constant 0 : index
    %197 = vector.load %arg5[%c0_153, %c0_154] : memref<100x36xbf16, #tpu.memory_space<vmem>>, vector<100x36xbf16>
    %cst_155 = arith.constant dense<0.000000e+00> : vector<32x36xf32>
    %198 = tpu.matmul %196, %197, %cst_155 {dimension_numbers = #tpu.dot_dimension_numbers<[1], [0], [0], [1], [0, 0, 1, 1], [], []>} : vector<32x100xbf16>, vector<100x36xbf16>, vector<32x36xf32> -> vector<32x36xf32>
    %199 = arith.truncf %198 : vector<32x36xf32> to vector<32x36xbf16>
    %c0_156 = arith.constant 0 : index
    %c0_157 = arith.constant 0 : index
    %200 = vector.load %arg6[%c0_156, %c0_157] : memref<36x100xbf16, #tpu.memory_space<vmem>>, vector<36x100xbf16>
    %cst_158 = arith.constant dense<0.000000e+00> : vector<32x100xf32>
    %201 = tpu.matmul %199, %200, %cst_158 {dimension_numbers = #tpu.dot_dimension_numbers<[1], [0], [0], [1], [0, 0, 1, 1], [], []>} : vector<32x36xbf16>, vector<36x100xbf16>, vector<32x100xf32> -> vector<32x100xf32>
    %202 = arith.truncf %201 : vector<32x100xf32> to vector<32x100xbf16>
    %c0_159 = arith.constant 0 : index
    %c128_160 = arith.constant 128 : index
    %203 = vector.load %arg22[%c0_159, %c128_160] : memref<32x472xbf16, #tpu.memory_space<vmem>>, vector<32x100xbf16>
    tpu.vector_store %arg22[%c0_159, %c128_160], %202 {strides = array<i32>} : memref<32x472xbf16, #tpu.memory_space<vmem>>, vector<32x100xbf16>,
    %c0_161 = arith.constant 0 : index
    %c117_162 = arith.constant 117 : index
    %204 = vector.load %arg22[%c0_161, %c117_162] : memref<32x472xbf16, #tpu.memory_space<vmem>>, vector<32x100xbf16>
    %c0_163 = arith.constant 0 : index
    %c0_164 = arith.constant 0 : index
    %205 = vector.load %arg23[%c0_163, %c0_164] : memref<288x324xbf16, #tpu.memory_space<vmem>>, vector<32x100xbf16>
    tpu.vector_store %arg23[%c0_163, %c0_164], %204 {strides = array<i32>} : memref<288x324xbf16, #tpu.memory_space<vmem>>, vector<32x100xbf16>,
    %c0_165 = arith.constant 0 : index
    %c118_166 = arith.constant 118 : index
    %206 = vector.load %arg22[%c0_165, %c118_166] : memref<32x472xbf16, #tpu.memory_space<vmem>>, vector<32x100xbf16>
    %c32_167 = arith.constant 32 : index
    %c0_168 = arith.constant 0 : index
    %207 = vector.load %arg23[%c32_167, %c0_168] : memref<288x324xbf16, #tpu.memory_space<vmem>>, vector<32x100xbf16>
    tpu.vector_store %arg23[%c32_167, %c0_168], %206 {strides = array<i32>} : memref<288x324xbf16, #tpu.memory_space<vmem>>, vector<32x100xbf16>,
    %c0_169 = arith.constant 0 : index
    %c119_170 = arith.constant 119 : index
    %208 = vector.load %arg22[%c0_169, %c119_170] : memref<32x472xbf16, #tpu.memory_space<vmem>>, vector<32x100xbf16>
    %c64_171 = arith.constant 64 : index
    %c0_172 = arith.constant 0 : index
    %209 = vector.load %arg23[%c64_171, %c0_172] : memref<288x324xbf16, #tpu.memory_space<vmem>>, vector<32x100xbf16>
    tpu.vector_store %arg23[%c64_171, %c0_172], %208 {strides = array<i32>} : memref<288x324xbf16, #tpu.memory_space<vmem>>, vector<32x100xbf16>,
    %c0_173 = arith.constant 0 : index
    %c127_174 = arith.constant 127 : index
    %210 = vector.load %arg22[%c0_173, %c127_174] : memref<32x472xbf16, #tpu.memory_space<vmem>>, vector<32x100xbf16>
    %c96_175 = arith.constant 96 : index
    %c0_176 = arith.constant 0 : index
    %211 = vector.load %arg23[%c96_175, %c0_176] : memref<288x324xbf16, #tpu.memory_space<vmem>>, vector<32x100xbf16>
    tpu.vector_store %arg23[%c96_175, %c0_176], %210 {strides = array<i32>} : memref<288x324xbf16, #tpu.memory_space<vmem>>, vector<32x100xbf16>,
    %c0_177 = arith.constant 0 : index
    %c128_178 = arith.constant 128 : index
    %212 = vector.load %arg22[%c0_177, %c128_178] : memref<32x472xbf16, #tpu.memory_space<vmem>>, vector<32x100xbf16>
    %c128_179 = arith.constant 128 : index
    %c0_180 = arith.constant 0 : index
    %213 = vector.load %arg23[%c128_179, %c0_180] : memref<288x324xbf16, #tpu.memory_space<vmem>>, vector<32x100xbf16>
    tpu.vector_store %arg23[%c128_179, %c0_180], %212 {strides = array<i32>} : memref<288x324xbf16, #tpu.memory_space<vmem>>, vector<32x100xbf16>,
    %c0_181 = arith.constant 0 : index
    %c129_182 = arith.constant 129 : index
    %214 = vector.load %arg22[%c0_181, %c129_182] : memref<32x472xbf16, #tpu.memory_space<vmem>>, vector<32x100xbf16>
    %c160_183 = arith.constant 160 : index
    %c0_184 = arith.constant 0 : index
    %215 = vector.load %arg23[%c160_183, %c0_184] : memref<288x324xbf16, #tpu.memory_space<vmem>>, vector<32x100xbf16>
    tpu.vector_store %arg23[%c160_183, %c0_184], %214 {strides = array<i32>} : memref<288x324xbf16, #tpu.memory_space<vmem>>, vector<32x100xbf16>,
    %c0_185 = arith.constant 0 : index
    %c137_186 = arith.constant 137 : index
    %216 = vector.load %arg22[%c0_185, %c137_186] : memref<32x472xbf16, #tpu.memory_space<vmem>>, vector<32x100xbf16>
    %c192_187 = arith.constant 192 : index
    %c0_188 = arith.constant 0 : index
    %217 = vector.load %arg23[%c192_187, %c0_188] : memref<288x324xbf16, #tpu.memory_space<vmem>>, vector<32x100xbf16>
    tpu.vector_store %arg23[%c192_187, %c0_188], %216 {strides = array<i32>} : memref<288x324xbf16, #tpu.memory_space<vmem>>, vector<32x100xbf16>,
    %c0_189 = arith.constant 0 : index
    %c138_190 = arith.constant 138 : index
    %218 = vector.load %arg22[%c0_189, %c138_190] : memref<32x472xbf16, #tpu.memory_space<vmem>>, vector<32x100xbf16>
    %c224_191 = arith.constant 224 : index
    %c0_192 = arith.constant 0 : index
    %219 = vector.load %arg23[%c224_191, %c0_192] : memref<288x324xbf16, #tpu.memory_space<vmem>>, vector<32x100xbf16>
    tpu.vector_store %arg23[%c224_191, %c0_192], %218 {strides = array<i32>} : memref<288x324xbf16, #tpu.memory_space<vmem>>, vector<32x100xbf16>,
    %c0_193 = arith.constant 0 : index
    %c139_194 = arith.constant 139 : index
    %220 = vector.load %arg22[%c0_193, %c139_194] : memref<32x472xbf16, #tpu.memory_space<vmem>>, vector<32x100xbf16>
    %c256_195 = arith.constant 256 : index
    %c0_196 = arith.constant 0 : index
    %221 = vector.load %arg23[%c256_195, %c0_196] : memref<288x324xbf16, #tpu.memory_space<vmem>>, vector<32x100xbf16>
    tpu.vector_store %arg23[%c256_195, %c0_196], %220 {strides = array<i32>} : memref<288x324xbf16, #tpu.memory_space<vmem>>, vector<32x100xbf16>,
    %c0_197 = arith.constant 0 : index
    %c0_198 = arith.constant 0 : index
    %c0_199 = arith.constant 0 : index
    %222 = vector.load %arg15[%c0_197, %c0_198, %c0_199] : memref<1x16x288xbf16, #tpu.memory_space<vmem>>, vector<1x16x288xbf16>
    %223 = vector.shape_cast %222 : vector<1x16x288xbf16> to vector<16x288xbf16>
    %c0_200 = arith.constant 0 : index
    %c0_201 = arith.constant 0 : index
    %c0_202 = arith.constant 0 : index
    %224 = vector.load %arg16[%c0_200, %c0_201, %c0_202] : memref<1x16x3xf32, #tpu.memory_space<vmem>>, vector<1x16x3xf32>
    %225 = vector.shape_cast %224 : vector<1x16x3xf32> to vector<16x3xf32>
    %c0_203 = arith.constant 0 : index
    %c0_204 = arith.constant 0 : index
    %226 = vector.load %arg23[%c0_203, %c0_204] : memref<288x324xbf16, #tpu.memory_space<vmem>>, vector<288x100xbf16>
    %cst_205 = arith.constant dense<0.000000e+00> : vector<16x100xf32>
    %227 = tpu.matmul %223, %226, %cst_205 {dimension_numbers = #tpu.dot_dimension_numbers<[1], [0], [0], [1], [0, 0, 1, 1], [], []>} : vector<16x288xbf16>, vector<288x100xbf16>, vector<16x100xf32> -> vector<16x100xf32>
    %228 = vector.extract_strided_slice %225 {offsets = [0, 0], sizes = [16, 1], strides = [1, 1]} : vector<16x3xf32> to vector<16x1xf32>
    %229 = vector.broadcast %228 : vector<16x1xf32> to vector<16x100xf32>
    %230 = arith.addf %227, %229 : vector<16x100xf32>
    %231 = vector.broadcast %7 : vector<1x100xf32> to vector<16x100xf32>
    %232 = arith.mulf %230, %231 : vector<16x100xf32>
    %cst_206 = arith.constant dense<0.000000e+00> : vector<16xf32>
    %233 = vector.multi_reduction <add>, %232, %cst_206 [1] : vector<16x100xf32> to vector<16xf32>
    %234 = vector.shape_cast %233 : vector<16xf32> to vector<16x1xf32>
    %235 = arith.mulf %230, %230 : vector<16x100xf32>
    %236 = vector.broadcast %7 : vector<1x100xf32> to vector<16x100xf32>
    %237 = arith.mulf %235, %236 : vector<16x100xf32>
    %cst_207 = arith.constant dense<0.000000e+00> : vector<16xf32>
    %238 = vector.multi_reduction <add>, %237, %cst_207 [1] : vector<16x100xf32> to vector<16xf32>
    %239 = vector.shape_cast %238 : vector<16xf32> to vector<16x1xf32>
    %cst_208 = arith.constant 1.562500e-02 : f32
    %240 = vector.broadcast %cst_208 : f32 to vector<16x1xf32>
    %241 = arith.mulf %234, %240 : vector<16x1xf32>
    %cst_209 = arith.constant 1.562500e-02 : f32
    %242 = vector.broadcast %cst_209 : f32 to vector<16x1xf32>
    %243 = arith.mulf %239, %242 : vector<16x1xf32>
    %244 = arith.mulf %241, %241 : vector<16x1xf32>
    %245 = arith.subf %243, %244 : vector<16x1xf32>
    %cst_210 = arith.constant 0.000000e+00 : f32
    %246 = vector.broadcast %cst_210 : f32 to vector<16x1xf32>
    %247 = arith.maximumf %245, %246 : vector<16x1xf32>
    %cst_211 = arith.constant 9.99999974E-6 : f32
    %248 = vector.broadcast %cst_211 : f32 to vector<16x1xf32>
    %249 = arith.addf %247, %248 : vector<16x1xf32>
    %250 = math.rsqrt %249 : vector<16x1xf32>
    %251 = vector.extract_strided_slice %225 {offsets = [0, 1], sizes = [16, 1], strides = [1, 1]} : vector<16x3xf32> to vector<16x1xf32>
    %252 = arith.mulf %250, %251 : vector<16x1xf32>
    %253 = vector.extract_strided_slice %225 {offsets = [0, 2], sizes = [16, 1], strides = [1, 1]} : vector<16x3xf32> to vector<16x1xf32>
    %254 = arith.mulf %241, %252 : vector<16x1xf32>
    %255 = arith.subf %253, %254 : vector<16x1xf32>
    %256 = vector.broadcast %252 : vector<16x1xf32> to vector<16x100xf32>
    %257 = arith.mulf %230, %256 : vector<16x100xf32>
    %258 = vector.broadcast %255 : vector<16x1xf32> to vector<16x100xf32>
    %259 = arith.addf %257, %258 : vector<16x100xf32>
    %cst_212 = arith.constant 0.000000e+00 : f32
    %260 = vector.broadcast %cst_212 : f32 to vector<16x100xf32>
    %261 = arith.maximumf %259, %260 : vector<16x100xf32>
    %262 = vector.broadcast %7 : vector<1x100xf32> to vector<16x100xf32>
    %263 = arith.mulf %261, %262 : vector<16x100xf32>
    %264 = arith.truncf %263 : vector<16x100xf32> to vector<16x100xbf16>
    %c0_213 = arith.constant 0 : index
    %c0_214 = arith.constant 0 : index
    %265 = vector.load %arg7[%c0_213, %c0_214] : memref<100x324xbf16, #tpu.memory_space<vmem>>, vector<100x324xbf16>
    %cst_215 = arith.constant dense<0.000000e+00> : vector<16x324xf32>
    %266 = tpu.matmul %264, %265, %cst_215 {dimension_numbers = #tpu.dot_dimension_numbers<[1], [0], [0], [1], [0, 0, 1, 1], [], []>} : vector<16x100xbf16>, vector<100x324xbf16>, vector<16x324xf32> -> vector<16x324xf32>
    %267 = arith.truncf %266 : vector<16x324xf32> to vector<16x324xbf16>
    %c0_216 = arith.constant 0 : index
    %c128_217 = arith.constant 128 : index
    %268 = vector.load %arg22[%c0_216, %c128_217] : memref<32x472xbf16, #tpu.memory_space<vmem>>, vector<16x324xbf16>
    tpu.vector_store %arg22[%c0_216, %c128_217], %267 {strides = array<i32>} : memref<32x472xbf16, #tpu.memory_space<vmem>>, vector<16x324xbf16>,
    %c0_218 = arith.constant 0 : index
    %c109_219 = arith.constant 109 : index
    %269 = vector.load %arg22[%c0_218, %c109_219] : memref<32x472xbf16, #tpu.memory_space<vmem>>, vector<16x324xbf16>
    %c0_220 = arith.constant 0 : index
    %c0_221 = arith.constant 0 : index
    %270 = vector.load %arg23[%c0_220, %c0_221] : memref<288x324xbf16, #tpu.memory_space<vmem>>, vector<16x324xbf16>
    tpu.vector_store %arg23[%c0_220, %c0_221], %269 {strides = array<i32>} : memref<288x324xbf16, #tpu.memory_space<vmem>>, vector<16x324xbf16>,
    %c0_222 = arith.constant 0 : index
    %c110_223 = arith.constant 110 : index
    %271 = vector.load %arg22[%c0_222, %c110_223] : memref<32x472xbf16, #tpu.memory_space<vmem>>, vector<16x324xbf16>
    %c32_224 = arith.constant 32 : index
    %c0_225 = arith.constant 0 : index
    %272 = vector.load %arg23[%c32_224, %c0_225] : memref<288x324xbf16, #tpu.memory_space<vmem>>, vector<16x324xbf16>
    tpu.vector_store %arg23[%c32_224, %c0_225], %271 {strides = array<i32>} : memref<288x324xbf16, #tpu.memory_space<vmem>>, vector<16x324xbf16>,
    %c0_226 = arith.constant 0 : index
    %c111_227 = arith.constant 111 : index
    %273 = vector.load %arg22[%c0_226, %c111_227] : memref<32x472xbf16, #tpu.memory_space<vmem>>, vector<16x324xbf16>
    %c64_228 = arith.constant 64 : index
    %c0_229 = arith.constant 0 : index
    %274 = vector.load %arg23[%c64_228, %c0_229] : memref<288x324xbf16, #tpu.memory_space<vmem>>, vector<16x324xbf16>
    tpu.vector_store %arg23[%c64_228, %c0_229], %273 {strides = array<i32>} : memref<288x324xbf16, #tpu.memory_space<vmem>>, vector<16x324xbf16>,
    %c0_230 = arith.constant 0 : index
    %c127_231 = arith.constant 127 : index
    %275 = vector.load %arg22[%c0_230, %c127_231] : memref<32x472xbf16, #tpu.memory_space<vmem>>, vector<16x324xbf16>
    %c96_232 = arith.constant 96 : index
    %c0_233 = arith.constant 0 : index
    %276 = vector.load %arg23[%c96_232, %c0_233] : memref<288x324xbf16, #tpu.memory_space<vmem>>, vector<16x324xbf16>
    tpu.vector_store %arg23[%c96_232, %c0_233], %275 {strides = array<i32>} : memref<288x324xbf16, #tpu.memory_space<vmem>>, vector<16x324xbf16>,
    %c0_234 = arith.constant 0 : index
    %c128_235 = arith.constant 128 : index
    %277 = vector.load %arg22[%c0_234, %c128_235] : memref<32x472xbf16, #tpu.memory_space<vmem>>, vector<16x324xbf16>
    %c128_236 = arith.constant 128 : index
    %c0_237 = arith.constant 0 : index
    %278 = vector.load %arg23[%c128_236, %c0_237] : memref<288x324xbf16, #tpu.memory_space<vmem>>, vector<16x324xbf16>
    tpu.vector_store %arg23[%c128_236, %c0_237], %277 {strides = array<i32>} : memref<288x324xbf16, #tpu.memory_space<vmem>>, vector<16x324xbf16>,
    %c0_238 = arith.constant 0 : index
    %c129_239 = arith.constant 129 : index
    %279 = vector.load %arg22[%c0_238, %c129_239] : memref<32x472xbf16, #tpu.memory_space<vmem>>, vector<16x324xbf16>
    %c160_240 = arith.constant 160 : index
    %c0_241 = arith.constant 0 : index
    %280 = vector.load %arg23[%c160_240, %c0_241] : memref<288x324xbf16, #tpu.memory_space<vmem>>, vector<16x324xbf16>
    tpu.vector_store %arg23[%c160_240, %c0_241], %279 {strides = array<i32>} : memref<288x324xbf16, #tpu.memory_space<vmem>>, vector<16x324xbf16>,
    %c0_242 = arith.constant 0 : index
    %c145_243 = arith.constant 145 : index
    %281 = vector.load %arg22[%c0_242, %c145_243] : memref<32x472xbf16, #tpu.memory_space<vmem>>, vector<16x324xbf16>
    %c192_244 = arith.constant 192 : index
    %c0_245 = arith.constant 0 : index
    %282 = vector.load %arg23[%c192_244, %c0_245] : memref<288x324xbf16, #tpu.memory_space<vmem>>, vector<16x324xbf16>
    tpu.vector_store %arg23[%c192_244, %c0_245], %281 {strides = array<i32>} : memref<288x324xbf16, #tpu.memory_space<vmem>>, vector<16x324xbf16>,
    %c0_246 = arith.constant 0 : index
    %c146_247 = arith.constant 146 : index
    %283 = vector.load %arg22[%c0_246, %c146_247] : memref<32x472xbf16, #tpu.memory_space<vmem>>, vector<16x324xbf16>
    %c224_248 = arith.constant 224 : index
    %c0_249 = arith.constant 0 : index
    %284 = vector.load %arg23[%c224_248, %c0_249] : memref<288x324xbf16, #tpu.memory_space<vmem>>, vector<16x324xbf16>
    tpu.vector_store %arg23[%c224_248, %c0_249], %283 {strides = array<i32>} : memref<288x324xbf16, #tpu.memory_space<vmem>>, vector<16x324xbf16>,
    %c0_250 = arith.constant 0 : index
    %c147_251 = arith.constant 147 : index
    %285 = vector.load %arg22[%c0_250, %c147_251] : memref<32x472xbf16, #tpu.memory_space<vmem>>, vector<16x324xbf16>
    %c256_252 = arith.constant 256 : index
    %c0_253 = arith.constant 0 : index
    %286 = vector.load %arg23[%c256_252, %c0_253] : memref<288x324xbf16, #tpu.memory_space<vmem>>, vector<16x324xbf16>
    tpu.vector_store %arg23[%c256_252, %c0_253], %285 {strides = array<i32>} : memref<288x324xbf16, #tpu.memory_space<vmem>>, vector<16x324xbf16>,
    %c0_254 = arith.constant 0 : index
    %c0_255 = arith.constant 0 : index
    %c0_256 = arith.constant 0 : index
    %287 = vector.load %arg17[%c0_254, %c0_255, %c0_256] : memref<1x16x288xbf16, #tpu.memory_space<vmem>>, vector<1x16x288xbf16>
    %288 = vector.shape_cast %287 : vector<1x16x288xbf16> to vector<16x288xbf16>
    %c0_257 = arith.constant 0 : index
    %c0_258 = arith.constant 0 : index
    %c0_259 = arith.constant 0 : index
    %289 = vector.load %arg18[%c0_257, %c0_258, %c0_259] : memref<1x16x3xf32, #tpu.memory_space<vmem>>, vector<1x16x3xf32>
    %290 = vector.shape_cast %289 : vector<1x16x3xf32> to vector<16x3xf32>
    %c0_260 = arith.constant 0 : index
    %c0_261 = arith.constant 0 : index
    %291 = vector.load %arg23[%c0_260, %c0_261] : memref<288x324xbf16, #tpu.memory_space<vmem>>, vector<288x324xbf16>
    %cst_262 = arith.constant dense<0.000000e+00> : vector<16x324xf32>
    %292 = tpu.matmul %288, %291, %cst_262 {dimension_numbers = #tpu.dot_dimension_numbers<[1], [0], [0], [1], [0, 0, 1, 1], [], []>} : vector<16x288xbf16>, vector<288x324xbf16>, vector<16x324xf32> -> vector<16x324xf32>
    %293 = vector.extract_strided_slice %290 {offsets = [0, 0], sizes = [16, 1], strides = [1, 1]} : vector<16x3xf32> to vector<16x1xf32>
    %294 = vector.broadcast %293 : vector<16x1xf32> to vector<16x324xf32>
    %295 = arith.addf %292, %294 : vector<16x324xf32>
    %296 = vector.broadcast %5 : vector<1x324xf32> to vector<16x324xf32>
    %297 = arith.mulf %295, %296 : vector<16x324xf32>
    %cst_263 = arith.constant dense<0.000000e+00> : vector<16xf32>
    %298 = vector.multi_reduction <add>, %297, %cst_263 [1] : vector<16x324xf32> to vector<16xf32>
    %299 = vector.shape_cast %298 : vector<16xf32> to vector<16x1xf32>
    %300 = arith.mulf %295, %295 : vector<16x324xf32>
    %301 = vector.broadcast %5 : vector<1x324xf32> to vector<16x324xf32>
    %302 = arith.mulf %300, %301 : vector<16x324xf32>
    %cst_264 = arith.constant dense<0.000000e+00> : vector<16xf32>
    %303 = vector.multi_reduction <add>, %302, %cst_264 [1] : vector<16x324xf32> to vector<16xf32>
    %304 = vector.shape_cast %303 : vector<16xf32> to vector<16x1xf32>
    %cst_265 = arith.constant 3.906250e-03 : f32
    %305 = vector.broadcast %cst_265 : f32 to vector<16x1xf32>
    %306 = arith.mulf %299, %305 : vector<16x1xf32>
    %cst_266 = arith.constant 3.906250e-03 : f32
    %307 = vector.broadcast %cst_266 : f32 to vector<16x1xf32>
    %308 = arith.mulf %304, %307 : vector<16x1xf32>
    %309 = arith.mulf %306, %306 : vector<16x1xf32>
    %310 = arith.subf %308, %309 : vector<16x1xf32>
    %cst_267 = arith.constant 0.000000e+00 : f32
    %311 = vector.broadcast %cst_267 : f32 to vector<16x1xf32>
    %312 = arith.maximumf %310, %311 : vector<16x1xf32>
    %cst_268 = arith.constant 9.99999974E-6 : f32
    %313 = vector.broadcast %cst_268 : f32 to vector<16x1xf32>
    %314 = arith.addf %312, %313 : vector<16x1xf32>
    %315 = math.rsqrt %314 : vector<16x1xf32>
    %316 = vector.extract_strided_slice %290 {offsets = [0, 1], sizes = [16, 1], strides = [1, 1]} : vector<16x3xf32> to vector<16x1xf32>
    %317 = arith.mulf %315, %316 : vector<16x1xf32>
    %318 = vector.extract_strided_slice %290 {offsets = [0, 2], sizes = [16, 1], strides = [1, 1]} : vector<16x3xf32> to vector<16x1xf32>
    %319 = arith.mulf %306, %317 : vector<16x1xf32>
    %320 = arith.subf %318, %319 : vector<16x1xf32>
    %321 = vector.broadcast %317 : vector<16x1xf32> to vector<16x324xf32>
    %322 = arith.mulf %295, %321 : vector<16x324xf32>
    %323 = vector.broadcast %320 : vector<16x1xf32> to vector<16x324xf32>
    %324 = arith.addf %322, %323 : vector<16x324xf32>
    %cst_269 = arith.constant 0.000000e+00 : f32
    %325 = vector.broadcast %cst_269 : f32 to vector<16x324xf32>
    %326 = arith.maximumf %324, %325 : vector<16x324xf32>
    %327 = vector.broadcast %5 : vector<1x324xf32> to vector<16x324xf32>
    %328 = arith.mulf %326, %327 : vector<16x324xf32>
    %329 = arith.truncf %328 : vector<16x324xf32> to vector<16x324xbf16>
    %c0_270 = arith.constant 0 : index
    %c128_271 = arith.constant 128 : index
    %330 = vector.load %arg22[%c0_270, %c128_271] : memref<32x472xbf16, #tpu.memory_space<vmem>>, vector<16x324xbf16>
    tpu.vector_store %arg22[%c0_270, %c128_271], %329 {strides = array<i32>} : memref<32x472xbf16, #tpu.memory_space<vmem>>, vector<16x324xbf16>,
    %c0_272 = arith.constant 0 : index
    %c109_273 = arith.constant 109 : index
    %331 = vector.load %arg22[%c0_272, %c109_273] : memref<32x472xbf16, #tpu.memory_space<vmem>>, vector<16x324xbf16>
    %c0_274 = arith.constant 0 : index
    %c0_275 = arith.constant 0 : index
    %332 = vector.load %arg23[%c0_274, %c0_275] : memref<288x324xbf16, #tpu.memory_space<vmem>>, vector<16x324xbf16>
    tpu.vector_store %arg23[%c0_274, %c0_275], %331 {strides = array<i32>} : memref<288x324xbf16, #tpu.memory_space<vmem>>, vector<16x324xbf16>,
    %c0_276 = arith.constant 0 : index
    %c110_277 = arith.constant 110 : index
    %333 = vector.load %arg22[%c0_276, %c110_277] : memref<32x472xbf16, #tpu.memory_space<vmem>>, vector<16x324xbf16>
    %c32_278 = arith.constant 32 : index
    %c0_279 = arith.constant 0 : index
    %334 = vector.load %arg23[%c32_278, %c0_279] : memref<288x324xbf16, #tpu.memory_space<vmem>>, vector<16x324xbf16>
    tpu.vector_store %arg23[%c32_278, %c0_279], %333 {strides = array<i32>} : memref<288x324xbf16, #tpu.memory_space<vmem>>, vector<16x324xbf16>,
    %c0_280 = arith.constant 0 : index
    %c111_281 = arith.constant 111 : index
    %335 = vector.load %arg22[%c0_280, %c111_281] : memref<32x472xbf16, #tpu.memory_space<vmem>>, vector<16x324xbf16>
    %c64_282 = arith.constant 64 : index
    %c0_283 = arith.constant 0 : index
    %336 = vector.load %arg23[%c64_282, %c0_283] : memref<288x324xbf16, #tpu.memory_space<vmem>>, vector<16x324xbf16>
    tpu.vector_store %arg23[%c64_282, %c0_283], %335 {strides = array<i32>} : memref<288x324xbf16, #tpu.memory_space<vmem>>, vector<16x324xbf16>,
    %c0_284 = arith.constant 0 : index
    %c127_285 = arith.constant 127 : index
    %337 = vector.load %arg22[%c0_284, %c127_285] : memref<32x472xbf16, #tpu.memory_space<vmem>>, vector<16x324xbf16>
    %c96_286 = arith.constant 96 : index
    %c0_287 = arith.constant 0 : index
    %338 = vector.load %arg23[%c96_286, %c0_287] : memref<288x324xbf16, #tpu.memory_space<vmem>>, vector<16x324xbf16>
    tpu.vector_store %arg23[%c96_286, %c0_287], %337 {strides = array<i32>} : memref<288x324xbf16, #tpu.memory_space<vmem>>, vector<16x324xbf16>,
    %c0_288 = arith.constant 0 : index
    %c128_289 = arith.constant 128 : index
    %339 = vector.load %arg22[%c0_288, %c128_289] : memref<32x472xbf16, #tpu.memory_space<vmem>>, vector<16x324xbf16>
    %c128_290 = arith.constant 128 : index
    %c0_291 = arith.constant 0 : index
    %340 = vector.load %arg23[%c128_290, %c0_291] : memref<288x324xbf16, #tpu.memory_space<vmem>>, vector<16x324xbf16>
    tpu.vector_store %arg23[%c128_290, %c0_291], %339 {strides = array<i32>} : memref<288x324xbf16, #tpu.memory_space<vmem>>, vector<16x324xbf16>,
    %c0_292 = arith.constant 0 : index
    %c129_293 = arith.constant 129 : index
    %341 = vector.load %arg22[%c0_292, %c129_293] : memref<32x472xbf16, #tpu.memory_space<vmem>>, vector<16x324xbf16>
    %c160_294 = arith.constant 160 : index
    %c0_295 = arith.constant 0 : index
    %342 = vector.load %arg23[%c160_294, %c0_295] : memref<288x324xbf16, #tpu.memory_space<vmem>>, vector<16x324xbf16>
    tpu.vector_store %arg23[%c160_294, %c0_295], %341 {strides = array<i32>} : memref<288x324xbf16, #tpu.memory_space<vmem>>, vector<16x324xbf16>,
    %c0_296 = arith.constant 0 : index
    %c145_297 = arith.constant 145 : index
    %343 = vector.load %arg22[%c0_296, %c145_297] : memref<32x472xbf16, #tpu.memory_space<vmem>>, vector<16x324xbf16>
    %c192_298 = arith.constant 192 : index
    %c0_299 = arith.constant 0 : index
    %344 = vector.load %arg23[%c192_298, %c0_299] : memref<288x324xbf16, #tpu.memory_space<vmem>>, vector<16x324xbf16>
    tpu.vector_store %arg23[%c192_298, %c0_299], %343 {strides = array<i32>} : memref<288x324xbf16, #tpu.memory_space<vmem>>, vector<16x324xbf16>,
    %c0_300 = arith.constant 0 : index
    %c146_301 = arith.constant 146 : index
    %345 = vector.load %arg22[%c0_300, %c146_301] : memref<32x472xbf16, #tpu.memory_space<vmem>>, vector<16x324xbf16>
    %c224_302 = arith.constant 224 : index
    %c0_303 = arith.constant 0 : index
    %346 = vector.load %arg23[%c224_302, %c0_303] : memref<288x324xbf16, #tpu.memory_space<vmem>>, vector<16x324xbf16>
    tpu.vector_store %arg23[%c224_302, %c0_303], %345 {strides = array<i32>} : memref<288x324xbf16, #tpu.memory_space<vmem>>, vector<16x324xbf16>,
    %c0_304 = arith.constant 0 : index
    %c147_305 = arith.constant 147 : index
    %347 = vector.load %arg22[%c0_304, %c147_305] : memref<32x472xbf16, #tpu.memory_space<vmem>>, vector<16x324xbf16>
    %c256_306 = arith.constant 256 : index
    %c0_307 = arith.constant 0 : index
    %348 = vector.load %arg23[%c256_306, %c0_307] : memref<288x324xbf16, #tpu.memory_space<vmem>>, vector<16x324xbf16>
    tpu.vector_store %arg23[%c256_306, %c0_307], %347 {strides = array<i32>} : memref<288x324xbf16, #tpu.memory_space<vmem>>, vector<16x324xbf16>,
    %c0_308 = arith.constant 0 : index
    %c0_309 = arith.constant 0 : index
    %c0_310 = arith.constant 0 : index
    %349 = vector.load %arg19[%c0_308, %c0_309, %c0_310] : memref<1x4x288xbf16, #tpu.memory_space<vmem>>, vector<1x4x288xbf16>
    %350 = vector.shape_cast %349 : vector<1x4x288xbf16> to vector<4x288xbf16>
    %c0_311 = arith.constant 0 : index
    %c0_312 = arith.constant 0 : index
    %c0_313 = arith.constant 0 : index
    %351 = vector.load %arg20[%c0_311, %c0_312, %c0_313] : memref<1x4x3xf32, #tpu.memory_space<vmem>>, vector<1x4x3xf32>
    %352 = vector.shape_cast %351 : vector<1x4x3xf32> to vector<4x3xf32>
    %c0_314 = arith.constant 0 : index
    %c0_315 = arith.constant 0 : index
    %353 = vector.load %arg23[%c0_314, %c0_315] : memref<288x324xbf16, #tpu.memory_space<vmem>>, vector<288x324xbf16>
    %cst_316 = arith.constant dense<0.000000e+00> : vector<4x324xf32>
    %354 = tpu.matmul %350, %353, %cst_316 {dimension_numbers = #tpu.dot_dimension_numbers<[1], [0], [0], [1], [0, 0, 1, 1], [], []>} : vector<4x288xbf16>, vector<288x324xbf16>, vector<4x324xf32> -> vector<4x324xf32>
    %355 = vector.extract_strided_slice %352 {offsets = [0, 0], sizes = [4, 1], strides = [1, 1]} : vector<4x3xf32> to vector<4x1xf32>
    %356 = vector.broadcast %355 : vector<4x1xf32> to vector<4x324xf32>
    %357 = arith.addf %354, %356 : vector<4x324xf32>
    %358 = arith.truncf %357 : vector<4x324xf32> to vector<4x324xbf16>
    %c0_317 = arith.constant 0 : index
    %c0_318 = arith.constant 0 : index
    %359 = vector.load %arg8[%c0_317, %c0_318] : memref<324x256xbf16, #tpu.memory_space<vmem>>, vector<324x256xbf16>
    %cst_319 = arith.constant dense<0.000000e+00> : vector<4x256xf32>
    %360 = tpu.matmul %358, %359, %cst_319 {dimension_numbers = #tpu.dot_dimension_numbers<[1], [0], [0], [1], [0, 0, 1, 1], [], []>} : vector<4x324xbf16>, vector<324x256xbf16>, vector<4x256xf32> -> vector<4x256xf32>
    %361 = math.tanh %360 : vector<4x256xf32>
    %c0_320 = arith.constant 0 : index
    %c0_321 = arith.constant 0 : index
    %c0_322 = arith.constant 0 : index
    %c0_323 = arith.constant 0 : index
    %362 = vector.load %arg21[%c0_320, %c0_321, %c0_322, %c0_323] : memref<1x1x4x256xf32, #tpu.memory_space<vmem>>, vector<1x1x4x256xf32>
    %363 = vector.shape_cast %362 : vector<1x1x4x256xf32> to vector<4x256xf32>
    %364 = vector.shape_cast %361 : vector<4x256xf32> to vector<1x1x4x256xf32>
    tpu.vector_store %arg21[%c0_320, %c0_321, %c0_322, %c0_323], %364 {strides = array<i32>} : memref<1x1x4x256xf32, #tpu.memory_space<vmem>>, vector<1x1x4x256xf32>,
    return
  }
  func.func @transform_0(%arg0: i32, %arg1: i32) -> (i32, i32, i32, i32) {
    %c0_i32 = arith.constant 0 : i32
    %c0_i32_0 = arith.constant 0 : i32
    %c0_i32_1 = arith.constant 0 : i32
    return %arg0, %arg1, %c0_i32, %c0_i32_0 : i32, i32, i32, i32
  }
  func.func @transform_1(%arg0: i32, %arg1: i32) -> (i32, i32) {
    %c0_i32 = arith.constant 0 : i32
    %c0_i32_0 = arith.constant 0 : i32
    %c0_i32_1 = arith.constant 0 : i32
    return %c0_i32, %c0_i32_0 : i32, i32
  }
  func.func @transform_2(%arg0: i32, %arg1: i32) -> (i32, i32) {
    %c0_i32 = arith.constant 0 : i32
    %c0_i32_0 = arith.constant 0 : i32
    %c0_i32_1 = arith.constant 0 : i32
    return %c0_i32, %c0_i32_0 : i32, i32
  }
  func.func @transform_3(%arg0: i32, %arg1: i32) -> (i32, i32) {
    %c0_i32 = arith.constant 0 : i32
    %c0_i32_0 = arith.constant 0 : i32
    %c0_i32_1 = arith.constant 0 : i32
    return %c0_i32, %c0_i32_0 : i32, i32
  }
  func.func @transform_4(%arg0: i32, %arg1: i32) -> (i32, i32) {
    %c0_i32 = arith.constant 0 : i32
    %c0_i32_0 = arith.constant 0 : i32
    %c0_i32_1 = arith.constant 0 : i32
    return %c0_i32, %c0_i32_0 : i32, i32
  }
  func.func @transform_5(%arg0: i32, %arg1: i32) -> (i32, i32) {
    %c0_i32 = arith.constant 0 : i32
    %c0_i32_0 = arith.constant 0 : i32
    %c0_i32_1 = arith.constant 0 : i32
    return %c0_i32, %c0_i32_0 : i32, i32
  }
  func.func @transform_6(%arg0: i32, %arg1: i32) -> (i32, i32) {
    %c0_i32 = arith.constant 0 : i32
    %c0_i32_0 = arith.constant 0 : i32
    %c0_i32_1 = arith.constant 0 : i32
    return %c0_i32, %c0_i32_0 : i32, i32
  }
  func.func @transform_7(%arg0: i32, %arg1: i32) -> (i32, i32, i32) {
    %c0_i32 = arith.constant 0 : i32
    %c0_i32_0 = arith.constant 0 : i32
    %c0_i32_1 = arith.constant 0 : i32
    return %arg0, %c0_i32, %c0_i32_0 : i32, i32, i32
  }
  func.func @transform_8(%arg0: i32, %arg1: i32) -> (i32, i32, i32) {
    %c0_i32 = arith.constant 0 : i32
    %c0_i32_0 = arith.constant 0 : i32
    %c0_i32_1 = arith.constant 0 : i32
    return %arg0, %c0_i32, %c0_i32_0 : i32, i32, i32
  }
  func.func @transform_9(%arg0: i32, %arg1: i32) -> (i32, i32, i32) {
    %c0_i32 = arith.constant 0 : i32
    %c0_i32_0 = arith.constant 0 : i32
    %c0_i32_1 = arith.constant 0 : i32
    return %arg0, %c0_i32, %c0_i32_0 : i32, i32, i32
  }
  func.func @transform_10(%arg0: i32, %arg1: i32) -> (i32, i32, i32) {
    %c0_i32 = arith.constant 0 : i32
    %c0_i32_0 = arith.constant 0 : i32
    %c0_i32_1 = arith.constant 0 : i32
    return %arg0, %c0_i32, %c0_i32_0 : i32, i32, i32
  }
  func.func @transform_11(%arg0: i32, %arg1: i32) -> (i32, i32, i32) {
    %c0_i32 = arith.constant 0 : i32
    %c0_i32_0 = arith.constant 0 : i32
    %c0_i32_1 = arith.constant 0 : i32
    return %arg0, %c0_i32, %c0_i32_0 : i32, i32, i32
  }
  func.func @transform_12(%arg0: i32, %arg1: i32) -> (i32, i32, i32) {
    %c0_i32 = arith.constant 0 : i32
    %c0_i32_0 = arith.constant 0 : i32
    %c0_i32_1 = arith.constant 0 : i32
    return %arg0, %c0_i32, %c0_i32_0 : i32, i32, i32
  }
  func.func @transform_13(%arg0: i32, %arg1: i32) -> (i32, i32, i32) {
    %c0_i32 = arith.constant 0 : i32
    %c0_i32_0 = arith.constant 0 : i32
    %c0_i32_1 = arith.constant 0 : i32
    return %arg0, %c0_i32, %c0_i32_0 : i32, i32, i32
  }
  func.func @transform_14(%arg0: i32, %arg1: i32) -> (i32, i32, i32) {
    %c0_i32 = arith.constant 0 : i32
    %c0_i32_0 = arith.constant 0 : i32
    %c0_i32_1 = arith.constant 0 : i32
    return %arg0, %c0_i32, %c0_i32_0 : i32, i32, i32
  }
  func.func @transform_15(%arg0: i32, %arg1: i32) -> (i32, i32, i32) {
    %c0_i32 = arith.constant 0 : i32
    %c0_i32_0 = arith.constant 0 : i32
    %c0_i32_1 = arith.constant 0 : i32
    return %arg0, %c0_i32, %c0_i32_0 : i32, i32, i32
  }
  func.func @transform_16(%arg0: i32, %arg1: i32) -> (i32, i32, i32) {
    %c0_i32 = arith.constant 0 : i32
    %c0_i32_0 = arith.constant 0 : i32
    %c0_i32_1 = arith.constant 0 : i32
    return %arg0, %c0_i32, %c0_i32_0 : i32, i32, i32
  }
  func.func @transform_17(%arg0: i32, %arg1: i32) -> (i32, i32, i32) {
    %c0_i32 = arith.constant 0 : i32
    %c0_i32_0 = arith.constant 0 : i32
    %c0_i32_1 = arith.constant 0 : i32
    return %arg0, %c0_i32, %c0_i32_0 : i32, i32, i32
  }
  func.func @transform_18(%arg0: i32, %arg1: i32) -> (i32, i32, i32) {
    %c0_i32 = arith.constant 0 : i32
    %c0_i32_0 = arith.constant 0 : i32
    %c0_i32_1 = arith.constant 0 : i32
    return %arg0, %c0_i32, %c0_i32_0 : i32, i32, i32
  }
  func.func @transform_19(%arg0: i32, %arg1: i32) -> (i32, i32, i32, i32) {
    %c0_i32 = arith.constant 0 : i32
    %c0_i32_0 = arith.constant 0 : i32
    %c0_i32_1 = arith.constant 0 : i32
    return %arg0, %arg1, %c0_i32, %c0_i32_0 : i32, i32, i32, i32
  }
}

</mosaic_0001>

<llo_original>
// kernel: squeeze.2
$region0: #{squeeze.2}
  %s0 = inlined_call_operand.vmem [shape: f32[1,2,4,256], index: 0, kind: input, shape index: {}]
  %s1 = inlined_call_operand.hbm [shape: f32[2,4,16,16], index: 1, kind: output, shape index: {}]
  $region1: #{squeeze.2} parent=0
    #allocation0 [shape = 'u8[65536]{0}', space=vmem, size = 0x10000, scoped, tag = 'operand span for operand 1']
    #allocation1 [shape = 's32[1]{0}', space=sflag, size = 0x4, scoped, tag = 'scoped memory for squeeze.2']
    #allocation2 [shape = 'u8[16384]{0}', space=vmem, size = 0x4000, scoped, tag = 'scoped mem for input reshape']
    %2 = vsyncpa [#allocation1], 0
    %s4 = sshllo.u32 0, 4
    %s5 = smul.addr 4, 3
    %s6 = scalar_lea.vmem %s0, %s5
    %v7 = vld [vmem:[%s6] sm:%s4]
    %s8 = scalar_lea.vmem [#allocation2], 24
    %9 = vst [vmem:[%s8] sm:%s4] %v7
    %s10 = smul.addr 4, 2
    %s11 = scalar_lea.vmem %s0, %s10
    %v12 = vld [vmem:[%s11] sm:%s4]
    %s13 = scalar_lea.vmem [#allocation2], 16
    %14 = vst [vmem:[%s13] sm:%s4] %v12
    %s15 = scalar_lea.vmem %s0, 4
    %v16 = vld [vmem:[%s15] sm:%s4]
    %s17 = scalar_lea.vmem [#allocation2], 8
    %18 = vst [vmem:[%s17] sm:%s4] %v16
    %v19 = vld [vmem:[%s0] sm:%s4]
    %20 = vst [vmem:[#allocation2] sm:%s4] %v19
    %v21 = vld [vmem:[#allocation2] sm:$0xf]
    %vm22 = vcmask 130048
    %23 = vst.msk [vmem:[#allocation0] ss:$16 sm:$0x3] %vm22, %v21
    %24 = vst.msk [vmem:[#allocation0] ss:$16 sm:$0xc] %vm22, %v21
    %s25 = scalar_lea.vmem [#allocation2], 8
    %v26 = vld [vmem:[%s25] sm:$0xf]
    %vm27 = vcmask 130048
    %s28 = scalar_lea.vmem [#allocation0], 8
    %29 = vst.msk [vmem:[%s28] ss:$16 sm:$0x3] %vm27, %v26
    %s30 = scalar_lea.vmem [#allocation0], 8
    %31 = vst.msk [vmem:[%s30] ss:$16 sm:$0xc] %vm27, %v26
    %s32 = scalar_lea.vmem [#allocation2], 16
    %v33 = vld [vmem:[%s32] sm:$0xf]
    %vm34 = vcmask 130048
    %s35 = scalar_lea.vmem [#allocation0], 64
    %36 = vst.msk [vmem:[%s35] ss:$16 sm:$0x3] %vm34, %v33
    %s37 = scalar_lea.vmem [#allocation0], 64
    %38 = vst.msk [vmem:[%s37] ss:$16 sm:$0xc] %vm34, %v33
    %s39 = scalar_lea.vmem [#allocation2], 24
    %v40 = vld [vmem:[%s39] sm:$0xf]
    %vm41 = vcmask 130048
    %s42 = scalar_lea.vmem [#allocation0], 72
    %43 = vst.msk [vmem:[%s42] ss:$16 sm:$0x3] %vm41, %v40
    %s44 = scalar_lea.vmem [#allocation0], 72
    %45 = vst.msk [vmem:[%s44] ss:$16 sm:$0xc] %vm41, %v40
    %v46 = vld.sshfl [vmem:[#allocation2] sm:$0xff pattern:$0xb3a29180]
    %47 = vrot.lane.b32.xlu0 %v46, 112
    %v48 = vpop.permute.xlu0 %47
    %vm49 = vcmask 130048
    %s50 = scalar_lea.vmem [#allocation0], 1
    %51 = vst.msk [vmem:[%s50] ss:$8 sm:$0xf] %vm49, %v48
    %s52 = scalar_lea.vmem [#allocation0], 1
    %53 = vst.msk [vmem:[%s52] ss:$8 sm:$0xf0] %vm49, %v48
    %s54 = scalar_lea.vmem [#allocation2], 16
    %v55 = vld.sshfl [vmem:[%s54] sm:$0xff pattern:$0xb3a29180]
    %56 = vrot.lane.b32.xlu0 %v55, 112
    %v57 = vpop.permute.xlu0 %56
    %vm58 = vcmask 130048
    %s59 = scalar_lea.vmem [#allocation0], 65
    %60 = vst.msk [vmem:[%s59] ss:$8 sm:$0xf] %vm58, %v57
    %s61 = scalar_lea.vmem [#allocation0], 65
    %62 = vst.msk [vmem:[%s61] ss:$8 sm:$0xf0] %vm58, %v57
    %v63 = vld.sshfl [vmem:[#allocation2] sm:$0xff pattern:$0xb3a29180]
    %64 = vrot.lane.b32.xlu0 %v63, 96
    %v65 = vpop.permute.xlu0 %64
    %vm66 = vcmask 130048
    %s67 = scalar_lea.vmem [#allocation0], 2
    %68 = vst.msk [vmem:[%s67] ss:$8 sm:$0xf] %vm66, %v65
    %s69 = scalar_lea.vmem [#allocation0], 2
    %70 = vst.msk [vmem:[%s69] ss:$8 sm:$0xf0] %vm66, %v65
    %s71 = scalar_lea.vmem [#allocation2], 16
    %v72 = vld.sshfl [vmem:[%s71] sm:$0xff pattern:$0xb3a29180]
    %73 = vrot.lane.b32.xlu0 %v72, 96
    %v74 = vpop.permute.xlu0 %73
    %vm75 = vcmask 130048
    %s76 = scalar_lea.vmem [#allocation0], 66
    %77 = vst.msk [vmem:[%s76] ss:$8 sm:$0xf] %vm75, %v74
    %s78 = scalar_lea.vmem [#allocation0], 66
    %79 = vst.msk [vmem:[%s78] ss:$8 sm:$0xf0] %vm75, %v74
    %v80 = vld.sshfl [vmem:[#allocation2] sm:$0xff pattern:$0xb3a29180]
    %81 = vrot.lane.b32.xlu0 %v80, 80
    %v82 = vpop.permute.xlu0 %81
    %vm83 = vcmask 130048
    %s84 = scalar_lea.vmem [#allocation0], 3
    %85 = vst.msk [vmem:[%s84] ss:$8 sm:$0xf] %vm83, %v82
    %s86 = scalar_lea.vmem [#allocation0], 3
    %87 = vst.msk [vmem:[%s86] ss:$8 sm:$0xf0] %vm83, %v82
    %s88 = scalar_lea.vmem [#allocation2], 16
    %v89 = vld.sshfl [vmem:[%s88] sm:$0xff pattern:$0xb3a29180]
    %90 = vrot.lane.b32.xlu0 %v89, 80
    %v91 = vpop.permute.xlu0 %90
    %vm92 = vcmask 130048
    %s93 = scalar_lea.vmem [#allocation0], 67
    %94 = vst.msk [vmem:[%s93] ss:$8 sm:$0xf] %vm92, %v91
    %s95 = scalar_lea.vmem [#allocation0], 67
    %96 = vst.msk [vmem:[%s95] ss:$8 sm:$0xf0] %vm92, %v91
    %v97 = vld.sshfl [vmem:[#allocation2] sm:$0xff pattern:$0xb3a29180]
    %98 = vrot.lane.b32.xlu0 %v97, 64
    %v99 = vpop.permute.xlu0 %98
    %vm100 = vcmask 130048
    %s101 = scalar_lea.vmem [#allocation0], 4
    %102 = vst.msk [vmem:[%s101] ss:$8 sm:$0xf] %vm100, %v99
    %s103 = scalar_lea.vmem [#allocation0], 4
    %104 = vst.msk [vmem:[%s103] ss:$8 sm:$0xf0] %vm100, %v99
    %s105 = scalar_lea.vmem [#allocation2], 16
    %v106 = vld.sshfl [vmem:[%s105] sm:$0xff pattern:$0xb3a29180]
    %107 = vrot.lane.b32.xlu0 %v106, 64
    %v108 = vpop.permute.xlu0 %107
    %vm109 = vcmask 130048
    %s110 = scalar_lea.vmem [#allocation0], 68
    %111 = vst.msk [vmem:[%s110] ss:$8 sm:$0xf] %vm109, %v108
    %s112 = scalar_lea.vmem [#allocation0], 68
    %113 = vst.msk [vmem:[%s112] ss:$8 sm:$0xf0] %vm109, %v108
    %v114 = vld.sshfl [vmem:[#allocation2] sm:$0xff pattern:$0xb3a29180]
    %115 = vrot.lane.b32.xlu0 %v114, 48
    %v116 = vpop.permute.xlu0 %115
    %vm117 = vcmask 130048
    %s118 = scalar_lea.vmem [#allocation0], 5
    %119 = vst.msk [vmem:[%s118] ss:$8 sm:$0xf] %vm117, %v116
    %s120 = scalar_lea.vmem [#allocation0], 5
    %121 = vst.msk [vmem:[%s120] ss:$8 sm:$0xf0] %vm117, %v116
    %s122 = scalar_lea.vmem [#allocation2], 16
    %v123 = vld.sshfl [vmem:[%s122] sm:$0xff pattern:$0xb3a29180]
    %124 = vrot.lane.b32.xlu0 %v123, 48
    %v125 = vpop.permute.xlu0 %124
    %vm126 = vcmask 130048
    %s127 = scalar_lea.vmem [#allocation0], 69
    %128 = vst.msk [vmem:[%s127] ss:$8 sm:$0xf] %vm126, %v125
    %s129 = scalar_lea.vmem [#allocation0], 69
    %130 = vst.msk [vmem:[%s129] ss:$8 sm:$0xf0] %vm126, %v125
    %v131 = vld.sshfl [vmem:[#allocation2] sm:$0xff pattern:$0xb3a29180]
    %132 = vrot.lane.b32.xlu0 %v131, 32
    %v133 = vpop.permute.xlu0 %132
    %vm134 = vcmask 130048
    %s135 = scalar_lea.vmem [#allocation0], 6
    %136 = vst.msk [vmem:[%s135] ss:$8 sm:$0xf] %vm134, %v133
    %s137 = scalar_lea.vmem [#allocation0], 6
    %138 = vst.msk [vmem:[%s137] ss:$8 sm:$0xf0] %vm134, %v133
    %s139 = scalar_lea.vmem [#allocation2], 16
    %v140 = vld.sshfl [vmem:[%s139] sm:$0xff pattern:$0xb3a29180]
    %141 = vrot.lane.b32.xlu0 %v140, 32
    %v142 = vpop.permute.xlu0 %141
    %vm143 = vcmask 130048
    %s144 = scalar_lea.vmem [#allocation0], 70
    %145 = vst.msk [vmem:[%s144] ss:$8 sm:$0xf] %vm143, %v142
    %s146 = scalar_lea.vmem [#allocation0], 70
    %147 = vst.msk [vmem:[%s146] ss:$8 sm:$0xf0] %vm143, %v142
    %v148 = vld.sshfl [vmem:[#allocation2] sm:$0xff pattern:$0xb3a29180]
    %149 = vrot.lane.b32.xlu0 %v148, 16
    %v150 = vpop.permute.xlu0 %149
    %vm151 = vcmask 130048
    %s152 = scalar_lea.vmem [#allocation0], 7
    %153 = vst.msk [vmem:[%s152] ss:$8 sm:$0xf] %vm151, %v150
    %s154 = scalar_lea.vmem [#allocation0], 7
    %155 = vst.msk [vmem:[%s154] ss:$8 sm:$0xf0] %vm151, %v150
    %s156 = scalar_lea.vmem [#allocation2], 16
    %v157 = vld.sshfl [vmem:[%s156] sm:$0xff pattern:$0xb3a29180]
    %158 = vrot.lane.b32.xlu0 %v157, 16
    %v159 = vpop.permute.xlu0 %158
    %vm160 = vcmask 130048
    %s161 = scalar_lea.vmem [#allocation0], 71
    %162 = vst.msk [vmem:[%s161] ss:$8 sm:$0xf] %vm160, %v159
    %s163 = scalar_lea.vmem [#allocation0], 71
    %164 = vst.msk [vmem:[%s163] ss:$8 sm:$0xf0] %vm160, %v159
    %s166 = ssub.s32 2048, 2048
    %167 = vsyncadd [#allocation1], %s166
    %s169 = sshll.u32 [#allocation0], 4
    %s170 = int_to_ptr.vmem [resolvable:$true] %s169
    %172 = dma.vmem_to_hbm [thread:$0]  %s170, 2048, %s1, [#allocation1]
    %173 = dma.done [#allocation1], 2048
    %174 = vsyncpa [#allocation1], 1

// kernel: travelgan_forward.1
$region0: #{travelgan_forward.1}
  #allocation0 [shape = 'u32[]', space=smem, size = 0x4, offset = 0x4, fixed_abs, tag = 'smem constant byte address 0x4 - core index']
  #allocation1 [shape = 'u32[144,128]{1,0:T(1,128)}', space=vmem, size = 0x12000, scoped, tag = 'internal scratch']
  #allocation2 [shape = 'bf16[32,472]{1,0:T(16,128)(2,1)}', space=vmem, size = 0x8000, scoped, tag = 'scratch operand']
  #allocation3 [shape = 'bf16[288,324]{1,0:T(16,128)(2,1)}', space=vmem, size = 0x36000, scoped, tag = 'scratch operand']
  %s0 = inlined_call_operand.vmem [shape: f32[2,2,16,324], index: 0, kind: input, shape index: {}]
  %s1 = inlined_call_operand.vmem [shape: f32[4,324], index: 1, kind: input, shape index: {}]
  %s2 = inlined_call_operand.vmem [shape: bf16[324,100], index: 2, kind: input, shape index: {}]
  %s3 = inlined_call_operand.vmem [shape: bf16[100,36], index: 3, kind: input, shape index: {}]
  %s4 = inlined_call_operand.vmem [shape: bf16[36,100], index: 4, kind: input, shape index: {}]
  %s5 = inlined_call_operand.vmem [shape: bf16[100,324], index: 5, kind: input, shape index: {}]
  %s6 = inlined_call_operand.vmem [shape: bf16[324,256], index: 6, kind: input, shape index: {}]
  %s7 = inlined_call_operand.vmem [shape: bf16[2,16,288], index: 7, kind: input, shape index: {}]
  %s8 = inlined_call_operand.vmem [shape: f32[2,16,3], index: 8, kind: input, shape index: {}]
  %s9 = inlined_call_operand.vmem [shape: bf16[2,16,288], index: 9, kind: input, shape index: {}]
  %s10 = inlined_call_operand.vmem [shape: f32[2,16,3], index: 10, kind: input, shape index: {}]
  %s11 = inlined_call_operand.vmem [shape: bf16[2,32,288], index: 11, kind: input, shape index: {}]
  %s12 = inlined_call_operand.vmem [shape: f32[2,32,3], index: 12, kind: input, shape index: {}]
  %s13 = inlined_call_operand.vmem [shape: bf16[2,16,288], index: 13, kind: input, shape index: {}]
  %s14 = inlined_call_operand.vmem [shape: f32[2,16,3], index: 14, kind: input, shape index: {}]
  %s15 = inlined_call_operand.vmem [shape: bf16[2,16,288], index: 15, kind: input, shape index: {}]
  %s16 = inlined_call_operand.vmem [shape: f32[2,16,3], index: 16, kind: input, shape index: {}]
  %s17 = inlined_call_operand.vmem [shape: bf16[2,4,288], index: 17, kind: input, shape index: {}]
  %s18 = inlined_call_operand.vmem [shape: f32[2,4,3], index: 18, kind: input, shape index: {}]
  %s19 = inlined_call_operand.vmem [shape: f32[2,2,4,256], index: 19, kind: output, shape index: {}]
  %s20 = sld [smem:[#allocation0]]
  $region109: #{travelgan_forward.1} parent=0
    _
  %s22 = ssub.s32 1, %s20
  %s23 = scalar_select 0, %s22, %s20
  loop: start=0, step=1, limit=6
  $region2: #{travelgan_forward.1} parent=0 // loop_pre_header
    _
  $region3: #{travelgan_forward.1} parent=0 // loop_header
    %s25 = sphi 0, %s29
    %p26 = scmp.ge.s32.totalorder %s25, 6
    %s32 = sphi 0, %s44
    %s33 = sphi 0, %s40
    %s34 = sphi 0, %s32
    %s35 = sphi 0, %s33
    %s36 = sphi 0, %s34
    %s37 = sphi 0, %s35
    %s49 = sphi 0, %s51
    %s52 = sphi 0, %s49
    %s53 = sphi 0, %s52
    %s69 = sphi 0, %s53
    %s73 = sphi 0, %s73
    %s75 = sphi 0, %s73
    %s76 = sphi 0, %s75
    %s90 = sphi 0, %s76
    %s94 = sphi 0, %s94
    %s96 = sphi 0, %s94
    %s97 = sphi 0, %s96
    %s111 = sphi 0, %s97
    %s115 = sphi 0, %s115
    %s117 = sphi 0, %s115
    %s118 = sphi 0, %s117
    %s132 = sphi 0, %s118
    %s136 = sphi 0, %s136
    %s138 = sphi 0, %s136
    %s139 = sphi 0, %s138
    %s153 = sphi 0, %s139
    %s157 = sphi 0, %s157
    %s159 = sphi 0, %s157
    %s160 = sphi 0, %s159
    %s174 = sphi 0, %s160
    %s178 = sphi 0, %s178
    %s180 = sphi 0, %s178
    %s181 = sphi 0, %s180
    %s195 = sphi 0, %s181
    %s201 = sphi 0, %s203
    %s204 = sphi 0, %s201
    %s205 = sphi 0, %s204
    %s221 = sphi 0, %s205
    %s227 = sphi 0, %s229
    %s230 = sphi 0, %s227
    %s231 = sphi 0, %s230
    %s247 = sphi 0, %s231
    %s253 = sphi 0, %s255
    %s256 = sphi 0, %s253
    %s257 = sphi 0, %s256
    %s273 = sphi 0, %s257
    %s279 = sphi 0, %s281
    %s282 = sphi 0, %s279
    %s283 = sphi 0, %s282
    %s299 = sphi 0, %s283
    %s305 = sphi 0, %s307
    %s308 = sphi 0, %s305
    %s309 = sphi 0, %s308
    %s325 = sphi 0, %s309
    %s331 = sphi 0, %s333
    %s334 = sphi 0, %s331
    %s335 = sphi 0, %s334
    %s351 = sphi 0, %s335
    %s357 = sphi 0, %s359
    %s360 = sphi 0, %s357
    %s361 = sphi 0, %s360
    %s377 = sphi 0, %s361
    %s383 = sphi 0, %s385
    %s386 = sphi 0, %s383
    %s387 = sphi 0, %s386
    %s403 = sphi 0, %s387
    %s409 = sphi 0, %s411
    %s412 = sphi 0, %s409
    %s413 = sphi 0, %s412
    %s429 = sphi 0, %s413
    %s435 = sphi 0, %s437
    %s438 = sphi 0, %s435
    %s439 = sphi 0, %s438
    %s455 = sphi 0, %s439
    %s461 = sphi 0, %s463
    %s464 = sphi 0, %s461
    %s465 = sphi 0, %s464
    %s481 = sphi 0, %s465
    %s487 = sphi 0, %s489
    %s490 = sphi 0, %s487
    %s491 = sphi 0, %s490
    %s507 = sphi 0, %s491
    %s515 = sphi 0, %s517
    %s518 = sphi 0, %s515
    %s519 = sphi 0, %s518
    %s535 = sphi 0, %s519
  $region4: #{travelgan_forward.1} parent=0 // loop_header_branch
    %28 = sbr.rel (%p26) target = $region8
  $region5: #{travelgan_forward.1} parent=0 // loop_body
    %s30 = ssub.s32 %s25, 1
    %s31 = ssub.s32 %s25, 2
    %s38 = sadd.s32 1, %s33
    %p39 = scmp.ge.s32.totalorder %s38, 2
    %s40 = scalar_select %p39, 0, %s38
    %s41 = sadd.s32 1, %s32
    %s42 = scalar_select %p39, %s41, %s32
    %p43 = scmp.ge.s32.totalorder %s42, 2
    %s44 = scalar_select %p43, 0, %s42
    %s45 = ssub.s32 %s32, %s44
    %s46 = ssub.s32 %s33, %s40
    %s47 = sor.u32 %s45, %s46
    %p48 = scmp.eq.s32.totalorder %s47, 0
    %s50 = sadd.s32 %s49, 1
    %s51 = scalar_select %p48, %s49, %s50
    %p54 = pneg %p48
    %p55 = scmp.eq.s32.totalorder %s25, 3
    %p56 = por %p54, %p55
    %p57 = scmp.ne.s32.totalorder %s49, %s52
    %p58 = scmp.eq.s32.totalorder %s25, 0
    %p59 = por %p57, %p58
    %p60 = scmp.ne.s32.totalorder %s49, %s52
    %p61 = scmp.eq.s32.totalorder %s30, 3
    %p62 = por %p60, %p61
    %p63 = scmp.ne.s32.totalorder %s52, %s53
    %p64 = scmp.eq.s32.totalorder %s30, 0
    %p65 = por %p63, %p64
    %p66 = scmp.ne.s32.totalorder %s52, %s53
    %p67 = scmp.eq.s32.totalorder %s31, 3
    %p68 = por %p66, %p67
    %p70 = scmp.ne.s32.totalorder %s53, %s69
    %p71 = scmp.eq.s32.totalorder %s31, 0
    %p72 = por %p70, %p71
    %s74 = sadd.s32 %s73, 1
    %p77 = scmp.eq.s32.totalorder %s25, 3
    %p78 = scmp.ne.s32.totalorder %s73, %s75
    %p79 = scmp.eq.s32.totalorder %s25, 0
    %p80 = por %p78, %p79
    %p81 = scmp.ne.s32.totalorder %s73, %s75
    %p82 = scmp.eq.s32.totalorder %s30, 3
    %p83 = por %p81, %p82
    %p84 = scmp.ne.s32.totalorder %s75, %s76
    %p85 = scmp.eq.s32.totalorder %s30, 0
    %p86 = por %p84, %p85
    %p87 = scmp.ne.s32.totalorder %s75, %s76
    %p88 = scmp.eq.s32.totalorder %s31, 3
    %p89 = por %p87, %p88
    %p91 = scmp.ne.s32.totalorder %s76, %s90
    %p92 = scmp.eq.s32.totalorder %s31, 0
    %p93 = por %p91, %p92
    %s95 = sadd.s32 %s94, 1
    %p98 = scmp.eq.s32.totalorder %s25, 3
    %p99 = scmp.ne.s32.totalorder %s94, %s96
    %p100 = scmp.eq.s32.totalorder %s25, 0
    %p101 = por %p99, %p100
    %p102 = scmp.ne.s32.totalorder %s94, %s96
    %p103 = scmp.eq.s32.totalorder %s30, 3
    %p104 = por %p102, %p103
    %p105 = scmp.ne.s32.totalorder %s96, %s97
    %p106 = scmp.eq.s32.totalorder %s30, 0
    %p107 = por %p105, %p106
    %p108 = scmp.ne.s32.totalorder %s96, %s97
    %p109 = scmp.eq.s32.totalorder %s31, 3
    %p110 = por %p108, %p109
    %p112 = scmp.ne.s32.totalorder %s97, %s111
    %p113 = scmp.eq.s32.totalorder %s31, 0
    %p114 = por %p112, %p113
    %s116 = sadd.s32 %s115, 1
    %p119 = scmp.eq.s32.totalorder %s25, 3
    %p120 = scmp.ne.s32.totalorder %s115, %s117
    %p121 = scmp.eq.s32.totalorder %s25, 0
    %p122 = por %p120, %p121
    %p123 = scmp.ne.s32.totalorder %s115, %s117
    %p124 = scmp.eq.s32.totalorder %s30, 3
    %p125 = por %p123, %p124
    %p126 = scmp.ne.s32.totalorder %s117, %s118
    %p127 = scmp.eq.s32.totalorder %s30, 0
    %p128 = por %p126, %p127
    %p129 = scmp.ne.s32.totalorder %s117, %s118
    %p130 = scmp.eq.s32.totalorder %s31, 3
    %p131 = por %p129, %p130
    %p133 = scmp.ne.s32.totalorder %s118, %s132
    %p134 = scmp.eq.s32.totalorder %s31, 0
    %p135 = por %p133, %p134
    %s137 = sadd.s32 %s136, 1
    %p140 = scmp.eq.s32.totalorder %s25, 3
    %p141 = scmp.ne.s32.totalorder %s136, %s138
    %p142 = scmp.eq.s32.totalorder %s25, 0
    %p143 = por %p141, %p142
    %p144 = scmp.ne.s32.totalorder %s136, %s138
    %p145 = scmp.eq.s32.totalorder %s30, 3
    %p146 = por %p144, %p145
    %p147 = scmp.ne.s32.totalorder %s138, %s139
    %p148 = scmp.eq.s32.totalorder %s30, 0
    %p149 = por %p147, %p148
    %p150 = scmp.ne.s32.totalorder %s138, %s139
    %p151 = scmp.eq.s32.totalorder %s31, 3
    %p152 = por %p150, %p151
    %p154 = scmp.ne.s32.totalorder %s139, %s153
    %p155 = scmp.eq.s32.totalorder %s31, 0
    %p156 = por %p154, %p155
    %s158 = sadd.s32 %s157, 1
    %p161 = scmp.eq.s32.totalorder %s25, 3
    %p162 = scmp.ne.s32.totalorder %s157, %s159
    %p163 = scmp.eq.s32.totalorder %s25, 0
    %p164 = por %p162, %p163
    %p165 = scmp.ne.s32.totalorder %s157, %s159
    %p166 = scmp.eq.s32.totalorder %s30, 3
    %p167 = por %p165, %p166
    %p168 = scmp.ne.s32.totalorder %s159, %s160
    %p169 = scmp.eq.s32.totalorder %s30, 0
    %p170 = por %p168, %p169
    %p171 = scmp.ne.s32.totalorder %s159, %s160
    %p172 = scmp.eq.s32.totalorder %s31, 3
    %p173 = por %p171, %p172
    %p175 = scmp.ne.s32.totalorder %s160, %s174
    %p176 = scmp.eq.s32.totalorder %s31, 0
    %p177 = por %p175, %p176
    %s179 = sadd.s32 %s178, 1
    %p182 = scmp.eq.s32.totalorder %s25, 3
    %p183 = scmp.ne.s32.totalorder %s178, %s180
    %p184 = scmp.eq.s32.totalorder %s25, 0
    %p185 = por %p183, %p184
    %p186 = scmp.ne.s32.totalorder %s178, %s180
    %p187 = scmp.eq.s32.totalorder %s30, 3
    %p188 = por %p186, %p187
    %p189 = scmp.ne.s32.totalorder %s180, %s181
    %p190 = scmp.eq.s32.totalorder %s30, 0
    %p191 = por %p189, %p190
    %p192 = scmp.ne.s32.totalorder %s180, %s181
    %p193 = scmp.eq.s32.totalorder %s31, 3
    %p194 = por %p192, %p193
    %p196 = scmp.ne.s32.totalorder %s181, %s195
    %p197 = scmp.eq.s32.totalorder %s31, 0
    %p198 = por %p196, %p197
    %s199 = ssub.s32 %s32, %s44
    %p200 = scmp.eq.s32.totalorder %s199, 0
    %s202 = sadd.s32 %s201, 1
    %s203 = scalar_select %p200, %s201, %s202
    %p206 = pneg %p200
    %p207 = scmp.eq.s32.totalorder %s25, 3
    %p208 = por %p206, %p207
    %p209 = scmp.ne.s32.totalorder %s201, %s204
    %p210 = scmp.eq.s32.totalorder %s25, 0
    %p211 = por %p209, %p210
    %p212 = scmp.ne.s32.totalorder %s201, %s204
    %p213 = scmp.eq.s32.totalorder %s30, 3
    %p214 = por %p212, %p213
    %p215 = scmp.ne.s32.totalorder %s204, %s205
    %p216 = scmp.eq.s32.totalorder %s30, 0
    %p217 = por %p215, %p216
    %p218 = scmp.ne.s32.totalorder %s204, %s205
    %p219 = scmp.eq.s32.totalorder %s31, 3
    %p220 = por %p218, %p219
    %p222 = scmp.ne.s32.totalorder %s205, %s221
    %p223 = scmp.eq.s32.totalorder %s31, 0
    %p224 = por %p222, %p223
    %s225 = ssub.s32 %s32, %s44
    %p226 = scmp.eq.s32.totalorder %s225, 0
    %s228 = sadd.s32 %s227, 1
    %s229 = scalar_select %p226, %s227, %s228
    %p232 = pneg %p226
    %p233 = scmp.eq.s32.totalorder %s25, 3
    %p234 = por %p232, %p233
    %p235 = scmp.ne.s32.totalorder %s227, %s230
    %p236 = scmp.eq.s32.totalorder %s25, 0
    %p237 = por %p235, %p236
    %p238 = scmp.ne.s32.totalorder %s227, %s230
    %p239 = scmp.eq.s32.totalorder %s30, 3
    %p240 = por %p238, %p239
    %p241 = scmp.ne.s32.totalorder %s230, %s231
    %p242 = scmp.eq.s32.totalorder %s30, 0
    %p243 = por %p241, %p242
    %p244 = scmp.ne.s32.totalorder %s230, %s231
    %p245 = scmp.eq.s32.totalorder %s31, 3
    %p246 = por %p244, %p245
    %p248 = scmp.ne.s32.totalorder %s231, %s247
    %p249 = scmp.eq.s32.totalorder %s31, 0
    %p250 = por %p248, %p249
    %s251 = ssub.s32 %s32, %s44
    %p252 = scmp.eq.s32.totalorder %s251, 0
    %s254 = sadd.s32 %s253, 1
    %s255 = scalar_select %p252, %s253, %s254
    %p258 = pneg %p252
    %p259 = scmp.eq.s32.totalorder %s25, 3
    %p260 = por %p258, %p259
    %p261 = scmp.ne.s32.totalorder %s253, %s256
    %p262 = scmp.eq.s32.totalorder %s25, 0
    %p263 = por %p261, %p262
    %p264 = scmp.ne.s32.totalorder %s253, %s256
    %p265 = scmp.eq.s32.totalorder %s30, 3
    %p266 = por %p264, %p265
    %p267 = scmp.ne.s32.totalorder %s256, %s257
    %p268 = scmp.eq.s32.totalorder %s30, 0
    %p269 = por %p267, %p268
    %p270 = scmp.ne.s32.totalorder %s256, %s257
    %p271 = scmp.eq.s32.totalorder %s31, 3
    %p272 = por %p270, %p271
    %p274 = scmp.ne.s32.totalorder %s257, %s273
    %p275 = scmp.eq.s32.totalorder %s31, 0
    %p276 = por %p274, %p275
    %s277 = ssub.s32 %s32, %s44
    %p278 = scmp.eq.s32.totalorder %s277, 0
    %s280 = sadd.s32 %s279, 1
    %s281 = scalar_select %p278, %s279, %s280
    %p284 = pneg %p278
    %p285 = scmp.eq.s32.totalorder %s25, 3
    %p286 = por %p284, %p285
    %p287 = scmp.ne.s32.totalorder %s279, %s282
    %p288 = scmp.eq.s32.totalorder %s25, 0
    %p289 = por %p287, %p288
    %p290 = scmp.ne.s32.totalorder %s279, %s282
    %p291 = scmp.eq.s32.totalorder %s30, 3
    %p292 = por %p290, %p291
    %p293 = scmp.ne.s32.totalorder %s282, %s283
    %p294 = scmp.eq.s32.totalorder %s30, 0
    %p295 = por %p293, %p294
    %p296 = scmp.ne.s32.totalorder %s282, %s283
    %p297 = scmp.eq.s32.totalorder %s31, 3
    %p298 = por %p296, %p297
    %p300 = scmp.ne.s32.totalorder %s283, %s299
    %p301 = scmp.eq.s32.totalorder %s31, 0
    %p302 = por %p300, %p301
    %s303 = ssub.s32 %s32, %s44
    %p304 = scmp.eq.s32.totalorder %s303, 0
    %s306 = sadd.s32 %s305, 1
    %s307 = scalar_select %p304, %s305, %s306
    %p310 = pneg %p304
    %p311 = scmp.eq.s32.totalorder %s25, 3
    %p312 = por %p310, %p311
    %p313 = scmp.ne.s32.totalorder %s305, %s308
    %p314 = scmp.eq.s32.totalorder %s25, 0
    %p315 = por %p313, %p314
    %p316 = scmp.ne.s32.totalorder %s305, %s308
    %p317 = scmp.eq.s32.totalorder %s30, 3
    %p318 = por %p316, %p317
    %p319 = scmp.ne.s32.totalorder %s308, %s309
    %p320 = scmp.eq.s32.totalorder %s30, 0
    %p321 = por %p319, %p320
    %p322 = scmp.ne.s32.totalorder %s308, %s309
    %p323 = scmp.eq.s32.totalorder %s31, 3
    %p324 = por %p322, %p323
    %p326 = scmp.ne.s32.totalorder %s309, %s325
    %p327 = scmp.eq.s32.totalorder %s31, 0
    %p328 = por %p326, %p327
    %s329 = ssub.s32 %s32, %s44
    %p330 = scmp.eq.s32.totalorder %s329, 0
    %s332 = sadd.s32 %s331, 1
    %s333 = scalar_select %p330, %s331, %s332
    %p336 = pneg %p330
    %p337 = scmp.eq.s32.totalorder %s25, 3
    %p338 = por %p336, %p337
    %p339 = scmp.ne.s32.totalorder %s331, %s334
    %p340 = scmp.eq.s32.totalorder %s25, 0
    %p341 = por %p339, %p340
    %p342 = scmp.ne.s32.totalorder %s331, %s334
    %p343 = scmp.eq.s32.totalorder %s30, 3
    %p344 = por %p342, %p343
    %p345 = scmp.ne.s32.totalorder %s334, %s335
    %p346 = scmp.eq.s32.totalorder %s30, 0
    %p347 = por %p345, %p346
    %p348 = scmp.ne.s32.totalorder %s334, %s335
    %p349 = scmp.eq.s32.totalorder %s31, 3
    %p350 = por %p348, %p349
    %p352 = scmp.ne.s32.totalorder %s335, %s351
    %p353 = scmp.eq.s32.totalorder %s31, 0
    %p354 = por %p352, %p353
    %s355 = ssub.s32 %s32, %s44
    %p356 = scmp.eq.s32.totalorder %s355, 0
    %s358 = sadd.s32 %s357, 1
    %s359 = scalar_select %p356, %s357, %s358
    %p362 = pneg %p356
    %p363 = scmp.eq.s32.totalorder %s25, 3
    %p364 = por %p362, %p363
    %p365 = scmp.ne.s32.totalorder %s357, %s360
    %p366 = scmp.eq.s32.totalorder %s25, 0
    %p367 = por %p365, %p366
    %p368 = scmp.ne.s32.totalorder %s357, %s360
    %p369 = scmp.eq.s32.totalorder %s30, 3
    %p370 = por %p368, %p369
    %p371 = scmp.ne.s32.totalorder %s360, %s361
    %p372 = scmp.eq.s32.totalorder %s30, 0
    %p373 = por %p371, %p372
    %p374 = scmp.ne.s32.totalorder %s360, %s361
    %p375 = scmp.eq.s32.totalorder %s31, 3
    %p376 = por %p374, %p375
    %p378 = scmp.ne.s32.totalorder %s361, %s377
    %p379 = scmp.eq.s32.totalorder %s31, 0
    %p380 = por %p378, %p379
    %s381 = ssub.s32 %s32, %s44
    %p382 = scmp.eq.s32.totalorder %s381, 0
    %s384 = sadd.s32 %s383, 1
    %s385 = scalar_select %p382, %s383, %s384
    %p388 = pneg %p382
    %p389 = scmp.eq.s32.totalorder %s25, 3
    %p390 = por %p388, %p389
    %p391 = scmp.ne.s32.totalorder %s383, %s386
    %p392 = scmp.eq.s32.totalorder %s25, 0
    %p393 = por %p391, %p392
    %p394 = scmp.ne.s32.totalorder %s383, %s386
    %p395 = scmp.eq.s32.totalorder %s30, 3
    %p396 = por %p394, %p395
    %p397 = scmp.ne.s32.totalorder %s386, %s387
    %p398 = scmp.eq.s32.totalorder %s30, 0
    %p399 = por %p397, %p398
    %p400 = scmp.ne.s32.totalorder %s386, %s387
    %p401 = scmp.eq.s32.totalorder %s31, 3
    %p402 = por %p400, %p401
    %p404 = scmp.ne.s32.totalorder %s387, %s403
    %p405 = scmp.eq.s32.totalorder %s31, 0
    %p406 = por %p404, %p405
    %s407 = ssub.s32 %s32, %s44
    %p408 = scmp.eq.s32.totalorder %s407, 0
    %s410 = sadd.s32 %s409, 1
    %s411 = scalar_select %p408, %s409, %s410
    %p414 = pneg %p408
    %p415 = scmp.eq.s32.totalorder %s25, 3
    %p416 = por %p414, %p415
    %p417 = scmp.ne.s32.totalorder %s409, %s412
    %p418 = scmp.eq.s32.totalorder %s25, 0
    %p419 = por %p417, %p418
    %p420 = scmp.ne.s32.totalorder %s409, %s412
    %p421 = scmp.eq.s32.totalorder %s30, 3
    %p422 = por %p420, %p421
    %p423 = scmp.ne.s32.totalorder %s412, %s413
    %p424 = scmp.eq.s32.totalorder %s30, 0
    %p425 = por %p423, %p424
    %p426 = scmp.ne.s32.totalorder %s412, %s413
    %p427 = scmp.eq.s32.totalorder %s31, 3
    %p428 = por %p426, %p427
    %p430 = scmp.ne.s32.totalorder %s413, %s429
    %p431 = scmp.eq.s32.totalorder %s31, 0
    %p432 = por %p430, %p431
    %s433 = ssub.s32 %s32, %s44
    %p434 = scmp.eq.s32.totalorder %s433, 0
    %s436 = sadd.s32 %s435, 1
    %s437 = scalar_select %p434, %s435, %s436
    %p440 = pneg %p434
    %p441 = scmp.eq.s32.totalorder %s25, 3
    %p442 = por %p440, %p441
    %p443 = scmp.ne.s32.totalorder %s435, %s438
    %p444 = scmp.eq.s32.totalorder %s25, 0
    %p445 = por %p443, %p444
    %p446 = scmp.ne.s32.totalorder %s435, %s438
    %p447 = scmp.eq.s32.totalorder %s30, 3
    %p448 = por %p446, %p447
    %p449 = scmp.ne.s32.totalorder %s438, %s439
    %p450 = scmp.eq.s32.totalorder %s30, 0
    %p451 = por %p449, %p450
    %p452 = scmp.ne.s32.totalorder %s438, %s439
    %p453 = scmp.eq.s32.totalorder %s31, 3
    %p454 = por %p452, %p453
    %p456 = scmp.ne.s32.totalorder %s439, %s455
    %p457 = scmp.eq.s32.totalorder %s31, 0
    %p458 = por %p456, %p457
    %s459 = ssub.s32 %s32, %s44
    %p460 = scmp.eq.s32.totalorder %s459, 0
    %s462 = sadd.s32 %s461, 1
    %s463 = scalar_select %p460, %s461, %s462
    %p466 = pneg %p460
    %p467 = scmp.eq.s32.totalorder %s25, 3
    %p468 = por %p466, %p467
    %p469 = scmp.ne.s32.totalorder %s461, %s464
    %p470 = scmp.eq.s32.totalorder %s25, 0
    %p471 = por %p469, %p470
    %p472 = scmp.ne.s32.totalorder %s461, %s464
    %p473 = scmp.eq.s32.totalorder %s30, 3
    %p474 = por %p472, %p473
    %p475 = scmp.ne.s32.totalorder %s464, %s465
    %p476 = scmp.eq.s32.totalorder %s30, 0
    %p477 = por %p475, %p476
    %p478 = scmp.ne.s32.totalorder %s464, %s465
    %p479 = scmp.eq.s32.totalorder %s31, 3
    %p480 = por %p478, %p479
    %p482 = scmp.ne.s32.totalorder %s465, %s481
    %p483 = scmp.eq.s32.totalorder %s31, 0
    %p484 = por %p482, %p483
    %s485 = ssub.s32 %s32, %s44
    %p486 = scmp.eq.s32.totalorder %s485, 0
    %s488 = sadd.s32 %s487, 1
    %s489 = scalar_select %p486, %s487, %s488
    %p492 = pneg %p486
    %p493 = scmp.eq.s32.totalorder %s25, 3
    %p494 = por %p492, %p493
    %p495 = scmp.ne.s32.totalorder %s487, %s490
    %p496 = scmp.eq.s32.totalorder %s25, 0
    %p497 = por %p495, %p496
    %p498 = scmp.ne.s32.totalorder %s487, %s490
    %p499 = scmp.eq.s32.totalorder %s30, 3
    %p500 = por %p498, %p499
    %p501 = scmp.ne.s32.totalorder %s490, %s491
    %p502 = scmp.eq.s32.totalorder %s30, 0
    %p503 = por %p501, %p502
    %p504 = scmp.ne.s32.totalorder %s490, %s491
    %p505 = scmp.eq.s32.totalorder %s31, 3
    %p506 = por %p504, %p505
    %p508 = scmp.ne.s32.totalorder %s491, %s507
    %p509 = scmp.eq.s32.totalorder %s31, 0
    %p510 = por %p508, %p509
    %s511 = ssub.s32 %s32, %s44
    %s512 = ssub.s32 %s33, %s40
    %s513 = sor.u32 %s511, %s512
    %p514 = scmp.eq.s32.totalorder %s513, 0
    %s516 = sadd.s32 %s515, 1
    %s517 = scalar_select %p514, %s515, %s516
    %p520 = pneg %p514
    %p521 = scmp.eq.s32.totalorder %s25, 3
    %p522 = por %p520, %p521
    %p523 = scmp.ne.s32.totalorder %s515, %s518
    %p524 = scmp.eq.s32.totalorder %s25, 0
    %p525 = por %p523, %p524
    %p526 = scmp.ne.s32.totalorder %s515, %s518
    %p527 = scmp.eq.s32.totalorder %s30, 3
    %p528 = por %p526, %p527
    %p529 = scmp.ne.s32.totalorder %s518, %s519
    %p530 = scmp.eq.s32.totalorder %s30, 0
    %p531 = por %p529, %p530
    %p532 = scmp.ne.s32.totalorder %s518, %s519
    %p533 = scmp.eq.s32.totalorder %s31, 3
    %p534 = por %p532, %p533
    %p536 = scmp.ne.s32.totalorder %s519, %s535
    %p537 = scmp.eq.s32.totalorder %s31, 0
    %p538 = por %p536, %p537
    %p539 = scmp.le.s32.totalorder 1, %s25
    %p540 = scmp.lt.s32.totalorder %s25, 5
    %p541 = pnand %p539, %p540
    %p542 = pneg %p541
    // Predicated region
    $region9: #{travelgan_forward.1} parent=5 // pred_check
      _
    $region10: #{travelgan_forward.1} parent=5 // pred_check_branch
      %544 = sbr.rel (%p541) target = $region12
    $region11: #{travelgan_forward.1} parent=5 // pred_region
      %s545 = ssub.s32 %s25, 1
      // Predicated region
      $region13: #{travelgan_forward.1} parent=11 // pred_check
        %p546 = pneg %p86
      $region14: #{travelgan_forward.1} parent=11 // pred_check_branch
        %548 = sbr.rel (%p546) target = $region16
      $region15: #{travelgan_forward.1} parent=11 // pred_region
        _
      $region16: #{travelgan_forward.1} parent=11 // pred_fallthru
        _
      // Predicated region
      $region17: #{travelgan_forward.1} parent=11 // pred_check
        %p549 = pneg %p107
      $region18: #{travelgan_forward.1} parent=11 // pred_check_branch
        %551 = sbr.rel (%p549) target = $region20
      $region19: #{travelgan_forward.1} parent=11 // pred_region
        _
      $region20: #{travelgan_forward.1} parent=11 // pred_fallthru
        _
      // Predicated region
      $region21: #{travelgan_forward.1} parent=11 // pred_check
        %p552 = pneg %p128
      $region22: #{travelgan_forward.1} parent=11 // pred_check_branch
        %554 = sbr.rel (%p552) target = $region24
      $region23: #{travelgan_forward.1} parent=11 // pred_region
        _
      $region24: #{travelgan_forward.1} parent=11 // pred_fallthru
        _
      // Predicated region
      $region25: #{travelgan_forward.1} parent=11 // pred_check
        %p555 = pneg %p149
      $region26: #{travelgan_forward.1} parent=11 // pred_check_branch
        %557 = sbr.rel (%p555) target = $region28
      $region27: #{travelgan_forward.1} parent=11 // pred_region
        _
      $region28: #{travelgan_forward.1} parent=11 // pred_fallthru
        _
      // Predicated region
      $region29: #{travelgan_forward.1} parent=11 // pred_check
        %p558 = pneg %p170
      $region30: #{travelgan_forward.1} parent=11 // pred_check_branch
        %560 = sbr.rel (%p558) target = $region32
      $region31: #{travelgan_forward.1} parent=11 // pred_region
        _
      $region32: #{travelgan_forward.1} parent=11 // pred_fallthru
        _
      // Predicated region
      $region33: #{travelgan_forward.1} parent=11 // pred_check
        %p561 = pneg %p191
      $region34: #{travelgan_forward.1} parent=11 // pred_check_branch
        %563 = sbr.rel (%p561) target = $region36
      $region35: #{travelgan_forward.1} parent=11 // pred_region
        _
      $region36: #{travelgan_forward.1} parent=11 // pred_fallthru
        _
    $region12: #{travelgan_forward.1} parent=5 // pred_fallthru
      _
    %p564 = scmp.lt.s32.totalorder %s25, 4
    // Predicated region
    $region37: #{travelgan_forward.1} parent=5 // pred_check
      %p565 = pneg %p564
    $region38: #{travelgan_forward.1} parent=5 // pred_check_branch
      %567 = sbr.rel (%p565) target = $region40
    $region39: #{travelgan_forward.1} parent=5 // pred_region
      // Predicated region
      $region41: #{travelgan_forward.1} parent=39 // pred_check
        %p568 = pneg %p59
      $region42: #{travelgan_forward.1} parent=39 // pred_check_branch
        %570 = sbr.rel (%p568) target = $region44
      $region43: #{travelgan_forward.1} parent=39 // pred_region
        %p571 = scmp.lt.s32.totalorder %s32, 1
        %s572 = scalar_select %p571, %s32, 1
        %p573 = scmp.lt.s32.totalorder %s33, 1
        %s574 = scalar_select %p573, %s33, 1
        %s575 = smul.addr %s574, 6
        %s576 = smul.addr %s572, 12
        %s577 = sadd.s32 %s575, %s576
        %s578 = smul.addr %s577, 8
        %s579 = scalar_lea.vmem %s0, %s578
      $region44: #{travelgan_forward.1} parent=39 // pred_fallthru
        _
      // Predicated region
      $region45: #{travelgan_forward.1} parent=39 // pred_check
        %p580 = pneg %p211
      $region46: #{travelgan_forward.1} parent=39 // pred_check_branch
        %582 = sbr.rel (%p580) target = $region48
      $region47: #{travelgan_forward.1} parent=39 // pred_region
        %p583 = scmp.lt.s32.totalorder %s32, 1
        %s584 = scalar_select %p583, %s32, 1
        %s585 = smul.addr %s584, 6
        %s586 = smul.addr %s585, 4
        %s587 = scalar_lea.vmem %s7, %s586
      $region48: #{travelgan_forward.1} parent=39 // pred_fallthru
        _
      // Predicated region
      $region49: #{travelgan_forward.1} parent=39 // pred_check
        %p588 = pneg %p237
      $region50: #{travelgan_forward.1} parent=39 // pred_check_branch
        %590 = sbr.rel (%p588) target = $region52
      $region51: #{travelgan_forward.1} parent=39 // pred_region
        %p591 = scmp.lt.s32.totalorder %s32, 1
        %s592 = scalar_select %p591, %s32, 1
        %s593 = smul.addr %s592, 2
        %s594 = smul.addr %s593, 8
        %s595 = scalar_lea.vmem %s8, %s594
      $region52: #{travelgan_forward.1} parent=39 // pred_fallthru
        _
      // Predicated region
      $region53: #{travelgan_forward.1} parent=39 // pred_check
        %p596 = pneg %p263
      $region54: #{travelgan_forward.1} parent=39 // pred_check_branch
        %598 = sbr.rel (%p596) target = $region56
      $region55: #{travelgan_forward.1} parent=39 // pred_region
        %p599 = scmp.lt.s32.totalorder %s32, 1
        %s600 = scalar_select %p599, %s32, 1
        %s601 = smul.addr %s600, 6
        %s602 = smul.addr %s601, 4
        %s603 = scalar_lea.vmem %s9, %s602
      $region56: #{travelgan_forward.1} parent=39 // pred_fallthru
        _
      // Predicated region
      $region57: #{travelgan_forward.1} parent=39 // pred_check
        %p604 = pneg %p289
      $region58: #{travelgan_forward.1} parent=39 // pred_check_branch
        %606 = sbr.rel (%p604) target = $region60
      $region59: #{travelgan_forward.1} parent=39 // pred_region
        %p607 = scmp.lt.s32.totalorder %s32, 1
        %s608 = scalar_select %p607, %s32, 1
        %s609 = smul.addr %s608, 2
        %s610 = smul.addr %s609, 8
        %s611 = scalar_lea.vmem %s10, %s610
      $region60: #{travelgan_forward.1} parent=39 // pred_fallthru
        _
      // Predicated region
      $region61: #{travelgan_forward.1} parent=39 // pred_check
        %p612 = pneg %p315
      $region62: #{travelgan_forward.1} parent=39 // pred_check_branch
        %614 = sbr.rel (%p612) target = $region64
      $region63: #{travelgan_forward.1} parent=39 // pred_region
        %p615 = scmp.lt.s32.totalorder %s32, 1
        %s616 = scalar_select %p615, %s32, 1
        %s617 = smul.addr %s616, 12
        %s618 = smul.addr %s617, 4
        %s619 = scalar_lea.vmem %s11, %s618
      $region64: #{travelgan_forward.1} parent=39 // pred_fallthru
        _
      // Predicated region
      $region65: #{travelgan_forward.1} parent=39 // pred_check
        %p620 = pneg %p341
      $region66: #{travelgan_forward.1} parent=39 // pred_check_branch
        %622 = sbr.rel (%p620) target = $region68
      $region67: #{travelgan_forward.1} parent=39 // pred_region
        %p623 = scmp.lt.s32.totalorder %s32, 1
        %s624 = scalar_select %p623, %s32, 1
        %s625 = smul.addr %s624, 4
        %s626 = smul.addr %s625, 8
        %s627 = scalar_lea.vmem %s12, %s626
      $region68: #{travelgan_forward.1} parent=39 // pred_fallthru
        _
      // Predicated region
      $region69: #{travelgan_forward.1} parent=39 // pred_check
        %p628 = pneg %p367
      $region70: #{travelgan_forward.1} parent=39 // pred_check_branch
        %630 = sbr.rel (%p628) target = $region72
      $region71: #{travelgan_forward.1} parent=39 // pred_region
        %p631 = scmp.lt.s32.totalorder %s32, 1
        %s632 = scalar_select %p631, %s32, 1
        %s633 = smul.addr %s632, 6
        %s634 = smul.addr %s633, 4
        %s635 = scalar_lea.vmem %s13, %s634
      $region72: #{travelgan_forward.1} parent=39 // pred_fallthru
        _
      // Predicated region
      $region73: #{travelgan_forward.1} parent=39 // pred_check
        %p636 = pneg %p393
      $region74: #{travelgan_forward.1} parent=39 // pred_check_branch
        %638 = sbr.rel (%p636) target = $region76
      $region75: #{travelgan_forward.1} parent=39 // pred_region
        %p639 = scmp.lt.s32.totalorder %s32, 1
        %s640 = scalar_select %p639, %s32, 1
        %s641 = smul.addr %s640, 2
        %s642 = smul.addr %s641, 8
        %s643 = scalar_lea.vmem %s14, %s642
      $region76: #{travelgan_forward.1} parent=39 // pred_fallthru
        _
      // Predicated region
      $region77: #{travelgan_forward.1} parent=39 // pred_check
        %p644 = pneg %p419
      $region78: #{travelgan_forward.1} parent=39 // pred_check_branch
        %646 = sbr.rel (%p644) target = $region80
      $region79: #{travelgan_forward.1} parent=39 // pred_region
        %p647 = scmp.lt.s32.totalorder %s32, 1
        %s648 = scalar_select %p647, %s32, 1
        %s649 = smul.addr %s648, 6
        %s650 = smul.addr %s649, 4
        %s651 = scalar_lea.vmem %s15, %s650
      $region80: #{travelgan_forward.1} parent=39 // pred_fallthru
        _
      // Predicated region
      $region81: #{travelgan_forward.1} parent=39 // pred_check
        %p652 = pneg %p445
      $region82: #{travelgan_forward.1} parent=39 // pred_check_branch
        %654 = sbr.rel (%p652) target = $region84
      $region83: #{travelgan_forward.1} parent=39 // pred_region
        %p655 = scmp.lt.s32.totalorder %s32, 1
        %s656 = scalar_select %p655, %s32, 1
        %s657 = smul.addr %s656, 2
        %s658 = smul.addr %s657, 8
        %s659 = scalar_lea.vmem %s16, %s658
      $region84: #{travelgan_forward.1} parent=39 // pred_fallthru
        _
      // Predicated region
      $region85: #{travelgan_forward.1} parent=39 // pred_check
        %p660 = pneg %p471
      $region86: #{travelgan_forward.1} parent=39 // pred_check_branch
        %662 = sbr.rel (%p660) target = $region88
      $region87: #{travelgan_forward.1} parent=39 // pred_region
        %p663 = scmp.lt.s32.totalorder %s32, 1
        %s664 = scalar_select %p663, %s32, 1
        %s665 = smul.addr %s664, 3
        %s666 = smul.addr %s665, 2
        %s667 = scalar_lea.vmem %s17, %s666
      $region88: #{travelgan_forward.1} parent=39 // pred_fallthru
        _
      // Predicated region
      $region89: #{travelgan_forward.1} parent=39 // pred_check
        %p668 = pneg %p497
      $region90: #{travelgan_forward.1} parent=39 // pred_check_branch
        %670 = sbr.rel (%p668) target = $region92
      $region91: #{travelgan_forward.1} parent=39 // pred_region
        %p671 = scmp.lt.s32.totalorder %s32, 1
        %s672 = scalar_select %p671, %s32, 1
        %s673 = smul.addr %s672, 4
        %s674 = scalar_lea.vmem %s18, %s673
      $region92: #{travelgan_forward.1} parent=39 // pred_fallthru
        _
    $region40: #{travelgan_forward.1} parent=5 // pred_fallthru
      _
    %p675 = scmp.le.s32.totalorder 1, %s25
    %p676 = scmp.lt.s32.totalorder %s25, 5
    %p677 = pnand %p675, %p676
    %p678 = pneg %p677
    // Predicated region
    $region93: #{travelgan_forward.1} parent=5 // pred_check
      _
    $region94: #{travelgan_forward.1} parent=5 // pred_check_branch
      %680 = sbr.rel (%p677) target = $region96
    $region95: #{travelgan_forward.1} parent=5 // pred_region
      %s681 = ssub.s32 %s25, 1
      %p682 = scmp.lt.s32.totalorder %s34, 1
      %s683 = scalar_select %p682, %s34, 1
      %p684 = scmp.lt.s32.totalorder %s35, 1
      %s685 = scalar_select %p684, %s35, 1
      %s686 = smul.addr %s685, 6
      %s687 = smul.addr %s683, 12
      %s688 = sadd.s32 %s686, %s687
      %s689 = smul.addr %s688, 8
      %s690 = scalar_lea.vmem %s0, %s689
      %p691 = pneg %p65
      %p692 = pneg %p62
      %p693 = pneg %p86
      %p694 = pneg %p83
      %p695 = pneg %p107
      %p696 = pneg %p104
      %p697 = pneg %p128
      %p698 = pneg %p125
      %p699 = pneg %p149
      %p700 = pneg %p146
      %p701 = pneg %p170
      %p702 = pneg %p167
      %p703 = pneg %p191
      %p704 = pneg %p188
      %p705 = scmp.lt.s32.totalorder %s34, 1
      %s706 = scalar_select %p705, %s34, 1
      %s707 = smul.addr %s706, 6
      %s708 = smul.addr %s707, 4
      %s709 = scalar_lea.vmem %s7, %s708
      %p710 = pneg %p217
      %p711 = pneg %p214
      %p712 = scmp.lt.s32.totalorder %s34, 1
      %s713 = scalar_select %p712, %s34, 1
      %s714 = smul.addr %s713, 2
      %s715 = smul.addr %s714, 8
      %s716 = scalar_lea.vmem %s8, %s715
      %p717 = pneg %p243
      %p718 = pneg %p240
      %p719 = scmp.lt.s32.totalorder %s34, 1
      %s720 = scalar_select %p719, %s34, 1
      %s721 = smul.addr %s720, 6
      %s722 = smul.addr %s721, 4
      %s723 = scalar_lea.vmem %s9, %s722
      %p724 = pneg %p269
      %p725 = pneg %p266
      %p726 = scmp.lt.s32.totalorder %s34, 1
      %s727 = scalar_select %p726, %s34, 1
      %s728 = smul.addr %s727, 2
      %s729 = smul.addr %s728, 8
      %s730 = scalar_lea.vmem %s10, %s729
      %p731 = pneg %p295
      %p732 = pneg %p292
      %p733 = scmp.lt.s32.totalorder %s34, 1
      %s734 = scalar_select %p733, %s34, 1
      %s735 = smul.addr %s734, 12
      %s736 = smul.addr %s735, 4
      %s737 = scalar_lea.vmem %s11, %s736
      %p738 = pneg %p321
      %p739 = pneg %p318
      %p740 = scmp.lt.s32.totalorder %s34, 1
      %s741 = scalar_select %p740, %s34, 1
      %s742 = smul.addr %s741, 4
      %s743 = smul.addr %s742, 8
      %s744 = scalar_lea.vmem %s12, %s743
      %p745 = pneg %p347
      %p746 = pneg %p344
      %p747 = scmp.lt.s32.totalorder %s34, 1
      %s748 = scalar_select %p747, %s34, 1
      %s749 = smul.addr %s748, 6
      %s750 = smul.addr %s749, 4
      %s751 = scalar_lea.vmem %s13, %s750
      %p752 = pneg %p373
      %p753 = pneg %p370
      %p754 = scmp.lt.s32.totalorder %s34, 1
      %s755 = scalar_select %p754, %s34, 1
      %s756 = smul.addr %s755, 2
      %s757 = smul.addr %s756, 8
      %s758 = scalar_lea.vmem %s14, %s757
      %p759 = pneg %p399
      %p760 = pneg %p396
      %p761 = scmp.lt.s32.totalorder %s34, 1
      %s762 = scalar_select %p761, %s34, 1
      %s763 = smul.addr %s762, 6
      %s764 = smul.addr %s763, 4
      %s765 = scalar_lea.vmem %s15, %s764
      %p766 = pneg %p425
      %p767 = pneg %p422
      %p768 = scmp.lt.s32.totalorder %s34, 1
      %s769 = scalar_select %p768, %s34, 1
      %s770 = smul.addr %s769, 2
      %s771 = smul.addr %s770, 8
      %s772 = scalar_lea.vmem %s16, %s771
      %p773 = pneg %p451
      %p774 = pneg %p448
      %p775 = scmp.lt.s32.totalorder %s34, 1
      %s776 = scalar_select %p775, %s34, 1
      %s777 = smul.addr %s776, 3
      %s778 = smul.addr %s777, 2
      %s779 = scalar_lea.vmem %s17, %s778
      %p780 = pneg %p477
      %p781 = pneg %p474
      %p782 = scmp.lt.s32.totalorder %s34, 1
      %s783 = scalar_select %p782, %s34, 1
      %s784 = smul.addr %s783, 4
      %s785 = scalar_lea.vmem %s18, %s784
      %p786 = pneg %p503
      %p787 = pneg %p500
      %p788 = pneg %p531
      %p789 = pneg %p528
      %p790 = scmp.lt.s32.totalorder %s34, 1
      %s791 = scalar_select %p790, %s34, 1
      %p792 = scmp.lt.s32.totalorder %s35, 1
      %s793 = scalar_select %p792, %s35, 1
      %s794 = smul.addr %s793, 2
      %s795 = smul.addr %s791, 4
      %s796 = sadd.s32 %s794, %s795
      %s797 = smul.addr %s796, 4
      %s798 = scalar_lea.vmem %s19, %s797
      %p799 = scmp.lt.s32.totalorder %s34, 1
      %s800 = scalar_select %p799, %s34, 1
      %p801 = scmp.lt.s32.totalorder %s35, 1
      %s802 = scalar_select %p801, %s35, 1
      %s803 = smul.addr %s802, 6
      %s804 = smul.addr %s800, 12
      %s805 = sadd.s32 %s803, %s804
      %s806 = smul.addr %s805, 8
      %s807 = scalar_lea.vmem %s0, %s806
      %p808 = scmp.lt.s32.totalorder %s34, 1
      %s809 = scalar_select %p808, %s34, 1
      %s810 = smul.addr %s809, 6
      %s811 = smul.addr %s810, 4
      %s812 = scalar_lea.vmem %s7, %s811
      %p813 = scmp.lt.s32.totalorder %s34, 1
      %s814 = scalar_select %p813, %s34, 1
      %s815 = smul.addr %s814, 2
      %s816 = smul.addr %s815, 8
      %s817 = scalar_lea.vmem %s8, %s816
      %p818 = scmp.lt.s32.totalorder %s34, 1
      %s819 = scalar_select %p818, %s34, 1
      %s820 = smul.addr %s819, 6
      %s821 = smul.addr %s820, 4
      %s822 = scalar_lea.vmem %s9, %s821
      %p823 = scmp.lt.s32.totalorder %s34, 1
      %s824 = scalar_select %p823, %s34, 1
      %s825 = smul.addr %s824, 2
      %s826 = smul.addr %s825, 8
      %s827 = scalar_lea.vmem %s10, %s826
      %p828 = scmp.lt.s32.totalorder %s34, 1
      %s829 = scalar_select %p828, %s34, 1
      %s830 = smul.addr %s829, 12
      %s831 = smul.addr %s830, 4
      %s832 = scalar_lea.vmem %s11, %s831
      %p833 = scmp.lt.s32.totalorder %s34, 1
      %s834 = scalar_select %p833, %s34, 1
      %s835 = smul.addr %s834, 4
      %s836 = smul.addr %s835, 8
      %s837 = scalar_lea.vmem %s12, %s836
      %p838 = scmp.lt.s32.totalorder %s34, 1
      %s839 = scalar_select %p838, %s34, 1
      %s840 = smul.addr %s839, 6
      %s841 = smul.addr %s840, 4
      %s842 = scalar_lea.vmem %s13, %s841
      %p843 = scmp.lt.s32.totalorder %s34, 1
      %s844 = scalar_select %p843, %s34, 1
      %s845 = smul.addr %s844, 2
      %s846 = smul.addr %s845, 8
      %s847 = scalar_lea.vmem %s14, %s846
      %p848 = scmp.lt.s32.totalorder %s34, 1
      %s849 = scalar_select %p848, %s34, 1
      %s850 = smul.addr %s849, 6
      %s851 = smul.addr %s850, 4
      %s852 = scalar_lea.vmem %s15, %s851
      %p853 = scmp.lt.s32.totalorder %s34, 1
      %s854 = scalar_select %p853, %s34, 1
      %s855 = smul.addr %s854, 2
      %s856 = smul.addr %s855, 8
      %s857 = scalar_lea.vmem %s16, %s856
      %p858 = scmp.lt.s32.totalorder %s34, 1
      %s859 = scalar_select %p858, %s34, 1
      %s860 = smul.addr %s859, 3
      %s861 = smul.addr %s860, 2
      %s862 = scalar_lea.vmem %s17, %s861
      %p863 = scmp.lt.s32.totalorder %s34, 1
      %s864 = scalar_select %p863, %s34, 1
      %s865 = smul.addr %s864, 4
      %s866 = scalar_lea.vmem %s18, %s865
      %p867 = scmp.lt.s32.totalorder %s34, 1
      %s868 = scalar_select %p867, %s34, 1
      %p869 = scmp.lt.s32.totalorder %s35, 1
      %s870 = scalar_select %p869, %s35, 1
      %s871 = smul.addr %s870, 2
      %s872 = smul.addr %s868, 4
      %s873 = sadd.s32 %s871, %s872
      %s874 = smul.addr %s873, 4
      %s875 = scalar_lea.vmem %s19, %s874
      %877 = vst [vmem:[#allocation2] sm:$0xff] 0
      %878 = vst [vmem:[#allocation2 + $0x8] sm:$0xff] 0
      %879 = vst [vmem:[#allocation2 + $0x10] sm:$0xff] 0
      %vm880 = vcmask 719872
      %881 = vst.msk [vmem:[#allocation2 + $0x18] sm:$0xff] %vm880, 0
      %882 = vst [vmem:[#allocation2 + $0x20] sm:$0xff] 0
      %883 = vst [vmem:[#allocation2 + $0x28] sm:$0xff] 0
      %884 = vst [vmem:[#allocation2 + $0x30] sm:$0xff] 0
      %885 = vst.msk [vmem:[#allocation2 + $0x38] sm:$0xff] %vm880, 0
      %886 = vst [vmem:[#allocation3] sm:$0xff] 0
      %887 = vst [vmem:[#allocation3 + $0x8] sm:$0xff] 0
      %vm888 = vcmask 556032
      %889 = vst.msk [vmem:[#allocation3 + $0x10] sm:$0xff] %vm888, 0
      %890 = vst [vmem:[#allocation3 + $0x18] sm:$0xff] 0
      %891 = vst [vmem:[#allocation3 + $0x20] sm:$0xff] 0
      %892 = vst.msk [vmem:[#allocation3 + $0x28] sm:$0xff] %vm888, 0
      %893 = vst [vmem:[#allocation3 + $0x30] sm:$0xff] 0
      %894 = vst [vmem:[#allocation3 + $0x38] sm:$0xff] 0
      %895 = vst.msk [vmem:[#allocation3 + $0x40] sm:$0xff] %vm888, 0
      %896 = vst [vmem:[#allocation3 + $0x48] sm:$0xff] 0
      %897 = vst [vmem:[#allocation3 + $0x50] sm:$0xff] 0
      %898 = vst.msk [vmem:[#allocation3 + $0x58] sm:$0xff] %vm888, 0
      %899 = vst [vmem:[#allocation3 + $0x60] sm:$0xff] 0
      %900 = vst [vmem:[#allocation3 + $0x68] sm:$0xff] 0
      %901 = vst.msk [vmem:[#allocation3 + $0x70] sm:$0xff] %vm888, 0
      %902 = vst [vmem:[#allocation3 + $0x78] sm:$0xff] 0
      %903 = vst [vmem:[#allocation3 + $0x80] sm:$0xff] 0
      %904 = vst.msk [vmem:[#allocation3 + $0x88] sm:$0xff] %vm888, 0
      %905 = vst [vmem:[#allocation3 + $0x90] sm:$0xff] 0
      %906 = vst [vmem:[#allocation3 + $0x98] sm:$0xff] 0
      %907 = vst.msk [vmem:[#allocation3 + $0xa0] sm:$0xff] %vm888, 0
      %908 = vst [vmem:[#allocation3 + $0xa8] sm:$0xff] 0
      %909 = vst [vmem:[#allocation3 + $0xb0] sm:$0xff] 0
      %910 = vst.msk [vmem:[#allocation3 + $0xb8] sm:$0xff] %vm888, 0
      %911 = vst [vmem:[#allocation3 + $0xc0] sm:$0xff] 0
      %912 = vst [vmem:[#allocation3 + $0xc8] sm:$0xff] 0
      %913 = vst.msk [vmem:[#allocation3 + $0xd0] sm:$0xff] %vm888, 0
      %914 = vst [vmem:[#allocation3 + $0xd8] sm:$0xff] 0
      %915 = vst [vmem:[#allocation3 + $0xe0] sm:$0xff] 0
      %916 = vst.msk [vmem:[#allocation3 + $0xe8] sm:$0xff] %vm888, 0
      %917 = vst [vmem:[#allocation3 + $0xf0] sm:$0xff] 0
      %918 = vst [vmem:[#allocation3 + $0xf8] sm:$0xff] 0
      %919 = vst.msk [vmem:[#allocation3 + $0x100] sm:$0xff] %vm888, 0
      %920 = vst [vmem:[#allocation3 + $0x108] sm:$0xff] 0
      %921 = vst [vmem:[#allocation3 + $0x110] sm:$0xff] 0
      %922 = vst.msk [vmem:[#allocation3 + $0x118] sm:$0xff] %vm888, 0
      %923 = vst [vmem:[#allocation3 + $0x120] sm:$0xff] 0
      %924 = vst [vmem:[#allocation3 + $0x128] sm:$0xff] 0
      %925 = vst.msk [vmem:[#allocation3 + $0x130] sm:$0xff] %vm888, 0
      %926 = vst [vmem:[#allocation3 + $0x138] sm:$0xff] 0
      %927 = vst [vmem:[#allocation3 + $0x140] sm:$0xff] 0
      %928 = vst.msk [vmem:[#allocation3 + $0x148] sm:$0xff] %vm888, 0
      %929 = vst [vmem:[#allocation3 + $0x150] sm:$0xff] 0
      %930 = vst [vmem:[#allocation3 + $0x158] sm:$0xff] 0
      %931 = vst.msk [vmem:[#allocation3 + $0x160] sm:$0xff] %vm888, 0
      %932 = vst [vmem:[#allocation3 + $0x168] sm:$0xff] 0
      %933 = vst [vmem:[#allocation3 + $0x170] sm:$0xff] 0
      %934 = vst.msk [vmem:[#allocation3 + $0x178] sm:$0xff] %vm888, 0
      %935 = vst [vmem:[#allocation3 + $0x180] sm:$0xff] 0
      %936 = vst [vmem:[#allocation3 + $0x188] sm:$0xff] 0
      %937 = vst.msk [vmem:[#allocation3 + $0x190] sm:$0xff] %vm888, 0
      %938 = vst [vmem:[#allocation3 + $0x198] sm:$0xff] 0
      %939 = vst [vmem:[#allocation3 + $0x1a0] sm:$0xff] 0
      %940 = vst.msk [vmem:[#allocation3 + $0x1a8] sm:$0xff] %vm888, 0
      %v941 = vld [vmem:[%s1] sm:$0xff]
      %v942 = vld [vmem:[%s1 + $0x8] sm:$0xf]
      %v943 = vld [vmem:[%s807] sm:$0xff]
      %v944 = vld [vmem:[%s807 + $0x8] sm:$0xff]
      %v945 = vld [vmem:[%s807 + $0x10] sm:$0xff]
      %v946 = vld [vmem:[%s807 + $0x18] sm:$0xff]
      %v947 = vld [vmem:[%s807 + $0x20] sm:$0xff]
      %v948 = vld [vmem:[%s807 + $0x28] sm:$0xff]
      %v949 = vpack.c.bf16 %v946, %v943
      %v950 = vpack.c.bf16 %v947, %v944
      %v951 = vpack.c.bf16 %v948, %v945
      %952 = vst [vmem:[#allocation2 + $0x8] sm:$0xff] %v949
      %953 = vst [vmem:[#allocation2 + $0x10] sm:$0xff] %v950
      %954 = vst.msk [vmem:[#allocation2 + $0x18] sm:$0xff] %vm888, %v951
      %v955 = vld [vmem:[#allocation2] sm:$0xff]
      %v956 = vld [vmem:[#allocation2 + $0x8] sm:$0xff]
      %v957 = vld [vmem:[#allocation2 + $0x10] sm:$0xff]
      %v958 = vld [vmem:[#allocation2 + $0x18] sm:$0xff]
      %963 = vrot.lane.b32.xlu0 %v955, 19
      %v964 = vpop.permute.xlu0 %963
      %965 = vrot.lane.b32.xlu0 %v956, 19
      %v966 = vpop.permute.xlu0 %965
      %967 = vrot.lane.b32.xlu0 %v957, 19
      %v968 = vpop.permute.xlu0 %967
      %969 = vrot.lane.b32.xlu0 %v958, 19
      %v970 = vpop.permute.xlu0 %969
      %vm971 = vcmask 154624
      %v972 = vsel %vm971, %v964, %v966
      %v973 = vsel %vm971, %v966, %v968
      %v974 = vsel %vm971, %v968, %v970
      %978 = vst [vmem:[#allocation3] sm:$0xff] %v972
      %979 = vst [vmem:[#allocation3 + $0x8] sm:$0xff] %v973
      %980 = vst.msk [vmem:[#allocation3 + $0x10] sm:$0xff] %vm888, %v974
      %v981 = vld [vmem:[#allocation2] sm:$0xff]
      %v982 = vld [vmem:[#allocation2 + $0x8] sm:$0xff]
      %v983 = vld [vmem:[#allocation2 + $0x10] sm:$0xff]
      %v984 = vld [vmem:[#allocation2 + $0x18] sm:$0xff]
      %989 = vrot.lane.b32.xlu0 %v981, 18
      %v990 = vpop.permute.xlu0 %989
      %991 = vrot.lane.b32.xlu0 %v982, 18
      %v992 = vpop.permute.xlu0 %991
      %993 = vrot.lane.b32.xlu0 %v983, 18
      %v994 = vpop.permute.xlu0 %993
      %995 = vrot.lane.b32.xlu0 %v984, 18
      %v996 = vpop.permute.xlu0 %995
      %vm997 = vcmask 146432
      %v998 = vsel %vm997, %v990, %v992
      %v999 = vsel %vm997, %v992, %v994
      %v1000 = vsel %vm997, %v994, %v996
      %1004 = vst [vmem:[#allocation3 + $0x30] sm:$0xff] %v998
      %1005 = vst [vmem:[#allocation3 + $0x38] sm:$0xff] %v999
      %1006 = vst.msk [vmem:[#allocation3 + $0x40] sm:$0xff] %vm888, %v1000
      %v1007 = vld [vmem:[#allocation2] sm:$0xff]
      %v1008 = vld [vmem:[#allocation2 + $0x8] sm:$0xff]
      %v1009 = vld [vmem:[#allocation2 + $0x10] sm:$0xff]
      %v1010 = vld [vmem:[#allocation2 + $0x18] sm:$0xff]
      %1015 = vrot.lane.b32.xlu0 %v1007, 17
      %v1016 = vpop.permute.xlu0 %1015
      %1017 = vrot.lane.b32.xlu0 %v1008, 17
      %v1018 = vpop.permute.xlu0 %1017
      %1019 = vrot.lane.b32.xlu0 %v1009, 17
      %v1020 = vpop.permute.xlu0 %1019
      %1021 = vrot.lane.b32.xlu0 %v1010, 17
      %v1022 = vpop.permute.xlu0 %1021
      %vm1023 = vcmask 138240
      %v1024 = vsel %vm1023, %v1016, %v1018
      %v1025 = vsel %vm1023, %v1018, %v1020
      %v1026 = vsel %vm1023, %v1020, %v1022
      %1030 = vst [vmem:[#allocation3 + $0x60] sm:$0xff] %v1024
      %1031 = vst [vmem:[#allocation3 + $0x68] sm:$0xff] %v1025
      %1032 = vst.msk [vmem:[#allocation3 + $0x70] sm:$0xff] %vm888, %v1026
      %v1033 = vld [vmem:[#allocation2] sm:$0xff]
      %v1034 = vld [vmem:[#allocation2 + $0x8] sm:$0xff]
      %v1035 = vld [vmem:[#allocation2 + $0x10] sm:$0xff]
      %v1036 = vld [vmem:[#allocation2 + $0x18] sm:$0xff]
      %1041 = vrot.lane.b32.xlu0 %v1033, 1
      %v1042 = vpop.permute.xlu0 %1041
      %1043 = vrot.lane.b32.xlu0 %v1034, 1
      %v1044 = vpop.permute.xlu0 %1043
      %1045 = vrot.lane.b32.xlu0 %v1035, 1
      %v1046 = vpop.permute.xlu0 %1045
      %1047 = vrot.lane.b32.xlu0 %v1036, 1
      %v1048 = vpop.permute.xlu0 %1047
      %vm1049 = vcmask 7168
      %v1050 = vsel %vm1049, %v1042, %v1044
      %v1051 = vsel %vm1049, %v1044, %v1046
      %v1052 = vsel %vm1049, %v1046, %v1048
      %1056 = vst [vmem:[#allocation3 + $0x90] sm:$0xff] %v1050
      %1057 = vst [vmem:[#allocation3 + $0x98] sm:$0xff] %v1051
      %1058 = vst.msk [vmem:[#allocation3 + $0xa0] sm:$0xff] %vm888, %v1052
      %v1059 = vld [vmem:[#allocation2 + $0x8] sm:$0xff]
      %v1060 = vld [vmem:[#allocation2 + $0x10] sm:$0xff]
      %v1061 = vld [vmem:[#allocation2 + $0x18] sm:$0xff]
      %1062 = vst [vmem:[#allocation3 + $0xc0] sm:$0xff] %v1059
      %1063 = vst [vmem:[#allocation3 + $0xc8] sm:$0xff] %v1060
      %1064 = vst.msk [vmem:[#allocation3 + $0xd0] sm:$0xff] %vm888, %v1061
      %v1065 = vld [vmem:[#allocation2 + $0x8] sm:$0xff]
      %v1066 = vld [vmem:[#allocation2 + $0x10] sm:$0xff]
      %v1067 = vld [vmem:[#allocation2 + $0x18] sm:$0xff]
      %1071 = vrot.lane.b32.xlu0 %v1065, 127
      %v1072 = vpop.permute.xlu0 %1071
      %1073 = vrot.lane.b32.xlu0 %v1066, 127
      %v1074 = vpop.permute.xlu0 %1073
      %1075 = vrot.lane.b32.xlu0 %v1067, 127
      %v1076 = vpop.permute.xlu0 %1075
      %vm1077 = vcmask 1039360
      %v1078 = vsel %vm1077, %v1072, %v1074
      %v1079 = vsel %vm1077, %v1074, %v1076
      %1083 = vst [vmem:[#allocation3 + $0xf0] sm:$0xff] %v1078
      %1084 = vst [vmem:[#allocation3 + $0xf8] sm:$0xff] %v1079
      %1085 = vst.msk [vmem:[#allocation3 + $0x100] sm:$0xff] %vm888, %v1076
      %v1086 = vld [vmem:[#allocation2 + $0x8] sm:$0xff]
      %v1087 = vld [vmem:[#allocation2 + $0x10] sm:$0xff]
      %v1088 = vld [vmem:[#allocation2 + $0x18] sm:$0xff]
      %1092 = vrot.lane.b32.xlu0 %v1086, 111
      %v1093 = vpop.permute.xlu0 %1092
      %1094 = vrot.lane.b32.xlu0 %v1087, 111
      %v1095 = vpop.permute.xlu0 %1094
      %1096 = vrot.lane.b32.xlu0 %v1088, 111
      %v1097 = vpop.permute.xlu0 %1096
      %vm1098 = vcmask 908288
      %v1099 = vsel %vm1098, %v1093, %v1095
      %v1100 = vsel %vm1098, %v1095, %v1097
      %1104 = vst [vmem:[#allocation3 + $0x120] sm:$0xff] %v1099
      %1105 = vst [vmem:[#allocation3 + $0x128] sm:$0xff] %v1100
      %1106 = vst.msk [vmem:[#allocation3 + $0x130] sm:$0xff] %vm888, %v1097
      %v1107 = vld [vmem:[#allocation2 + $0x8] sm:$0xff]
      %v1108 = vld [vmem:[#allocation2 + $0x10] sm:$0xff]
      %v1109 = vld [vmem:[#allocation2 + $0x18] sm:$0xff]
      %1113 = vrot.lane.b32.xlu0 %v1107, 110
      %v1114 = vpop.permute.xlu0 %1113
      %1115 = vrot.lane.b32.xlu0 %v1108, 110
      %v1116 = vpop.permute.xlu0 %1115
      %1117 = vrot.lane.b32.xlu0 %v1109, 110
      %v1118 = vpop.permute.xlu0 %1117
      %vm1119 = vcmask 900096
      %v1120 = vsel %vm1119, %v1114, %v1116
      %v1121 = vsel %vm1119, %v1116, %v1118
      %1125 = vst [vmem:[#allocation3 + $0x150] sm:$0xff] %v1120
      %1126 = vst [vmem:[#allocation3 + $0x158] sm:$0xff] %v1121
      %1127 = vst.msk [vmem:[#allocation3 + $0x160] sm:$0xff] %vm888, %v1118
      %v1128 = vld [vmem:[#allocation2 + $0x8] sm:$0xff]
      %v1129 = vld [vmem:[#allocation2 + $0x10] sm:$0xff]
      %v1130 = vld [vmem:[#allocation2 + $0x18] sm:$0xff]
      %1134 = vrot.lane.b32.xlu0 %v1128, 109
      %v1135 = vpop.permute.xlu0 %1134
      %1136 = vrot.lane.b32.xlu0 %v1129, 109
      %v1137 = vpop.permute.xlu0 %1136
      %1138 = vrot.lane.b32.xlu0 %v1130, 109
      %v1139 = vpop.permute.xlu0 %1138
      %vm1140 = vcmask 891904
      %v1141 = vsel %vm1140, %v1135, %v1137
      %v1142 = vsel %vm1140, %v1137, %v1139
      %1146 = vst [vmem:[#allocation3 + $0x180] sm:$0xff] %v1141
      %1147 = vst [vmem:[#allocation3 + $0x188] sm:$0xff] %v1142
      %1148 = vst.msk [vmem:[#allocation3 + $0x190] sm:$0xff] %vm888, %v1139
      %v1149 = vld [vmem:[%s812] sm:$0xff]
      %v1150 = vld [vmem:[%s812 + $0x8] sm:$0xf]
      %v1151 = vld [vmem:[%s812 + $0xc] sm:$0xff]
      %v1152 = vld [vmem:[%s812 + $0x14] sm:$0xf]
      %v1153 = vld [vmem:[%s817] sm:$0xff]
      %v1154 = vld [vmem:[%s817 + $0x8] sm:$0xff]
      %v1155 = vld [vmem:[#allocation3] sm:$0xff]
      %v1156 = vld [vmem:[#allocation3 + $0x8] sm:$0xff]
      %v1157 = vld [vmem:[#allocation3 + $0x10] sm:$0xff]
      %v1158 = vld [vmem:[#allocation3 + $0x18] sm:$0xff]
      %v1159 = vld [vmem:[#allocation3 + $0x20] sm:$0xff]
      %v1160 = vld [vmem:[#allocation3 + $0x28] sm:$0xff]
      %v1161 = vld [vmem:[#allocation3 + $0x30] sm:$0xff]
      %v1162 = vld [vmem:[#allocation3 + $0x38] sm:$0xff]
      %v1163 = vld [vmem:[#allocation3 + $0x40] sm:$0xff]
      %v1164 = vld [vmem:[#allocation3 + $0x48] sm:$0xff]
      %v1165 = vld [vmem:[#allocation3 + $0x50] sm:$0xff]
      %v1166 = vld [vmem:[#allocation3 + $0x58] sm:$0xff]
      %v1167 = vld [vmem:[#allocation3 + $0x60] sm:$0xff]
      %v1168 = vld [vmem:[#allocation3 + $0x68] sm:$0xff]
      %v1169 = vld [vmem:[#allocation3 + $0x70] sm:$0xff]
      %v1170 = vld [vmem:[#allocation3 + $0x78] sm:$0xff]
      %v1171 = vld [vmem:[#allocation3 + $0x80] sm:$0xff]
      %v1172 = vld [vmem:[#allocation3 + $0x88] sm:$0xff]
      %v1173 = vld [vmem:[#allocation3 + $0x90] sm:$0xff]
      %v1174 = vld [vmem:[#allocation3 + $0x98] sm:$0xff]
      %v1175 = vld [vmem:[#allocation3 + $0xa0] sm:$0xff]
      %v1176 = vld [vmem:[#allocation3 + $0xa8] sm:$0xff]
      %v1177 = vld [vmem:[#allocation3 + $0xb0] sm:$0xff]
      %v1178 = vld [vmem:[#allocation3 + $0xb8] sm:$0xff]
      %v1179 = vld [vmem:[#allocation3 + $0xc0] sm:$0xff]
      %v1180 = vld [vmem:[#allocation3 + $0xc8] sm:$0xff]
      %v1181 = vld [vmem:[#allocation3 + $0xd0] sm:$0xff]
      %v1182 = vld [vmem:[#allocation3 + $0xd8] sm:$0xff]
      %v1183 = vld [vmem:[#allocation3 + $0xe0] sm:$0xff]
      %v1184 = vld [vmem:[#allocation3 + $0xe8] sm:$0xff]
      %v1185 = vld [vmem:[#allocation3 + $0xf0] sm:$0xff]
      %v1186 = vld [vmem:[#allocation3 + $0xf8] sm:$0xff]
      %v1187 = vld [vmem:[#allocation3 + $0x100] sm:$0xff]
      %v1188 = vld [vmem:[#allocation3 + $0x108] sm:$0xff]
      %v1189 = vld [vmem:[#allocation3 + $0x110] sm:$0xff]
      %v1190 = vld [vmem:[#allocation3 + $0x118] sm:$0xff]
      %v1191 = vld [vmem:[#allocation3 + $0x120] sm:$0xff]
      %v1192 = vld [vmem:[#allocation3 + $0x128] sm:$0xff]
      %v1193 = vld [vmem:[#allocation3 + $0x130] sm:$0xff]
      %v1194 = vld [vmem:[#allocation3 + $0x138] sm:$0xff]
      %v1195 = vld [vmem:[#allocation3 + $0x140] sm:$0xff]
      %v1196 = vld [vmem:[#allocation3 + $0x148] sm:$0xff]
      %v1197 = vld [vmem:[#allocation3 + $0x150] sm:$0xff]
      %v1198 = vld [vmem:[#allocation3 + $0x158] sm:$0xff]
      %v1199 = vld [vmem:[#allocation3 + $0x160] sm:$0xff]
      %v1200 = vld [vmem:[#allocation3 + $0x168] sm:$0xff]
      %v1201 = vld [vmem:[#allocation3 + $0x170] sm:$0xff]
      %v1202 = vld [vmem:[#allocation3 + $0x178] sm:$0xff]
      %v1203 = vld [vmem:[#allocation3 + $0x180] sm:$0xff]
      %v1204 = vld [vmem:[#allocation3 + $0x188] sm:$0xff]
      %v1205 = vld [vmem:[#allocation3 + $0x190] sm:$0xff]
      %v1206 = vld [vmem:[#allocation3 + $0x198] sm:$0xff]
      %v1207 = vld [vmem:[#allocation3 + $0x1a0] sm:$0xff]
      %v1208 = vld [vmem:[#allocation3 + $0x1a8] sm:$0xff]
      %1210 = vset.pattern.permute.xlu0 0
      %1211 = vperm.xlu0 %1210, %v1153
      %v1212 = vpop.permute.xlu0 %1211
      %1215 = vset.pattern.permute.xlu0 0
      %1216 = vperm.xlu0 %1215, %v1154
      %v1217 = vpop.permute.xlu0 %1216
      %v1223 = vunpack.c.l.b16 %v1149
      %v1224 = vunpack.c.h.b16 %v1149
      %v1225 = vunpack.c.l.b16 %v1150
      %v1226 = vunpack.c.l.b16 %v1151
      %v1227 = vunpack.c.h.b16 %v1151
      %v1228 = vunpack.c.l.b16 %v1152
      %v1229 = vpack.c.b16 %v1226, %v1223
      %v1230 = vpack.c.b16 %v1227, %v1224
      %v1231 = vpack.c.b16 %v1228, %v1225
      %vm1234 = vcmask 261120
      %v1236 = vsel %vm1234, %v1231, 0
      %1238 = vmatprep.subr.bf16.mxu0 %v1156
      %1239 = vmatpush1.bf16.msra.mxu0 %v1155
      %1240 = vmatprep.subr.bf16.mxu0 %v1159
      %1241 = vmatpush1.bf16.msra.mxu0 %v1158
      %1242 = vmatprep.subr.bf16.mxu0 %v1162
      %1243 = vmatpush1.bf16.msra.mxu0 %v1161
      %1244 = vmatprep.subr.bf16.mxu0 %v1165
      %1245 = vmatpush1.bf16.msra.mxu0 %v1164
      %1246 = vmatprep.subr.bf16.mxu0 %v1168
      %1247 = vmatpush1.bf16.msra.mxu0 %v1167
      %1248 = vmatprep.subr.bf16.mxu0 %v1171
      %1249 = vmatpush1.bf16.msra.mxu0 %v1170
      %1250 = vmatprep.subr.bf16.mxu0 %v1174
      %1251 = vmatpush1.bf16.msra.mxu0 %v1173
      %1252 = vmatprep.subr.bf16.mxu0 %v1177
      %1253 = vmatpush1.bf16.msra.mxu0 %v1176
      %1254 = vmatprep.subr.bf16.mxu0 %v1180
      %1255 = vmatpush1.bf16.msra.mxu0 %v1179
      %1256 = vmatprep.subr.bf16.mxu0 %v1183
      %1257 = vmatpush1.bf16.msra.mxu0 %v1182
      %1258 = vmatprep.subr.bf16.mxu0 %v1186
      %1259 = vmatpush1.bf16.msra.mxu0 %v1185
      %1260 = vmatprep.subr.bf16.mxu0 %v1189
      %1261 = vmatpush1.bf16.msra.mxu0 %v1188
      %1262 = vmatprep.subr.bf16.mxu0 %v1192
      %1263 = vmatpush1.bf16.msra.mxu0 %v1191
      %1264 = vmatprep.subr.bf16.mxu0 %v1195
      %1265 = vmatpush1.bf16.msra.mxu0 %v1194
      %1266 = vmatprep.subr.bf16.mxu0 %v1198
      %1267 = vmatpush1.bf16.msra.mxu0 %v1197
      %1268 = vmatprep.subr.bf16.mxu0 %v1201
      %1269 = vmatpush1.bf16.msra.mxu0 %v1200
      %1270 = vmatprep.mubr.bf16.mxu0 %v1230
      %1271 = vmatmul.mubr.bf16.gmra.mrb[0].mxu0 %v1229
      %v1272 = vpop.f32.mrb[0].mxu0
      %v1273 = vadd.f32 %v1212, %v1272
      %v1274 = vpop.f32.mrb[0].mxu0
      %v1275 = vadd.f32 %v1212, %v1274
      %v1276 = vpop.f32.mrb[0].mxu0
      %v1277 = vadd.f32 %v1217, %v1276
      %v1278 = vpop.f32.mrb[0].mxu0
      %v1279 = vadd.f32 %v1217, %v1278
      %1280 = vdwg.mxu0
      %1281 = vmatprep.subr.bf16.mxu0 %v1204
      %1282 = vmatpush1.bf16.msra.mxu0 %v1203
      %1283 = vmatprep.subr.bf16.mxu0 %v1207
      %1284 = vmatpush1.bf16.msra.mxu0 %v1206
      %1285 = vmatprep.subr.bf16.mxu0 0
      %1286 = vmatpush1.bf16.msra.mxu0 0
      %1287 = vmatprep.subr.bf16.mxu0 0
      %1288 = vmatpush1.bf16.msra.mxu0 0
      %1289 = vmatprep.subr.bf16.mxu0 0
      %1290 = vmatpush1.bf16.msra.mxu0 0
      %1291 = vmatprep.subr.bf16.mxu0 0
      %1292 = vmatpush1.bf16.msra.mxu0 0
      %1293 = vmatprep.subr.bf16.mxu0 0
      %1294 = vmatpush1.bf16.msra.mxu0 0
      %1295 = vmatprep.subr.bf16.mxu0 0
      %1296 = vmatpush1.bf16.msra.mxu0 0
      %1297 = vmatprep.subr.bf16.mxu0 0
      %1298 = vmatpush1.bf16.msra.mxu0 0
      %1299 = vmatprep.subr.bf16.mxu0 0
      %1300 = vmatpush1.bf16.msra.mxu0 0
      %1301 = vmatprep.subr.bf16.mxu0 0
      %1302 = vmatpush1.bf16.msra.mxu0 0
      %1303 = vmatprep.subr.bf16.mxu0 0
      %1304 = vmatpush1.bf16.msra.mxu0 0
      %1305 = vmatprep.subr.bf16.mxu0 0
      %1306 = vmatpush1.bf16.msra.mxu0 0
      %1307 = vmatprep.subr.bf16.mxu0 0
      %1308 = vmatpush1.bf16.msra.mxu0 0
      %1309 = vmatprep.subr.bf16.mxu0 0
      %1310 = vmatpush1.bf16.msra.mxu0 0
      %1311 = vmatprep.subr.bf16.mxu0 0
      %1312 = vmatpush1.bf16.msra.mxu0 0
      %1313 = vmatprep.mubr.bf16.mxu0 0
      %1314 = vmatmul.mubr.bf16.gmra.mrb[0].mxu0 %v1236
      %v1315 = vpop.f32.mrb[0].mxu0
      %v1316 = vadd.f32 %v1273, %v1315
      %v1317 = vpop.f32.mrb[0].mxu0
      %v1318 = vadd.f32 %v1275, %v1317
      %v1319 = vpop.f32.mrb[0].mxu0
      %v1320 = vadd.f32 %v1277, %v1319
      %v1321 = vpop.f32.mrb[0].mxu0
      %v1322 = vadd.f32 %v1279, %v1321
      %1323 = vdwg.mxu0
      %1324 = vmatprep.subr.bf16.mxu0 0
      %1325 = vmatpush1.bf16.msra.mxu0 %v1157
      %1326 = vmatprep.subr.bf16.mxu0 0
      %1327 = vmatpush1.bf16.msra.mxu0 %v1160
      %1328 = vmatprep.subr.bf16.mxu0 0
      %1329 = vmatpush1.bf16.msra.mxu0 %v1163
      %1330 = vmatprep.subr.bf16.mxu0 0
      %1331 = vmatpush1.bf16.msra.mxu0 %v1166
      %1332 = vmatprep.subr.bf16.mxu0 0
      %1333 = vmatpush1.bf16.msra.mxu0 %v1169
      %1334 = vmatprep.subr.bf16.mxu0 0
      %1335 = vmatpush1.bf16.msra.mxu0 %v1172
      %1336 = vmatprep.subr.bf16.mxu0 0
      %1337 = vmatpush1.bf16.msra.mxu0 %v1175
      %1338 = vmatprep.subr.bf16.mxu0 0
      %1339 = vmatpush1.bf16.msra.mxu0 %v1178
      %1340 = vmatprep.subr.bf16.mxu0 0
      %1341 = vmatpush1.bf16.msra.mxu0 %v1181
      %1342 = vmatprep.subr.bf16.mxu0 0
      %1343 = vmatpush1.bf16.msra.mxu0 %v1184
      %1344 = vmatprep.subr.bf16.mxu0 0
      %1345 = vmatpush1.bf16.msra.mxu0 %v1187
      %1346 = vmatprep.subr.bf16.mxu0 0
      %1347 = vmatpush1.bf16.msra.mxu0 %v1190
      %1348 = vmatprep.subr.bf16.mxu0 0
      %1349 = vmatpush1.bf16.msra.mxu0 %v1193
      %1350 = vmatprep.subr.bf16.mxu0 0
      %1351 = vmatpush1.bf16.msra.mxu0 %v1196
      %1352 = vmatprep.subr.bf16.mxu0 0
      %1353 = vmatpush1.bf16.msra.mxu0 %v1199
      %1354 = vmatprep.subr.bf16.mxu0 0
      %1355 = vmatpush1.bf16.msra.mxu0 %v1202
      %1356 = vmatprep.mubr.bf16.mxu0 %v1230
      %1357 = vmatmul.mubr.bf16.gmra.mrb[0].mxu0 %v1229
      %v1358 = vpop.f32.mrb[0].mxu0
      %v1359 = vadd.f32 %v1212, %v1358
      %v1360 = vpop.f32.mrb[0].mxu0
      %v1361 = vpop.f32.mrb[0].mxu0
      %v1362 = vadd.f32 %v1217, %v1361
      %v1363 = vpop.f32.mrb[0].mxu0
      %1364 = vdwg.mxu0
      %1365 = vmatprep.subr.bf16.mxu0 0
      %1366 = vmatpush1.bf16.msra.mxu0 %v1205
      %1367 = vmatprep.subr.bf16.mxu0 0
      %1368 = vmatpush1.bf16.msra.mxu0 %v1208
      %1369 = vmatprep.subr.bf16.mxu0 0
      %1370 = vmatpush1.bf16.msra.mxu0 0
      %1371 = vmatprep.subr.bf16.mxu0 0
      %1372 = vmatpush1.bf16.msra.mxu0 0
      %1373 = vmatprep.subr.bf16.mxu0 0
      %1374 = vmatpush1.bf16.msra.mxu0 0
      %1375 = vmatprep.subr.bf16.mxu0 0
      %1376 = vmatpush1.bf16.msra.mxu0 0
      %1377 = vmatprep.subr.bf16.mxu0 0
      %1378 = vmatpush1.bf16.msra.mxu0 0
      %1379 = vmatprep.subr.bf16.mxu0 0
      %1380 = vmatpush1.bf16.msra.mxu0 0
      %1381 = vmatprep.subr.bf16.mxu0 0
      %1382 = vmatpush1.bf16.msra.mxu0 0
      %1383 = vmatprep.subr.bf16.mxu0 0
      %1384 = vmatpush1.bf16.msra.mxu0 0
      %1385 = vmatprep.subr.bf16.mxu0 0
      %1386 = vmatpush1.bf16.msra.mxu0 0
      %1387 = vmatprep.subr.bf16.mxu0 0
      %1388 = vmatpush1.bf16.msra.mxu0 0
      %1389 = vmatprep.subr.bf16.mxu0 0
      %1390 = vmatpush1.bf16.msra.mxu0 0
      %1391 = vmatprep.subr.bf16.mxu0 0
      %1392 = vmatpush1.bf16.msra.mxu0 0
      %1393 = vmatprep.subr.bf16.mxu0 0
      %1394 = vmatpush1.bf16.msra.mxu0 0
      %1395 = vmatprep.subr.bf16.mxu0 0
      %1396 = vmatpush1.bf16.msra.mxu0 0
      %1397 = vmatprep.mubr.bf16.mxu0 0
      %1398 = vmatmul.mubr.bf16.gmra.mrb[0].mxu0 %v1236
      %v1399 = vpop.f32.mrb[0].mxu0
      %v1400 = vadd.f32 %v1359, %v1399
      %v1401 = vpop.f32.mrb[0].mxu0
      %v1402 = vpop.f32.mrb[0].mxu0
      %v1403 = vadd.f32 %v1362, %v1402
      %v1404 = vpop.f32.mrb[0].mxu0
      %1405 = vdwg.mxu0
      %v1408 = vlaneseq
      %v1409 = vshrl.u32 %v1408, 7
      %v1410 = vsub.s32 0, %v1409
      %v1411 = vrot.slane %v941, %v1410
      %v1412 = vlaneseq
      %v1413 = vshrl.u32 %v1412, 7
      %v1414 = vsub.s32 4, %v1413
      %v1415 = vrot.slane %v941, %v1414
      %v1416 = vlaneseq
      %v1417 = vshrl.u32 %v1416, 7
      %v1418 = vsub.s32 0, %v1417
      %v1419 = vrot.slane %v942, %v1418
      %v1423 = vlaneseq
      %v1424 = vshrl.u32 %v1423, 7
      %v1425 = vsub.s32 0, %v1424
      %v1426 = vrot.slane %v1411, %v1425
      %v1427 = vlaneseq
      %v1428 = vshrl.u32 %v1427, 7
      %v1429 = vsub.s32 0, %v1428
      %v1430 = vrot.slane %v1415, %v1429
      %v1431 = vlaneseq
      %v1432 = vshrl.u32 %v1431, 7
      %v1433 = vsub.s32 0, %v1432
      %v1434 = vrot.slane %v1419, %v1433
      %v1435 = vmul.f32 %v1316, %v1426
      %v1436 = vmul.f32 %v1318, %v1430
      %v1437 = vmul.f32 %v1400, %v1434
      %v1438 = vmul.f32 %v1320, %v1426
      %v1439 = vmul.f32 %v1322, %v1430
      %v1440 = vmul.f32 %v1403, %v1434
      %v1441 = vadd.f32 %v1435, %v1436
      %v1442 = vsel %vm888, %v1437, 0.0
      %v1443 = vadd.f32 %v1441, %v1442
      %1444 = vadd.xlane.f32.xlu0 %v1443
      %v1445 = vpop.xlane.xlu0 %1444
      %v1446 = vadd.f32 %v1438, %v1439
      %v1447 = vsel %vm888, %v1440, 0.0
      %v1448 = vadd.f32 %v1446, %v1447
      %1449 = vadd.xlane.f32.xlu0 %v1448
      %v1450 = vpop.xlane.xlu0 %1449
      %v1451 = vmul.f32 %v1316, %v1316
      %v1452 = vmul.f32 %v1318, %v1318
      %v1453 = vmul.f32 %v1400, %v1400
      %v1454 = vmul.f32 %v1320, %v1320
      %v1455 = vmul.f32 %v1322, %v1322
      %v1456 = vmul.f32 %v1403, %v1403
      %v1457 = vmul.f32 %v1451, %v1426
      %v1458 = vmul.f32 %v1452, %v1430
      %v1459 = vmul.f32 %v1453, %v1434
      %v1460 = vmul.f32 %v1454, %v1426
      %v1461 = vmul.f32 %v1455, %v1430
      %v1462 = vmul.f32 %v1456, %v1434
      %v1463 = vadd.f32 %v1457, %v1458
      %v1464 = vsel %vm888, %v1459, 0.0
      %v1465 = vadd.f32 %v1463, %v1464
      %1466 = vadd.xlane.f32.xlu0 %v1465
      %v1467 = vpop.xlane.xlu0 %1466
      %v1468 = vadd.f32 %v1460, %v1461
      %v1469 = vsel %vm888, %v1462, 0.0
      %v1470 = vadd.f32 %v1468, %v1469
      %1471 = vadd.xlane.f32.xlu0 %v1470
      %v1472 = vpop.xlane.xlu0 %1471
      %v1473 = vmul.f32 %v1445, 0.00390625
      %v1474 = vmul.f32 %v1450, 0.00390625
      %v1475 = vmul.f32 %v1467, 0.00390625
      %v1476 = vmul.f32 %v1472, 0.00390625
      %v1477 = vmul.f32 %v1473, %v1473
      %v1478 = vmul.f32 %v1474, %v1474
      %v1479 = vsub.f32 %v1475, %v1477
      %v1480 = vsub.f32 %v1476, %v1478
      %v1481 = vmax.f32 %v1479, 0.0
      %v1482 = vmax.f32 %v1480, 0.0
      %v1483 = vadd.f32 %v1481, 1e-05
      %v1484 = vadd.f32 %v1482, 1e-05
      %v1485 = vrsqrt.pop %v1483
      %v1486 = vrsqrt.pop %v1484
      %v1487 = vmul.f32 %v1485, %v1153
      %v1488 = vmul.f32 %v1486, %v1154
      %v1489 = vmul.f32 %v1473, %v1487
      %v1490 = vmul.f32 %v1474, %v1488
      %1493 = vrot.lane.b32.xlu0 %v1489, 1
      %v1494 = vpop.permute.xlu0 %1493
      %1495 = vrot.lane.b32.xlu0 %v1490, 1
      %v1496 = vpop.permute.xlu0 %1495
      %v1499 = vsub.f32 %v1153, %v1494
      %v1500 = vsub.f32 %v1154, %v1496
      %1502 = vset.pattern.permute.xlu0 1
      %1503 = vperm.xlu0 %1502, %v1487
      %v1504 = vpop.permute.xlu0 %1503
      %1507 = vset.pattern.permute.xlu0 1
      %1508 = vperm.xlu0 %1507, %v1488
      %v1509 = vpop.permute.xlu0 %1508
      %v1511 = vmul.f32 %v1316, %v1504
      %v1512 = vmul.f32 %v1318, %v1504
      %v1513 = vmul.f32 %v1400, %v1504
      %v1514 = vmul.f32 %v1320, %v1509
      %v1515 = vmul.f32 %v1322, %v1509
      %v1516 = vmul.f32 %v1403, %v1509
      %1518 = vset.pattern.permute.xlu0 2
      %1519 = vperm.xlu0 %1518, %v1499
      %v1520 = vpop.permute.xlu0 %1519
      %1523 = vset.pattern.permute.xlu0 2
      %1524 = vperm.xlu0 %1523, %v1500
      %v1525 = vpop.permute.xlu0 %1524
      %v1527 = vadd.f32 %v1511, %v1520
      %v1528 = vadd.f32 %v1512, %v1520
      %v1529 = vadd.f32 %v1513, %v1520
      %v1530 = vadd.f32 %v1514, %v1525
      %v1531 = vadd.f32 %v1515, %v1525
      %v1532 = vadd.f32 %v1516, %v1525
      %v1533 = vmax.f32 %v1527, 0.0
      %v1534 = vmax.f32 %v1528, 0.0
      %v1535 = vmax.f32 %v1529, 0.0
      %v1536 = vmax.f32 %v1530, 0.0
      %v1537 = vmax.f32 %v1531, 0.0
      %v1538 = vmax.f32 %v1532, 0.0
      %v1539 = vmul.f32 %v1533, %v1426
      %v1540 = vmul.f32 %v1534, %v1430
      %v1541 = vmul.f32 %v1535, %v1434
      %v1542 = vmul.f32 %v1536, %v1426
      %v1543 = vmul.f32 %v1537, %v1430
      %v1544 = vmul.f32 %v1538, %v1434
      %v1545 = vpack.c.bf16 %v1542, %v1539
      %v1546 = vpack.c.bf16 %v1543, %v1540
      %v1547 = vpack.c.bf16 %v1544, %v1541
      %1548 = vst [vmem:[#allocation2 + $0x8] sm:$0xff] %v1545
      %1549 = vst [vmem:[#allocation2 + $0x10] sm:$0xff] %v1546
      %1550 = vst.msk [vmem:[#allocation2 + $0x18] sm:$0xff] %vm888, %v1547
      %v1551 = vld [vmem:[#allocation2] sm:$0xff]
      %v1552 = vld [vmem:[#allocation2 + $0x8] sm:$0xff]
      %v1553 = vld [vmem:[#allocation2 + $0x10] sm:$0xff]
      %v1554 = vld [vmem:[#allocation2 + $0x18] sm:$0xff]
      %1559 = vrot.lane.b32.xlu0 %v1551, 19
      %v1560 = vpop.permute.xlu0 %1559
      %1561 = vrot.lane.b32.xlu0 %v1552, 19
      %v1562 = vpop.permute.xlu0 %1561
      %1563 = vrot.lane.b32.xlu0 %v1553, 19
      %v1564 = vpop.permute.xlu0 %1563
      %1565 = vrot.lane.b32.xlu0 %v1554, 19
      %v1566 = vpop.permute.xlu0 %1565
      %v1567 = vsel %vm971, %v1560, %v1562
      %v1568 = vsel %vm971, %v1562, %v1564
      %v1569 = vsel %vm971, %v1564, %v1566
      %1573 = vst [vmem:[#allocation3] sm:$0xff] %v1567
      %1574 = vst [vmem:[#allocation3 + $0x8] sm:$0xff] %v1568
      %1575 = vst.msk [vmem:[#allocation3 + $0x10] sm:$0xff] %vm888, %v1569
      %v1576 = vld [vmem:[#allocation2] sm:$0xff]
      %v1577 = vld [vmem:[#allocation2 + $0x8] sm:$0xff]
      %v1578 = vld [vmem:[#allocation2 + $0x10] sm:$0xff]
      %v1579 = vld [vmem:[#allocation2 + $0x18] sm:$0xff]
      %1584 = vrot.lane.b32.xlu0 %v1576, 18
      %v1585 = vpop.permute.xlu0 %1584
      %1586 = vrot.lane.b32.xlu0 %v1577, 18
      %v1587 = vpop.permute.xlu0 %1586
      %1588 = vrot.lane.b32.xlu0 %v1578, 18
      %v1589 = vpop.permute.xlu0 %1588
      %1590 = vrot.lane.b32.xlu0 %v1579, 18
      %v1591 = vpop.permute.xlu0 %1590
      %v1592 = vsel %vm997, %v1585, %v1587
      %v1593 = vsel %vm997, %v1587, %v1589
      %v1594 = vsel %vm997, %v1589, %v1591
      %1598 = vst [vmem:[#allocation3 + $0x30] sm:$0xff] %v1592
      %1599 = vst [vmem:[#allocation3 + $0x38] sm:$0xff] %v1593
      %1600 = vst.msk [vmem:[#allocation3 + $0x40] sm:$0xff] %vm888, %v1594
      %v1601 = vld [vmem:[#allocation2] sm:$0xff]
      %v1602 = vld [vmem:[#allocation2 + $0x8] sm:$0xff]
      %v1603 = vld [vmem:[#allocation2 + $0x10] sm:$0xff]
      %v1604 = vld [vmem:[#allocation2 + $0x18] sm:$0xff]
      %1609 = vrot.lane.b32.xlu0 %v1601, 17
      %v1610 = vpop.permute.xlu0 %1609
      %1611 = vrot.lane.b32.xlu0 %v1602, 17
      %v1612 = vpop.permute.xlu0 %1611
      %1613 = vrot.lane.b32.xlu0 %v1603, 17
      %v1614 = vpop.permute.xlu0 %1613
      %1615 = vrot.lane.b32.xlu0 %v1604, 17
      %v1616 = vpop.permute.xlu0 %1615
      %v1617 = vsel %vm1023, %v1610, %v1612
      %v1618 = vsel %vm1023, %v1612, %v1614
      %v1619 = vsel %vm1023, %v1614, %v1616
      %1623 = vst [vmem:[#allocation3 + $0x60] sm:$0xff] %v1617
      %1624 = vst [vmem:[#allocation3 + $0x68] sm:$0xff] %v1618
      %1625 = vst.msk [vmem:[#allocation3 + $0x70] sm:$0xff] %vm888, %v1619
      %v1626 = vld [vmem:[#allocation2] sm:$0xff]
      %v1627 = vld [vmem:[#allocation2 + $0x8] sm:$0xff]
      %v1628 = vld [vmem:[#allocation2 + $0x10] sm:$0xff]
      %v1629 = vld [vmem:[#allocation2 + $0x18] sm:$0xff]
      %1634 = vrot.lane.b32.xlu0 %v1626, 1
      %v1635 = vpop.permute.xlu0 %1634
      %1636 = vrot.lane.b32.xlu0 %v1627, 1
      %v1637 = vpop.permute.xlu0 %1636
      %1638 = vrot.lane.b32.xlu0 %v1628, 1
      %v1639 = vpop.permute.xlu0 %1638
      %1640 = vrot.lane.b32.xlu0 %v1629, 1
      %v1641 = vpop.permute.xlu0 %1640
      %v1642 = vsel %vm1049, %v1635, %v1637
      %v1643 = vsel %vm1049, %v1637, %v1639
      %v1644 = vsel %vm1049, %v1639, %v1641
      %1648 = vst [vmem:[#allocation3 + $0x90] sm:$0xff] %v1642
      %1649 = vst [vmem:[#allocation3 + $0x98] sm:$0xff] %v1643
      %1650 = vst.msk [vmem:[#allocation3 + $0xa0] sm:$0xff] %vm888, %v1644
      %v1651 = vld [vmem:[#allocation2 + $0x8] sm:$0xff]
      %v1652 = vld [vmem:[#allocation2 + $0x10] sm:$0xff]
      %v1653 = vld [vmem:[#allocation2 + $0x18] sm:$0xff]
      %1654 = vst [vmem:[#allocation3 + $0xc0] sm:$0xff] %v1651
      %1655 = vst [vmem:[#allocation3 + $0xc8] sm:$0xff] %v1652
      %1656 = vst.msk [vmem:[#allocation3 + $0xd0] sm:$0xff] %vm888, %v1653
      %v1657 = vld [vmem:[#allocation2 + $0x8] sm:$0xff]
      %v1658 = vld [vmem:[#allocation2 + $0x10] sm:$0xff]
      %v1659 = vld [vmem:[#allocation2 + $0x18] sm:$0xff]
      %1663 = vrot.lane.b32.xlu0 %v1657, 127
      %v1664 = vpop.permute.xlu0 %1663
      %1665 = vrot.lane.b32.xlu0 %v1658, 127
      %v1666 = vpop.permute.xlu0 %1665
      %1667 = vrot.lane.b32.xlu0 %v1659, 127
      %v1668 = vpop.permute.xlu0 %1667
      %v1669 = vsel %vm1077, %v1664, %v1666
      %v1670 = vsel %vm1077, %v1666, %v1668
      %1674 = vst [vmem:[#allocation3 + $0xf0] sm:$0xff] %v1669
      %1675 = vst [vmem:[#allocation3 + $0xf8] sm:$0xff] %v1670
      %1676 = vst.msk [vmem:[#allocation3 + $0x100] sm:$0xff] %vm888, %v1668
      %v1677 = vld [vmem:[#allocation2 + $0x8] sm:$0xff]
      %v1678 = vld [vmem:[#allocation2 + $0x10] sm:$0xff]
      %v1679 = vld [vmem:[#allocation2 + $0x18] sm:$0xff]
      %1683 = vrot.lane.b32.xlu0 %v1677, 111
      %v1684 = vpop.permute.xlu0 %1683
      %1685 = vrot.lane.b32.xlu0 %v1678, 111
      %v1686 = vpop.permute.xlu0 %1685
      %1687 = vrot.lane.b32.xlu0 %v1679, 111
      %v1688 = vpop.permute.xlu0 %1687
      %v1689 = vsel %vm1098, %v1684, %v1686
      %v1690 = vsel %vm1098, %v1686, %v1688
      %1694 = vst [vmem:[#allocation3 + $0x120] sm:$0xff] %v1689
      %1695 = vst [vmem:[#allocation3 + $0x128] sm:$0xff] %v1690
      %1696 = vst.msk [vmem:[#allocation3 + $0x130] sm:$0xff] %vm888, %v1688
      %v1697 = vld [vmem:[#allocation2 + $0x8] sm:$0xff]
      %v1698 = vld [vmem:[#allocation2 + $0x10] sm:$0xff]
      %v1699 = vld [vmem:[#allocation2 + $0x18] sm:$0xff]
      %1703 = vrot.lane.b32.xlu0 %v1697, 110
      %v1704 = vpop.permute.xlu0 %1703
      %1705 = vrot.lane.b32.xlu0 %v1698, 110
      %v1706 = vpop.permute.xlu0 %1705
      %1707 = vrot.lane.b32.xlu0 %v1699, 110
      %v1708 = vpop.permute.xlu0 %1707
      %v1709 = vsel %vm1119, %v1704, %v1706
      %v1710 = vsel %vm1119, %v1706, %v1708
      %1714 = vst [vmem:[#allocation3 + $0x150] sm:$0xff] %v1709
      %1715 = vst [vmem:[#allocation3 + $0x158] sm:$0xff] %v1710
      %1716 = vst.msk [vmem:[#allocation3 + $0x160] sm:$0xff] %vm888, %v1708
      %v1717 = vld [vmem:[#allocation2 + $0x8] sm:$0xff]
      %v1718 = vld [vmem:[#allocation2 + $0x10] sm:$0xff]
      %v1719 = vld [vmem:[#allocation2 + $0x18] sm:$0xff]
      %1723 = vrot.lane.b32.xlu0 %v1717, 109
      %v1724 = vpop.permute.xlu0 %1723
      %1725 = vrot.lane.b32.xlu0 %v1718, 109
      %v1726 = vpop.permute.xlu0 %1725
      %1727 = vrot.lane.b32.xlu0 %v1719, 109
      %v1728 = vpop.permute.xlu0 %1727
      %v1729 = vsel %vm1140, %v1724, %v1726
      %v1730 = vsel %vm1140, %v1726, %v1728
      %1734 = vst [vmem:[#allocation3 + $0x180] sm:$0xff] %v1729
      %1735 = vst [vmem:[#allocation3 + $0x188] sm:$0xff] %v1730
      %1736 = vst.msk [vmem:[#allocation3 + $0x190] sm:$0xff] %vm888, %v1728
      %v1737 = vld [vmem:[%s822] sm:$0xff]
      %v1738 = vld [vmem:[%s822 + $0x8] sm:$0xf]
      %v1739 = vld [vmem:[%s822 + $0xc] sm:$0xff]
      %v1740 = vld [vmem:[%s822 + $0x14] sm:$0xf]
      %v1741 = vld [vmem:[%s827] sm:$0xff]
      %v1742 = vld [vmem:[%s827 + $0x8] sm:$0xff]
      %v1743 = vld [vmem:[#allocation3] sm:$0xff]
      %v1744 = vld [vmem:[#allocation3 + $0x8] sm:$0xff]
      %v1745 = vld [vmem:[#allocation3 + $0x10] sm:$0xff]
      %v1746 = vld [vmem:[#allocation3 + $0x18] sm:$0xff]
      %v1747 = vld [vmem:[#allocation3 + $0x20] sm:$0xff]
      %v1748 = vld [vmem:[#allocation3 + $0x28] sm:$0xff]
      %v1749 = vld [vmem:[#allocation3 + $0x30] sm:$0xff]
      %v1750 = vld [vmem:[#allocation3 + $0x38] sm:$0xff]
      %v1751 = vld [vmem:[#allocation3 + $0x40] sm:$0xff]
      %v1752 = vld [vmem:[#allocation3 + $0x48] sm:$0xff]
      %v1753 = vld [vmem:[#allocation3 + $0x50] sm:$0xff]
      %v1754 = vld [vmem:[#allocation3 + $0x58] sm:$0xff]
      %v1755 = vld [vmem:[#allocation3 + $0x60] sm:$0xff]
      %v1756 = vld [vmem:[#allocation3 + $0x68] sm:$0xff]
      %v1757 = vld [vmem:[#allocation3 + $0x70] sm:$0xff]
      %v1758 = vld [vmem:[#allocation3 + $0x78] sm:$0xff]
      %v1759 = vld [vmem:[#allocation3 + $0x80] sm:$0xff]
      %v1760 = vld [vmem:[#allocation3 + $0x88] sm:$0xff]
      %v1761 = vld [vmem:[#allocation3 + $0x90] sm:$0xff]
      %v1762 = vld [vmem:[#allocation3 + $0x98] sm:$0xff]
      %v1763 = vld [vmem:[#allocation3 + $0xa0] sm:$0xff]
      %v1764 = vld [vmem:[#allocation3 + $0xa8] sm:$0xff]
      %v1765 = vld [vmem:[#allocation3 + $0xb0] sm:$0xff]
      %v1766 = vld [vmem:[#allocation3 + $0xb8] sm:$0xff]
      %v1767 = vld [vmem:[#allocation3 + $0xc0] sm:$0xff]
      %v1768 = vld [vmem:[#allocation3 + $0xc8] sm:$0xff]
      %v1769 = vld [vmem:[#allocation3 + $0xd0] sm:$0xff]
      %v1770 = vld [vmem:[#allocation3 + $0xd8] sm:$0xff]
      %v1771 = vld [vmem:[#allocation3 + $0xe0] sm:$0xff]
      %v1772 = vld [vmem:[#allocation3 + $0xe8] sm:$0xff]
      %v1773 = vld [vmem:[#allocation3 + $0xf0] sm:$0xff]
      %v1774 = vld [vmem:[#allocation3 + $0xf8] sm:$0xff]
      %v1775 = vld [vmem:[#allocation3 + $0x100] sm:$0xff]
      %v1776 = vld [vmem:[#allocation3 + $0x108] sm:$0xff]
      %v1777 = vld [vmem:[#allocation3 + $0x110] sm:$0xff]
      %v1778 = vld [vmem:[#allocation3 + $0x118] sm:$0xff]
      %v1779 = vld [vmem:[#allocation3 + $0x120] sm:$0xff]
      %v1780 = vld [vmem:[#allocation3 + $0x128] sm:$0xff]
      %v1781 = vld [vmem:[#allocation3 + $0x130] sm:$0xff]
      %v1782 = vld [vmem:[#allocation3 + $0x138] sm:$0xff]
      %v1783 = vld [vmem:[#allocation3 + $0x140] sm:$0xff]
      %v1784 = vld [vmem:[#allocation3 + $0x148] sm:$0xff]
      %v1785 = vld [vmem:[#allocation3 + $0x150] sm:$0xff]
      %v1786 = vld [vmem:[#allocation3 + $0x158] sm:$0xff]
      %v1787 = vld [vmem:[#allocation3 + $0x160] sm:$0xff]
      %v1788 = vld [vmem:[#allocation3 + $0x168] sm:$0xff]
      %v1789 = vld [vmem:[#allocation3 + $0x170] sm:$0xff]
      %v1790 = vld [vmem:[#allocation3 + $0x178] sm:$0xff]
      %v1791 = vld [vmem:[#allocation3 + $0x180] sm:$0xff]
      %v1792 = vld [vmem:[#allocation3 + $0x188] sm:$0xff]
      %v1793 = vld [vmem:[#allocation3 + $0x190] sm:$0xff]
      %v1794 = vld [vmem:[#allocation3 + $0x198] sm:$0xff]
      %v1795 = vld [vmem:[#allocation3 + $0x1a0] sm:$0xff]
      %v1796 = vld [vmem:[#allocation3 + $0x1a8] sm:$0xff]
      %1798 = vset.pattern.permute.xlu0 0
      %1799 = vperm.xlu0 %1798, %v1741
      %v1800 = vpop.permute.xlu0 %1799
      %1803 = vset.pattern.permute.xlu0 0
      %1804 = vperm.xlu0 %1803, %v1742
      %v1805 = vpop.permute.xlu0 %1804
      %v1811 = vunpack.c.l.b16 %v1737
      %v1812 = vunpack.c.h.b16 %v1737
      %v1813 = vunpack.c.l.b16 %v1738
      %v1814 = vunpack.c.l.b16 %v1739
      %v1815 = vunpack.c.h.b16 %v1739
      %v1816 = vunpack.c.l.b16 %v1740
      %v1817 = vpack.c.b16 %v1814, %v1811
      %v1818 = vpack.c.b16 %v1815, %v1812
      %v1819 = vpack.c.b16 %v1816, %v1813
      %v1823 = vsel %vm1234, %v1819, 0
      %1825 = vmatprep.subr.bf16.mxu0 %v1744
      %1826 = vmatpush1.bf16.msra.mxu0 %v1743
      %1827 = vmatprep.subr.bf16.mxu0 %v1747
      %1828 = vmatpush1.bf16.msra.mxu0 %v1746
      %1829 = vmatprep.subr.bf16.mxu0 %v1750
      %1830 = vmatpush1.bf16.msra.mxu0 %v1749
      %1831 = vmatprep.subr.bf16.mxu0 %v1753
      %1832 = vmatpush1.bf16.msra.mxu0 %v1752
      %1833 = vmatprep.subr.bf16.mxu0 %v1756
      %1834 = vmatpush1.bf16.msra.mxu0 %v1755
      %1835 = vmatprep.subr.bf16.mxu0 %v1759
      %1836 = vmatpush1.bf16.msra.mxu0 %v1758
      %1837 = vmatprep.subr.bf16.mxu0 %v1762
      %1838 = vmatpush1.bf16.msra.mxu0 %v1761
      %1839 = vmatprep.subr.bf16.mxu0 %v1765
      %1840 = vmatpush1.bf16.msra.mxu0 %v1764
      %1841 = vmatprep.subr.bf16.mxu0 %v1768
      %1842 = vmatpush1.bf16.msra.mxu0 %v1767
      %1843 = vmatprep.subr.bf16.mxu0 %v1771
      %1844 = vmatpush1.bf16.msra.mxu0 %v1770
      %1845 = vmatprep.subr.bf16.mxu0 %v1774
      %1846 = vmatpush1.bf16.msra.mxu0 %v1773
      %1847 = vmatprep.subr.bf16.mxu0 %v1777
      %1848 = vmatpush1.bf16.msra.mxu0 %v1776
      %1849 = vmatprep.subr.bf16.mxu0 %v1780
      %1850 = vmatpush1.bf16.msra.mxu0 %v1779
      %1851 = vmatprep.subr.bf16.mxu0 %v1783
      %1852 = vmatpush1.bf16.msra.mxu0 %v1782
      %1853 = vmatprep.subr.bf16.mxu0 %v1786
      %1854 = vmatpush1.bf16.msra.mxu0 %v1785
      %1855 = vmatprep.subr.bf16.mxu0 %v1789
      %1856 = vmatpush1.bf16.msra.mxu0 %v1788
      %1857 = vmatprep.mubr.bf16.mxu0 %v1818
      %1858 = vmatmul.mubr.bf16.gmra.mrb[0].mxu0 %v1817
      %v1859 = vpop.f32.mrb[0].mxu0
      %v1860 = vadd.f32 %v1800, %v1859
      %v1861 = vpop.f32.mrb[0].mxu0
      %v1862 = vadd.f32 %v1800, %v1861
      %v1863 = vpop.f32.mrb[0].mxu0
      %v1864 = vadd.f32 %v1805, %v1863
      %v1865 = vpop.f32.mrb[0].mxu0
      %v1866 = vadd.f32 %v1805, %v1865
      %1867 = vdwg.mxu0
      %1868 = vmatprep.subr.bf16.mxu0 %v1792
      %1869 = vmatpush1.bf16.msra.mxu0 %v1791
      %1870 = vmatprep.subr.bf16.mxu0 %v1795
      %1871 = vmatpush1.bf16.msra.mxu0 %v1794
      %1872 = vmatprep.subr.bf16.mxu0 0
      %1873 = vmatpush1.bf16.msra.mxu0 0
      %1874 = vmatprep.subr.bf16.mxu0 0
      %1875 = vmatpush1.bf16.msra.mxu0 0
      %1876 = vmatprep.subr.bf16.mxu0 0
      %1877 = vmatpush1.bf16.msra.mxu0 0
      %1878 = vmatprep.subr.bf16.mxu0 0
      %1879 = vmatpush1.bf16.msra.mxu0 0
      %1880 = vmatprep.subr.bf16.mxu0 0
      %1881 = vmatpush1.bf16.msra.mxu0 0
      %1882 = vmatprep.subr.bf16.mxu0 0
      %1883 = vmatpush1.bf16.msra.mxu0 0
      %1884 = vmatprep.subr.bf16.mxu0 0
      %1885 = vmatpush1.bf16.msra.mxu0 0
      %1886 = vmatprep.subr.bf16.mxu0 0
      %1887 = vmatpush1.bf16.msra.mxu0 0
      %1888 = vmatprep.subr.bf16.mxu0 0
      %1889 = vmatpush1.bf16.msra.mxu0 0
      %1890 = vmatprep.subr.bf16.mxu0 0
      %1891 = vmatpush1.bf16.msra.mxu0 0
      %1892 = vmatprep.subr.bf16.mxu0 0
      %1893 = vmatpush1.bf16.msra.mxu0 0
      %1894 = vmatprep.subr.bf16.mxu0 0
      %1895 = vmatpush1.bf16.msra.mxu0 0
      %1896 = vmatprep.subr.bf16.mxu0 0
      %1897 = vmatpush1.bf16.msra.mxu0 0
      %1898 = vmatprep.subr.bf16.mxu0 0
      %1899 = vmatpush1.bf16.msra.mxu0 0
      %1900 = vmatprep.mubr.bf16.mxu0 0
      %1901 = vmatmul.mubr.bf16.gmra.mrb[0].mxu0 %v1823
      %v1902 = vpop.f32.mrb[0].mxu0
      %v1903 = vadd.f32 %v1860, %v1902
      %v1904 = vpop.f32.mrb[0].mxu0
      %v1905 = vadd.f32 %v1862, %v1904
      %v1906 = vpop.f32.mrb[0].mxu0
      %v1907 = vadd.f32 %v1864, %v1906
      %v1908 = vpop.f32.mrb[0].mxu0
      %v1909 = vadd.f32 %v1866, %v1908
      %1910 = vdwg.mxu0
      %1911 = vmatprep.subr.bf16.mxu0 0
      %1912 = vmatpush1.bf16.msra.mxu0 %v1745
      %1913 = vmatprep.subr.bf16.mxu0 0
      %1914 = vmatpush1.bf16.msra.mxu0 %v1748
      %1915 = vmatprep.subr.bf16.mxu0 0
      %1916 = vmatpush1.bf16.msra.mxu0 %v1751
      %1917 = vmatprep.subr.bf16.mxu0 0
      %1918 = vmatpush1.bf16.msra.mxu0 %v1754
      %1919 = vmatprep.subr.bf16.mxu0 0
      %1920 = vmatpush1.bf16.msra.mxu0 %v1757
      %1921 = vmatprep.subr.bf16.mxu0 0
      %1922 = vmatpush1.bf16.msra.mxu0 %v1760
      %1923 = vmatprep.subr.bf16.mxu0 0
      %1924 = vmatpush1.bf16.msra.mxu0 %v1763
      %1925 = vmatprep.subr.bf16.mxu0 0
      %1926 = vmatpush1.bf16.msra.mxu0 %v1766
      %1927 = vmatprep.subr.bf16.mxu0 0
      %1928 = vmatpush1.bf16.msra.mxu0 %v1769
      %1929 = vmatprep.subr.bf16.mxu0 0
      %1930 = vmatpush1.bf16.msra.mxu0 %v1772
      %1931 = vmatprep.subr.bf16.mxu0 0
      %1932 = vmatpush1.bf16.msra.mxu0 %v1775
      %1933 = vmatprep.subr.bf16.mxu0 0
      %1934 = vmatpush1.bf16.msra.mxu0 %v1778
      %1935 = vmatprep.subr.bf16.mxu0 0
      %1936 = vmatpush1.bf16.msra.mxu0 %v1781
      %1937 = vmatprep.subr.bf16.mxu0 0
      %1938 = vmatpush1.bf16.msra.mxu0 %v1784
      %1939 = vmatprep.subr.bf16.mxu0 0
      %1940 = vmatpush1.bf16.msra.mxu0 %v1787
      %1941 = vmatprep.subr.bf16.mxu0 0
      %1942 = vmatpush1.bf16.msra.mxu0 %v1790
      %1943 = vmatprep.mubr.bf16.mxu0 %v1818
      %1944 = vmatmul.mubr.bf16.gmra.mrb[0].mxu0 %v1817
      %v1945 = vpop.f32.mrb[0].mxu0
      %v1946 = vadd.f32 %v1800, %v1945
      %v1947 = vpop.f32.mrb[0].mxu0
      %v1948 = vpop.f32.mrb[0].mxu0
      %v1949 = vadd.f32 %v1805, %v1948
      %v1950 = vpop.f32.mrb[0].mxu0
      %1951 = vdwg.mxu0
      %1952 = vmatprep.subr.bf16.mxu0 0
      %1953 = vmatpush1.bf16.msra.mxu0 %v1793
      %1954 = vmatprep.subr.bf16.mxu0 0
      %1955 = vmatpush1.bf16.msra.mxu0 %v1796
      %1956 = vmatprep.subr.bf16.mxu0 0
      %1957 = vmatpush1.bf16.msra.mxu0 0
      %1958 = vmatprep.subr.bf16.mxu0 0
      %1959 = vmatpush1.bf16.msra.mxu0 0
      %1960 = vmatprep.subr.bf16.mxu0 0
      %1961 = vmatpush1.bf16.msra.mxu0 0
      %1962 = vmatprep.subr.bf16.mxu0 0
      %1963 = vmatpush1.bf16.msra.mxu0 0
      %1964 = vmatprep.subr.bf16.mxu0 0
      %1965 = vmatpush1.bf16.msra.mxu0 0
      %1966 = vmatprep.subr.bf16.mxu0 0
      %1967 = vmatpush1.bf16.msra.mxu0 0
      %1968 = vmatprep.subr.bf16.mxu0 0
      %1969 = vmatpush1.bf16.msra.mxu0 0
      %1970 = vmatprep.subr.bf16.mxu0 0
      %1971 = vmatpush1.bf16.msra.mxu0 0
      %1972 = vmatprep.subr.bf16.mxu0 0
      %1973 = vmatpush1.bf16.msra.mxu0 0
      %1974 = vmatprep.subr.bf16.mxu0 0
      %1975 = vmatpush1.bf16.msra.mxu0 0
      %1976 = vmatprep.subr.bf16.mxu0 0
      %1977 = vmatpush1.bf16.msra.mxu0 0
      %1978 = vmatprep.subr.bf16.mxu0 0
      %1979 = vmatpush1.bf16.msra.mxu0 0
      %1980 = vmatprep.subr.bf16.mxu0 0
      %1981 = vmatpush1.bf16.msra.mxu0 0
      %1982 = vmatprep.subr.bf16.mxu0 0
      %1983 = vmatpush1.bf16.msra.mxu0 0
      %1984 = vmatprep.mubr.bf16.mxu0 0
      %1985 = vmatmul.mubr.bf16.gmra.mrb[0].mxu0 %v1823
      %v1986 = vpop.f32.mrb[0].mxu0
      %v1987 = vadd.f32 %v1946, %v1986
      %v1988 = vpop.f32.mrb[0].mxu0
      %v1989 = vpop.f32.mrb[0].mxu0
      %v1990 = vadd.f32 %v1949, %v1989
      %v1991 = vpop.f32.mrb[0].mxu0
      %1992 = vdwg.mxu0
      %v1993 = vlaneseq
      %v1994 = vshrl.u32 %v1993, 7
      %v1995 = vsub.s32 1, %v1994
      %v1996 = vrot.slane %v941, %v1995
      %v1997 = vlaneseq
      %v1998 = vshrl.u32 %v1997, 7
      %v1999 = vsub.s32 5, %v1998
      %v2000 = vrot.slane %v941, %v1999
      %v2001 = vlaneseq
      %v2002 = vshrl.u32 %v2001, 7
      %v2003 = vsub.s32 1, %v2002
      %v2004 = vrot.slane %v942, %v2003
      %v2008 = vlaneseq
      %v2009 = vshrl.u32 %v2008, 7
      %v2010 = vsub.s32 1, %v2009
      %v2011 = vrot.slane %v1996, %v2010
      %v2012 = vlaneseq
      %v2013 = vshrl.u32 %v2012, 7
      %v2014 = vsub.s32 1, %v2013
      %v2015 = vrot.slane %v2000, %v2014
      %v2016 = vlaneseq
      %v2017 = vshrl.u32 %v2016, 7
      %v2018 = vsub.s32 1, %v2017
      %v2019 = vrot.slane %v2004, %v2018
      %v2020 = vmul.f32 %v1903, %v2011
      %v2021 = vmul.f32 %v1905, %v2015
      %v2022 = vmul.f32 %v1987, %v2019
      %v2023 = vmul.f32 %v1907, %v2011
      %v2024 = vmul.f32 %v1909, %v2015
      %v2025 = vmul.f32 %v1990, %v2019
      %v2026 = vadd.f32 %v2020, %v2021
      %v2027 = vsel %vm888, %v2022, 0.0
      %v2028 = vadd.f32 %v2026, %v2027
      %2029 = vadd.xlane.f32.xlu0 %v2028
      %v2030 = vpop.xlane.xlu0 %2029
      %v2031 = vadd.f32 %v2023, %v2024
      %v2032 = vsel %vm888, %v2025, 0.0
      %v2033 = vadd.f32 %v2031, %v2032
      %2034 = vadd.xlane.f32.xlu0 %v2033
      %v2035 = vpop.xlane.xlu0 %2034
      %v2036 = vmul.f32 %v1903, %v1903
      %v2037 = vmul.f32 %v1905, %v1905
      %v2038 = vmul.f32 %v1987, %v1987
      %v2039 = vmul.f32 %v1907, %v1907
      %v2040 = vmul.f32 %v1909, %v1909
      %v2041 = vmul.f32 %v1990, %v1990
      %v2042 = vmul.f32 %v2036, %v2011
      %v2043 = vmul.f32 %v2037, %v2015
      %v2044 = vmul.f32 %v2038, %v2019
      %v2045 = vmul.f32 %v2039, %v2011
      %v2046 = vmul.f32 %v2040, %v2015
      %v2047 = vmul.f32 %v2041, %v2019
      %v2048 = vadd.f32 %v2042, %v2043
      %v2049 = vsel %vm888, %v2044, 0.0
      %v2050 = vadd.f32 %v2048, %v2049
      %2051 = vadd.xlane.f32.xlu0 %v2050
      %v2052 = vpop.xlane.xlu0 %2051
      %v2053 = vadd.f32 %v2045, %v2046
      %v2054 = vsel %vm888, %v2047, 0.0
      %v2055 = vadd.f32 %v2053, %v2054
      %2056 = vadd.xlane.f32.xlu0 %v2055
      %v2057 = vpop.xlane.xlu0 %2056
      %v2058 = vmul.f32 %v2030, 0.015625
      %v2059 = vmul.f32 %v2035, 0.015625
      %v2060 = vmul.f32 %v2052, 0.015625
      %v2061 = vmul.f32 %v2057, 0.015625
      %v2062 = vmul.f32 %v2058, %v2058
      %v2063 = vmul.f32 %v2059, %v2059
      %v2064 = vsub.f32 %v2060, %v2062
      %v2065 = vsub.f32 %v2061, %v2063
      %v2066 = vmax.f32 %v2064, 0.0
      %v2067 = vmax.f32 %v2065, 0.0
      %v2068 = vadd.f32 %v2066, 1e-05
      %v2069 = vadd.f32 %v2067, 1e-05
      %v2070 = vrsqrt.pop %v2068
      %v2071 = vrsqrt.pop %v2069
      %v2072 = vmul.f32 %v2070, %v1741
      %v2073 = vmul.f32 %v2071, %v1742
      %v2074 = vmul.f32 %v2058, %v2072
      %v2075 = vmul.f32 %v2059, %v2073
      %2078 = vrot.lane.b32.xlu0 %v2074, 1
      %v2079 = vpop.permute.xlu0 %2078
      %2080 = vrot.lane.b32.xlu0 %v2075, 1
      %v2081 = vpop.permute.xlu0 %2080
      %v2084 = vsub.f32 %v1741, %v2079
      %v2085 = vsub.f32 %v1742, %v2081
      %2087 = vset.pattern.permute.xlu0 1
      %2088 = vperm.xlu0 %2087, %v2072
      %v2089 = vpop.permute.xlu0 %2088
      %2092 = vset.pattern.permute.xlu0 1
      %2093 = vperm.xlu0 %2092, %v2073
      %v2094 = vpop.permute.xlu0 %2093
      %v2096 = vmul.f32 %v1903, %v2089
      %v2097 = vmul.f32 %v1905, %v2089
      %v2098 = vmul.f32 %v1987, %v2089
      %v2099 = vmul.f32 %v1907, %v2094
      %v2100 = vmul.f32 %v1909, %v2094
      %v2101 = vmul.f32 %v1990, %v2094
      %2103 = vset.pattern.permute.xlu0 2
      %2104 = vperm.xlu0 %2103, %v2084
      %v2105 = vpop.permute.xlu0 %2104
      %2108 = vset.pattern.permute.xlu0 2
      %2109 = vperm.xlu0 %2108, %v2085
      %v2110 = vpop.permute.xlu0 %2109
      %v2112 = vadd.f32 %v2096, %v2105
      %v2113 = vadd.f32 %v2097, %v2105
      %v2114 = vadd.f32 %v2098, %v2105
      %v2115 = vadd.f32 %v2099, %v2110
      %v2116 = vadd.f32 %v2100, %v2110
      %v2117 = vadd.f32 %v2101, %v2110
      %v2118 = vmax.f32 %v2112, 0.0
      %v2119 = vmax.f32 %v2113, 0.0
      %v2120 = vmax.f32 %v2114, 0.0
      %v2121 = vmax.f32 %v2115, 0.0
      %v2122 = vmax.f32 %v2116, 0.0
      %v2123 = vmax.f32 %v2117, 0.0
      %v2124 = vpack.c.bf16 %v2121, %v2118
      %v2125 = vpack.c.bf16 %v2122, %v2119
      %v2126 = vpack.c.bf16 %v2123, %v2120
      %v2127 = vld [vmem:[%s2] sm:$0xf]
      %v2128 = vld [vmem:[%s2 + $0x4] sm:$0xf]
      %v2129 = vld [vmem:[%s2 + $0x8] sm:$0xf]
      %v2130 = vld [vmem:[%s2 + $0xc] sm:$0xf]
      %v2131 = vld [vmem:[%s2 + $0x10] sm:$0xf]
      %v2132 = vld [vmem:[%s2 + $0x14] sm:$0xf]
      %v2133 = vld [vmem:[%s2 + $0x18] sm:$0xf]
      %v2134 = vld [vmem:[%s2 + $0x1c] sm:$0xf]
      %v2135 = vld [vmem:[%s2 + $0x20] sm:$0xf]
      %v2136 = vld [vmem:[%s2 + $0x24] sm:$0xf]
      %v2137 = vld [vmem:[%s2 + $0x28] sm:$0xf]
      %v2138 = vld [vmem:[%s2 + $0x2c] sm:$0xf]
      %v2139 = vld [vmem:[%s2 + $0x30] sm:$0xf]
      %v2140 = vld [vmem:[%s2 + $0x34] sm:$0xf]
      %v2141 = vld [vmem:[%s2 + $0x38] sm:$0xf]
      %v2142 = vld [vmem:[%s2 + $0x3c] sm:$0xf]
      %v2143 = vld [vmem:[%s2 + $0x40] sm:$0xf]
      %v2144 = vld [vmem:[%s2 + $0x44] sm:$0xf]
      %v2145 = vld [vmem:[%s2 + $0x48] sm:$0xf]
      %v2146 = vld [vmem:[%s2 + $0x4c] sm:$0xf]
      %v2147 = vld [vmem:[%s2 + $0x50] sm:$0xf]
      %v2148 = vld [vmem:[%s2 + $0x54] sm:$0xf]
      %v2149 = vld [vmem:[%s2 + $0x58] sm:$0xf]
      %v2150 = vld [vmem:[%s2 + $0x5c] sm:$0xf]
      %v2151 = vld [vmem:[%s2 + $0x60] sm:$0xf]
      %v2152 = vld [vmem:[%s2 + $0x64] sm:$0xf]
      %v2153 = vld [vmem:[%s2 + $0x68] sm:$0xf]
      %v2154 = vld [vmem:[%s2 + $0x6c] sm:$0xf]
      %v2155 = vld [vmem:[%s2 + $0x70] sm:$0xf]
      %v2156 = vld [vmem:[%s2 + $0x74] sm:$0xf]
      %v2157 = vld [vmem:[%s2 + $0x78] sm:$0xf]
      %v2158 = vld [vmem:[%s2 + $0x7c] sm:$0xf]
      %v2159 = vld [vmem:[%s2 + $0x80] sm:$0xf]
      %v2160 = vld [vmem:[%s2 + $0x84] sm:$0xf]
      %v2161 = vld [vmem:[%s2 + $0x88] sm:$0xf]
      %v2162 = vld [vmem:[%s2 + $0x8c] sm:$0xf]
      %v2163 = vld [vmem:[%s2 + $0x90] sm:$0xf]
      %v2164 = vld [vmem:[%s2 + $0x94] sm:$0xf]
      %v2165 = vld [vmem:[%s2 + $0x98] sm:$0xf]
      %v2166 = vld [vmem:[%s2 + $0x9c] sm:$0xf]
      %v2167 = vld [vmem:[%s2 + $0xa0] sm:$0x3]
      %v2209 = vunpack.c.l.b16 %v2127
      %v2210 = vunpack.c.l.b16 %v2128
      %v2211 = vunpack.c.l.b16 %v2129
      %v2212 = vunpack.c.l.b16 %v2130
      %v2213 = vunpack.c.l.b16 %v2131
      %v2214 = vunpack.c.l.b16 %v2132
      %v2215 = vunpack.c.l.b16 %v2133
      %v2216 = vunpack.c.l.b16 %v2134
      %v2217 = vunpack.c.l.b16 %v2135
      %v2218 = vunpack.c.l.b16 %v2136
      %v2219 = vunpack.c.l.b16 %v2137
      %v2220 = vunpack.c.l.b16 %v2138
      %v2221 = vunpack.c.l.b16 %v2139
      %v2222 = vunpack.c.l.b16 %v2140
      %v2223 = vunpack.c.l.b16 %v2141
      %v2224 = vunpack.c.l.b16 %v2142
      %v2225 = vunpack.c.l.b16 %v2143
      %v2226 = vunpack.c.l.b16 %v2144
      %v2227 = vunpack.c.l.b16 %v2145
      %v2228 = vunpack.c.l.b16 %v2146
      %v2229 = vunpack.c.l.b16 %v2147
      %v2230 = vunpack.c.l.b16 %v2148
      %v2231 = vunpack.c.l.b16 %v2149
      %v2232 = vunpack.c.l.b16 %v2150
      %v2233 = vunpack.c.l.b16 %v2151
      %v2234 = vunpack.c.l.b16 %v2152
      %v2235 = vunpack.c.l.b16 %v2153
      %v2236 = vunpack.c.l.b16 %v2154
      %v2237 = vunpack.c.l.b16 %v2155
      %v2238 = vunpack.c.l.b16 %v2156
      %v2239 = vunpack.c.l.b16 %v2157
      %v2240 = vunpack.c.l.b16 %v2158
      %v2241 = vunpack.c.l.b16 %v2159
      %v2242 = vunpack.c.l.b16 %v2160
      %v2243 = vunpack.c.l.b16 %v2161
      %v2244 = vunpack.c.l.b16 %v2162
      %v2245 = vunpack.c.l.b16 %v2163
      %v2246 = vunpack.c.l.b16 %v2164
      %v2247 = vunpack.c.l.b16 %v2165
      %v2248 = vunpack.c.l.b16 %v2166
      %v2249 = vunpack.c.l.b16 %v2167
      %v2250 = vpack.c.b16 %v2210, %v2209
      %v2251 = vpack.c.b16 %v2212, %v2211
      %v2252 = vpack.c.b16 %v2214, %v2213
      %v2253 = vpack.c.b16 %v2216, %v2215
      %v2254 = vpack.c.b16 %v2218, %v2217
      %v2255 = vpack.c.b16 %v2220, %v2219
      %v2256 = vpack.c.b16 %v2222, %v2221
      %v2257 = vpack.c.b16 %v2224, %v2223
      %v2258 = vpack.c.b16 %v2226, %v2225
      %v2259 = vpack.c.b16 %v2228, %v2227
      %v2260 = vpack.c.b16 %v2230, %v2229
      %v2261 = vpack.c.b16 %v2232, %v2231
      %v2262 = vpack.c.b16 %v2234, %v2233
      %v2263 = vpack.c.b16 %v2236, %v2235
      %v2264 = vpack.c.b16 %v2238, %v2237
      %v2265 = vpack.c.b16 %v2240, %v2239
      %v2266 = vpack.c.b16 %v2242, %v2241
      %v2267 = vpack.c.b16 %v2244, %v2243
      %v2268 = vpack.c.b16 %v2246, %v2245
      %v2269 = vpack.c.b16 %v2248, %v2247
      %v2270 = vpack.c.b16 %v2249, %v2249
      %v2292 = vsel %vm888, %v2126, 0
      %vm2294 = vcmask 1041408
      %v2296 = vsel %vm2294, %v2270, 0
      %2298 = vmatprep.subr.bf16.mxu0 0
      %2299 = vmatpush1.bf16.msra.mxu0 %v2250
      %2300 = vmatprep.subr.bf16.mxu0 0
      %2301 = vmatpush1.bf16.msra.mxu0 %v2251
      %2302 = vmatprep.subr.bf16.mxu0 0
      %2303 = vmatpush1.bf16.msra.mxu0 %v2252
      %2304 = vmatprep.subr.bf16.mxu0 0
      %2305 = vmatpush1.bf16.msra.mxu0 %v2253
      %2306 = vmatprep.subr.bf16.mxu0 0
      %2307 = vmatpush1.bf16.msra.mxu0 %v2254
      %2308 = vmatprep.subr.bf16.mxu0 0
      %2309 = vmatpush1.bf16.msra.mxu0 %v2255
      %2310 = vmatprep.subr.bf16.mxu0 0
      %2311 = vmatpush1.bf16.msra.mxu0 %v2256
      %2312 = vmatprep.subr.bf16.mxu0 0
      %2313 = vmatpush1.bf16.msra.mxu0 %v2257
      %2314 = vmatprep.subr.bf16.mxu0 0
      %2315 = vmatpush1.bf16.msra.mxu0 %v2258
      %2316 = vmatprep.subr.bf16.mxu0 0
      %2317 = vmatpush1.bf16.msra.mxu0 %v2259
      %2318 = vmatprep.subr.bf16.mxu0 0
      %2319 = vmatpush1.bf16.msra.mxu0 %v2260
      %2320 = vmatprep.subr.bf16.mxu0 0
      %2321 = vmatpush1.bf16.msra.mxu0 %v2261
      %2322 = vmatprep.subr.bf16.mxu0 0
      %2323 = vmatpush1.bf16.msra.mxu0 %v2262
      %2324 = vmatprep.subr.bf16.mxu0 0
      %2325 = vmatpush1.bf16.msra.mxu0 %v2263
      %2326 = vmatprep.subr.bf16.mxu0 0
      %2327 = vmatpush1.bf16.msra.mxu0 %v2264
      %2328 = vmatprep.subr.bf16.mxu0 0
      %2329 = vmatpush1.bf16.msra.mxu0 %v2265
      %2330 = vmatprep.mubr.bf16.mxu0 %v2125
      %2331 = vmatmul.mubr.bf16.gmra.mrb[0].mxu0 %v2124
      %v2332 = vpop.f32.mrb[0].mxu0
      %v2333 = vadd.f32 0.0, %v2332
      %v2334 = vpop.f32.mrb[0].mxu0
      %v2335 = vpop.f32.mrb[0].mxu0
      %v2336 = vadd.f32 0.0, %v2335
      %v2337 = vpop.f32.mrb[0].mxu0
      %2338 = vdwg.mxu0
      %2339 = vmatprep.subr.bf16.mxu0 0
      %2340 = vmatpush1.bf16.msra.mxu0 %v2266
      %2341 = vmatprep.subr.bf16.mxu0 0
      %2342 = vmatpush1.bf16.msra.mxu0 %v2267
      %2343 = vmatprep.subr.bf16.mxu0 0
      %2344 = vmatpush1.bf16.msra.mxu0 %v2268
      %2345 = vmatprep.subr.bf16.mxu0 0
      %2346 = vmatpush1.bf16.msra.mxu0 %v2269
      %2347 = vmatprep.subr.bf16.mxu0 0
      %2348 = vmatpush1.bf16.msra.mxu0 %v2296
      %2349 = vmatprep.subr.bf16.mxu0 0
      %2350 = vmatpush1.bf16.msra.mxu0 0
      %2351 = vmatprep.subr.bf16.mxu0 0
      %2352 = vmatpush1.bf16.msra.mxu0 0
      %2353 = vmatprep.subr.bf16.mxu0 0
      %2354 = vmatpush1.bf16.msra.mxu0 0
      %2355 = vmatprep.subr.bf16.mxu0 0
      %2356 = vmatpush1.bf16.msra.mxu0 0
      %2357 = vmatprep.subr.bf16.mxu0 0
      %2358 = vmatpush1.bf16.msra.mxu0 0
      %2359 = vmatprep.subr.bf16.mxu0 0
      %2360 = vmatpush1.bf16.msra.mxu0 0
      %2361 = vmatprep.subr.bf16.mxu0 0
      %2362 = vmatpush1.bf16.msra.mxu0 0
      %2363 = vmatprep.subr.bf16.mxu0 0
      %2364 = vmatpush1.bf16.msra.mxu0 0
      %2365 = vmatprep.subr.bf16.mxu0 0
      %2366 = vmatpush1.bf16.msra.mxu0 0
      %2367 = vmatprep.subr.bf16.mxu0 0
      %2368 = vmatpush1.bf16.msra.mxu0 0
      %2369 = vmatprep.subr.bf16.mxu0 0
      %2370 = vmatpush1.bf16.msra.mxu0 0
      %2371 = vmatprep.mubr.bf16.mxu0 0
      %2372 = vmatmul.mubr.bf16.gmra.mrb[0].mxu0 %v2292
      %v2373 = vpop.f32.mrb[0].mxu0
      %v2374 = vadd.f32 %v2333, %v2373
      %v2375 = vpop.f32.mrb[0].mxu0
      %v2376 = vpop.f32.mrb[0].mxu0
      %v2377 = vadd.f32 %v2336, %v2376
      %v2378 = vpop.f32.mrb[0].mxu0
      %2379 = vdwg.mxu0
      %v2380 = vpack.c.bf16 %v2377, %v2374
      %vm2381 = vcmask 818176
      %2382 = vst.msk [vmem:[#allocation2 + $0x8] sm:$0xff] %vm2381, %v2380
      %v2383 = vld [vmem:[#allocation2] sm:$0xff]
      %v2384 = vld [vmem:[#allocation2 + $0x8] sm:$0xff]
      %2387 = vrot.lane.b32.xlu0 %v2383, 11
      %v2388 = vpop.permute.xlu0 %2387
      %2389 = vrot.lane.b32.xlu0 %v2384, 11
      %v2390 = vpop.permute.xlu0 %2389
      %vm2391 = vcmask 89088
      %v2392 = vsel %vm2391, %v2388, %v2390
      %2394 = vst.msk [vmem:[#allocation3] sm:$0xff] %vm2381, %v2392
      %v2395 = vld [vmem:[#allocation2] sm:$0xff]
      %v2396 = vld [vmem:[#allocation2 + $0x8] sm:$0xff]
      %2399 = vrot.lane.b32.xlu0 %v2395, 10
      %v2400 = vpop.permute.xlu0 %2399
      %2401 = vrot.lane.b32.xlu0 %v2396, 10
      %v2402 = vpop.permute.xlu0 %2401
      %vm2403 = vcmask 80896
      %v2404 = vsel %vm2403, %v2400, %v2402
      %2406 = vst.msk [vmem:[#allocation3 + $0x30] sm:$0xff] %vm2381, %v2404
      %v2407 = vld [vmem:[#allocation2] sm:$0xff]
      %v2408 = vld [vmem:[#allocation2 + $0x8] sm:$0xff]
      %2411 = vrot.lane.b32.xlu0 %v2407, 9
      %v2412 = vpop.permute.xlu0 %2411
      %2413 = vrot.lane.b32.xlu0 %v2408, 9
      %v2414 = vpop.permute.xlu0 %2413
      %vm2415 = vcmask 72704
      %v2416 = vsel %vm2415, %v2412, %v2414
      %2418 = vst.msk [vmem:[#allocation3 + $0x60] sm:$0xff] %vm2381, %v2416
      %v2419 = vld [vmem:[#allocation2] sm:$0xff]
      %v2420 = vld [vmem:[#allocation2 + $0x8] sm:$0xff]
      %2423 = vrot.lane.b32.xlu0 %v2419, 1
      %v2424 = vpop.permute.xlu0 %2423
      %2425 = vrot.lane.b32.xlu0 %v2420, 1
      %v2426 = vpop.permute.xlu0 %2425
      %v2427 = vsel %vm1049, %v2424, %v2426
      %2429 = vst.msk [vmem:[#allocation3 + $0x90] sm:$0xff] %vm2381, %v2427
      %v2430 = vld [vmem:[#allocation2 + $0x8] sm:$0xff]
      %2431 = vst.msk [vmem:[#allocation3 + $0xc0] sm:$0xff] %vm2381, %v2430
      %v2432 = vld [vmem:[#allocation2 + $0x8] sm:$0xff]
      %2434 = vrot.lane.b32.xlu0 %v2432, 127
      %v2435 = vpop.permute.xlu0 %2434
      %2437 = vst.msk [vmem:[#allocation3 + $0xf0] sm:$0xff] %vm2381, %v2435
      %v2438 = vld [vmem:[#allocation2 + $0x8] sm:$0xff]
      %2440 = vrot.lane.b32.xlu0 %v2438, 119
      %v2441 = vpop.permute.xlu0 %2440
      %2443 = vst.msk [vmem:[#allocation3 + $0x120] sm:$0xff] %vm2381, %v2441
      %v2444 = vld [vmem:[#allocation2 + $0x8] sm:$0xff]
      %2446 = vrot.lane.b32.xlu0 %v2444, 118
      %v2447 = vpop.permute.xlu0 %2446
      %2449 = vst.msk [vmem:[#allocation3 + $0x150] sm:$0xff] %vm2381, %v2447
      %v2450 = vld [vmem:[#allocation2 + $0x8] sm:$0xff]
      %2452 = vrot.lane.b32.xlu0 %v2450, 117
      %v2453 = vpop.permute.xlu0 %2452
      %2455 = vst.msk [vmem:[#allocation3 + $0x180] sm:$0xff] %vm2381, %v2453
      %v2456 = vld [vmem:[%s832] sm:$0xff]
      %v2457 = vld [vmem:[%s832 + $0x8] sm:$0xf]
      %v2458 = vld [vmem:[%s832 + $0xc] sm:$0xff]
      %v2459 = vld [vmem:[%s832 + $0x14] sm:$0xf]
      %v2460 = vld [vmem:[%s832 + $0x18] sm:$0xff]
      %v2461 = vld [vmem:[%s832 + $0x20] sm:$0xf]
      %v2462 = vld [vmem:[%s832 + $0x24] sm:$0xff]
      %v2463 = vld [vmem:[%s832 + $0x2c] sm:$0xf]
      %v2464 = vld [vmem:[%s837] sm:$0xff]
      %v2465 = vld [vmem:[%s837 + $0x8] sm:$0xff]
      %v2466 = vld [vmem:[%s837 + $0x10] sm:$0xff]
      %v2467 = vld [vmem:[%s837 + $0x18] sm:$0xff]
      %v2468 = vld [vmem:[#allocation3] sm:$0xff]
      %v2469 = vld [vmem:[#allocation3 + $0x18] sm:$0xff]
      %v2470 = vld [vmem:[#allocation3 + $0x30] sm:$0xff]
      %v2471 = vld [vmem:[#allocation3 + $0x48] sm:$0xff]
      %v2472 = vld [vmem:[#allocation3 + $0x60] sm:$0xff]
      %v2473 = vld [vmem:[#allocation3 + $0x78] sm:$0xff]
      %v2474 = vld [vmem:[#allocation3 + $0x90] sm:$0xff]
      %v2475 = vld [vmem:[#allocation3 + $0xa8] sm:$0xff]
      %v2476 = vld [vmem:[#allocation3 + $0xc0] sm:$0xff]
      %v2477 = vld [vmem:[#allocation3 + $0xd8] sm:$0xff]
      %v2478 = vld [vmem:[#allocation3 + $0xf0] sm:$0xff]
      %v2479 = vld [vmem:[#allocation3 + $0x108] sm:$0xff]
      %v2480 = vld [vmem:[#allocation3 + $0x120] sm:$0xff]
      %v2481 = vld [vmem:[#allocation3 + $0x138] sm:$0xff]
      %v2482 = vld [vmem:[#allocation3 + $0x150] sm:$0xff]
      %v2483 = vld [vmem:[#allocation3 + $0x168] sm:$0xff]
      %v2484 = vld [vmem:[#allocation3 + $0x180] sm:$0xff]
      %v2485 = vld [vmem:[#allocation3 + $0x198] sm:$0xff]
      %2487 = vset.pattern.permute.xlu0 0
      %2488 = vperm.xlu0 %2487, %v2464
      %v2489 = vpop.permute.xlu0 %2488
      %2492 = vset.pattern.permute.xlu0 0
      %2493 = vperm.xlu0 %2492, %v2465
      %v2494 = vpop.permute.xlu0 %2493
      %2497 = vset.pattern.permute.xlu0 0
      %2498 = vperm.xlu0 %2497, %v2466
      %v2499 = vpop.permute.xlu0 %2498
      %2502 = vset.pattern.permute.xlu0 0
      %2503 = vperm.xlu0 %2502, %v2467
      %v2504 = vpop.permute.xlu0 %2503
      %v2514 = vunpack.c.l.b16 %v2456
      %v2515 = vunpack.c.h.b16 %v2456
      %v2516 = vunpack.c.l.b16 %v2457
      %v2517 = vunpack.c.l.b16 %v2458
      %v2518 = vunpack.c.h.b16 %v2458
      %v2519 = vunpack.c.l.b16 %v2459
      %v2520 = vunpack.c.l.b16 %v2460
      %v2521 = vunpack.c.h.b16 %v2460
      %v2522 = vunpack.c.l.b16 %v2461
      %v2523 = vunpack.c.l.b16 %v2462
      %v2524 = vunpack.c.h.b16 %v2462
      %v2525 = vunpack.c.l.b16 %v2463
      %v2526 = vpack.c.b16 %v2517, %v2514
      %v2527 = vpack.c.b16 %v2518, %v2515
      %v2528 = vpack.c.b16 %v2519, %v2516
      %v2529 = vpack.c.b16 %v2523, %v2520
      %v2530 = vpack.c.b16 %v2524, %v2521
      %v2531 = vpack.c.b16 %v2525, %v2522
      %v2537 = vsel %vm1234, %v2528, 0
      %v2540 = vsel %vm1234, %v2531, 0
      %2542 = vmatprep.subr.bf16.mxu0 0
      %2543 = vmatpush1.bf16.msra.mxu0 %v2468
      %2544 = vmatprep.subr.bf16.mxu0 0
      %2545 = vmatpush1.bf16.msra.mxu0 %v2469
      %2546 = vmatprep.subr.bf16.mxu0 0
      %2547 = vmatpush1.bf16.msra.mxu0 %v2470
      %2548 = vmatprep.subr.bf16.mxu0 0
      %2549 = vmatpush1.bf16.msra.mxu0 %v2471
      %2550 = vmatprep.subr.bf16.mxu0 0
      %2551 = vmatpush1.bf16.msra.mxu0 %v2472
      %2552 = vmatprep.subr.bf16.mxu0 0
      %2553 = vmatpush1.bf16.msra.mxu0 %v2473
      %2554 = vmatprep.subr.bf16.mxu0 0
      %2555 = vmatpush1.bf16.msra.mxu0 %v2474
      %2556 = vmatprep.subr.bf16.mxu0 0
      %2557 = vmatpush1.bf16.msra.mxu0 %v2475
      %2558 = vmatprep.subr.bf16.mxu0 0
      %2559 = vmatpush1.bf16.msra.mxu0 %v2476
      %2560 = vmatprep.subr.bf16.mxu0 0
      %2561 = vmatpush1.bf16.msra.mxu0 %v2477
      %2562 = vmatprep.subr.bf16.mxu0 0
      %2563 = vmatpush1.bf16.msra.mxu0 %v2478
      %2564 = vmatprep.subr.bf16.mxu0 0
      %2565 = vmatpush1.bf16.msra.mxu0 %v2479
      %2566 = vmatprep.subr.bf16.mxu0 0
      %2567 = vmatpush1.bf16.msra.mxu0 %v2480
      %2568 = vmatprep.subr.bf16.mxu0 0
      %2569 = vmatpush1.bf16.msra.mxu0 %v2481
      %2570 = vmatprep.subr.bf16.mxu0 0
      %2571 = vmatpush1.bf16.msra.mxu0 %v2482
      %2572 = vmatprep.subr.bf16.mxu0 0
      %2573 = vmatpush1.bf16.msra.mxu0 %v2483
      %2574 = vmatprep.mubr.bf16.mxu0 %v2527
      %2575 = vmatmul.mubr.bf16.gmra.mrb[0].mxu0 %v2526
      %v2576 = vpop.f32.mrb[0].mxu0
      %v2577 = vadd.f32 %v2489, %v2576
      %v2578 = vpop.f32.mrb[0].mxu0
      %v2579 = vpop.f32.mrb[0].mxu0
      %v2580 = vadd.f32 %v2494, %v2579
      %v2581 = vpop.f32.mrb[0].mxu0
      %2582 = vmatprep.mubr.bf16.mxu0 %v2530
      %2583 = vmatmul.mubr.bf16.gmra.mrb[0].mxu0 %v2529
      %v2584 = vpop.f32.mrb[0].mxu0
      %v2585 = vadd.f32 %v2499, %v2584
      %v2586 = vpop.f32.mrb[0].mxu0
      %v2587 = vpop.f32.mrb[0].mxu0
      %v2588 = vadd.f32 %v2504, %v2587
      %v2589 = vpop.f32.mrb[0].mxu0
      %2590 = vdwg.mxu0
      %2591 = vmatprep.subr.bf16.mxu0 0
      %2592 = vmatpush1.bf16.msra.mxu0 %v2484
      %2593 = vmatprep.subr.bf16.mxu0 0
      %2594 = vmatpush1.bf16.msra.mxu0 %v2485
      %2595 = vmatprep.subr.bf16.mxu0 0
      %2596 = vmatpush1.bf16.msra.mxu0 0
      %2597 = vmatprep.subr.bf16.mxu0 0
      %2598 = vmatpush1.bf16.msra.mxu0 0
      %2599 = vmatprep.subr.bf16.mxu0 0
      %2600 = vmatpush1.bf16.msra.mxu0 0
      %2601 = vmatprep.subr.bf16.mxu0 0
      %2602 = vmatpush1.bf16.msra.mxu0 0
      %2603 = vmatprep.subr.bf16.mxu0 0
      %2604 = vmatpush1.bf16.msra.mxu0 0
      %2605 = vmatprep.subr.bf16.mxu0 0
      %2606 = vmatpush1.bf16.msra.mxu0 0
      %2607 = vmatprep.subr.bf16.mxu0 0
      %2608 = vmatpush1.bf16.msra.mxu0 0
      %2609 = vmatprep.subr.bf16.mxu0 0
      %2610 = vmatpush1.bf16.msra.mxu0 0
      %2611 = vmatprep.subr.bf16.mxu0 0
      %2612 = vmatpush1.bf16.msra.mxu0 0
      %2613 = vmatprep.subr.bf16.mxu0 0
      %2614 = vmatpush1.bf16.msra.mxu0 0
      %2615 = vmatprep.subr.bf16.mxu0 0
      %2616 = vmatpush1.bf16.msra.mxu0 0
      %2617 = vmatprep.subr.bf16.mxu0 0
      %2618 = vmatpush1.bf16.msra.mxu0 0
      %2619 = vmatprep.subr.bf16.mxu0 0
      %2620 = vmatpush1.bf16.msra.mxu0 0
      %2621 = vmatprep.subr.bf16.mxu0 0
      %2622 = vmatpush1.bf16.msra.mxu0 0
      %2623 = vmatprep.mubr.bf16.mxu0 0
      %2624 = vmatmul.mubr.bf16.gmra.mrb[0].mxu0 %v2537
      %v2625 = vpop.f32.mrb[0].mxu0
      %v2626 = vadd.f32 %v2577, %v2625
      %v2627 = vpop.f32.mrb[0].mxu0
      %v2628 = vpop.f32.mrb[0].mxu0
      %v2629 = vadd.f32 %v2580, %v2628
      %v2630 = vpop.f32.mrb[0].mxu0
      %2631 = vmatprep.mubr.bf16.mxu0 0
      %2632 = vmatmul.mubr.bf16.gmra.mrb[0].mxu0 %v2540
      %v2633 = vpop.f32.mrb[0].mxu0
      %v2634 = vadd.f32 %v2585, %v2633
      %v2635 = vpop.f32.mrb[0].mxu0
      %v2636 = vpop.f32.mrb[0].mxu0
      %v2637 = vadd.f32 %v2588, %v2636
      %v2638 = vpop.f32.mrb[0].mxu0
      %2639 = vdwg.mxu0
      %v2640 = vlaneseq
      %v2641 = vshrl.u32 %v2640, 7
      %v2642 = vsub.s32 3, %v2641
      %v2643 = vrot.slane %v941, %v2642
      %v2644 = vmul.f32 %v2626, %v2643
      %v2645 = vmul.f32 %v2629, %v2643
      %v2646 = vmul.f32 %v2634, %v2643
      %v2647 = vmul.f32 %v2637, %v2643
      %v2648 = vsel %vm2381, %v2644, 0.0
      %2649 = vadd.xlane.f32.xlu0 %v2648
      %v2650 = vpop.xlane.xlu0 %2649
      %v2651 = vsel %vm2381, %v2645, 0.0
      %2652 = vadd.xlane.f32.xlu0 %v2651
      %v2653 = vpop.xlane.xlu0 %2652
      %v2654 = vsel %vm2381, %v2646, 0.0
      %2655 = vadd.xlane.f32.xlu0 %v2654
      %v2656 = vpop.xlane.xlu0 %2655
      %v2657 = vsel %vm2381, %v2647, 0.0
      %2658 = vadd.xlane.f32.xlu0 %v2657
      %v2659 = vpop.xlane.xlu0 %2658
      %v2660 = vmul.f32 %v2626, %v2626
      %v2661 = vmul.f32 %v2629, %v2629
      %v2662 = vmul.f32 %v2634, %v2634
      %v2663 = vmul.f32 %v2637, %v2637
      %v2664 = vmul.f32 %v2660, %v2643
      %v2665 = vmul.f32 %v2661, %v2643
      %v2666 = vmul.f32 %v2662, %v2643
      %v2667 = vmul.f32 %v2663, %v2643
      %v2668 = vsel %vm2381, %v2664, 0.0
      %2669 = vadd.xlane.f32.xlu0 %v2668
      %v2670 = vpop.xlane.xlu0 %2669
      %v2671 = vsel %vm2381, %v2665, 0.0
      %2672 = vadd.xlane.f32.xlu0 %v2671
      %v2673 = vpop.xlane.xlu0 %2672
      %v2674 = vsel %vm2381, %v2666, 0.0
      %2675 = vadd.xlane.f32.xlu0 %v2674
      %v2676 = vpop.xlane.xlu0 %2675
      %v2677 = vsel %vm2381, %v2667, 0.0
      %2678 = vadd.xlane.f32.xlu0 %v2677
      %v2679 = vpop.xlane.xlu0 %2678
      %v2680 = vmul.f32 %v2650, 0.0625
      %v2681 = vmul.f32 %v2653, 0.0625
      %v2682 = vmul.f32 %v2656, 0.0625
      %v2683 = vmul.f32 %v2659, 0.0625
      %v2684 = vmul.f32 %v2670, 0.0625
      %v2685 = vmul.f32 %v2673, 0.0625
      %v2686 = vmul.f32 %v2676, 0.0625
      %v2687 = vmul.f32 %v2679, 0.0625
      %v2688 = vmul.f32 %v2680, %v2680
      %v2689 = vmul.f32 %v2681, %v2681
      %v2690 = vmul.f32 %v2682, %v2682
      %v2691 = vmul.f32 %v2683, %v2683
      %v2692 = vsub.f32 %v2684, %v2688
      %v2693 = vsub.f32 %v2685, %v2689
      %v2694 = vsub.f32 %v2686, %v2690
      %v2695 = vsub.f32 %v2687, %v2691
      %v2696 = vmax.f32 %v2692, 0.0
      %v2697 = vmax.f32 %v2693, 0.0
      %v2698 = vmax.f32 %v2694, 0.0
      %v2699 = vmax.f32 %v2695, 0.0
      %v2700 = vadd.f32 %v2696, 1e-05
      %v2701 = vadd.f32 %v2697, 1e-05
      %v2702 = vadd.f32 %v2698, 1e-05
      %v2703 = vadd.f32 %v2699, 1e-05
      %v2704 = vrsqrt.pop %v2700
      %v2705 = vrsqrt.pop %v2701
      %v2706 = vrsqrt.pop %v2702
      %v2707 = vrsqrt.pop %v2703
      %v2708 = vmul.f32 %v2704, %v2464
      %v2709 = vmul.f32 %v2705, %v2465
      %v2710 = vmul.f32 %v2706, %v2466
      %v2711 = vmul.f32 %v2707, %v2467
      %v2712 = vmul.f32 %v2680, %v2708
      %v2713 = vmul.f32 %v2681, %v2709
      %v2714 = vmul.f32 %v2682, %v2710
      %v2715 = vmul.f32 %v2683, %v2711
      %2720 = vrot.lane.b32.xlu0 %v2712, 1
      %v2721 = vpop.permute.xlu0 %2720
      %2722 = vrot.lane.b32.xlu0 %v2713, 1
      %v2723 = vpop.permute.xlu0 %2722
      %2724 = vrot.lane.b32.xlu0 %v2714, 1
      %v2725 = vpop.permute.xlu0 %2724
      %2726 = vrot.lane.b32.xlu0 %v2715, 1
      %v2727 = vpop.permute.xlu0 %2726
      %v2732 = vsub.f32 %v2464, %v2721
      %v2733 = vsub.f32 %v2465, %v2723
      %v2734 = vsub.f32 %v2466, %v2725
      %v2735 = vsub.f32 %v2467, %v2727
      %2737 = vset.pattern.permute.xlu0 1
      %2738 = vperm.xlu0 %2737, %v2708
      %v2739 = vpop.permute.xlu0 %2738
      %2742 = vset.pattern.permute.xlu0 1
      %2743 = vperm.xlu0 %2742, %v2709
      %v2744 = vpop.permute.xlu0 %2743
      %2747 = vset.pattern.permute.xlu0 1
      %2748 = vperm.xlu0 %2747, %v2710
      %v2749 = vpop.permute.xlu0 %2748
      %2752 = vset.pattern.permute.xlu0 1
      %2753 = vperm.xlu0 %2752, %v2711
      %v2754 = vpop.permute.xlu0 %2753
      %v2756 = vmul.f32 %v2626, %v2739
      %v2757 = vmul.f32 %v2629, %v2744
      %v2758 = vmul.f32 %v2634, %v2749
      %v2759 = vmul.f32 %v2637, %v2754
      %2761 = vset.pattern.permute.xlu0 2
      %2762 = vperm.xlu0 %2761, %v2732
      %v2763 = vpop.permute.xlu0 %2762
      %2766 = vset.pattern.permute.xlu0 2
      %2767 = vperm.xlu0 %2766, %v2733
      %v2768 = vpop.permute.xlu0 %2767
      %2771 = vset.pattern.permute.xlu0 2
      %2772 = vperm.xlu0 %2771, %v2734
      %v2773 = vpop.permute.xlu0 %2772
      %2776 = vset.pattern.permute.xlu0 2
      %2777 = vperm.xlu0 %2776, %v2735
      %v2778 = vpop.permute.xlu0 %2777
      %v2780 = vadd.f32 %v2756, %v2763
      %v2781 = vadd.f32 %v2757, %v2768
      %v2782 = vadd.f32 %v2758, %v2773
      %v2783 = vadd.f32 %v2759, %v2778
      %v2784 = vmax.f32 %v2780, 0.0
      %v2785 = vmax.f32 %v2781, 0.0
      %v2786 = vmax.f32 %v2782, 0.0
      %v2787 = vmax.f32 %v2783, 0.0
      %v2788 = vpack.c.bf16 %v2785, %v2784
      %v2789 = vpack.c.bf16 %v2787, %v2786
      %v2790 = vld [vmem:[%s3] sm:$0xf]
      %v2791 = vld [vmem:[%s3 + $0x4] sm:$0xf]
      %v2792 = vld [vmem:[%s3 + $0x8] sm:$0xf]
      %v2793 = vld [vmem:[%s3 + $0xc] sm:$0xf]
      %v2794 = vld [vmem:[%s3 + $0x10] sm:$0xf]
      %v2795 = vld [vmem:[%s3 + $0x14] sm:$0xf]
      %v2796 = vld [vmem:[%s3 + $0x18] sm:$0xf]
      %v2797 = vld [vmem:[%s3 + $0x1c] sm:$0xf]
      %v2798 = vld [vmem:[%s3 + $0x20] sm:$0xf]
      %v2799 = vld [vmem:[%s3 + $0x24] sm:$0xf]
      %v2800 = vld [vmem:[%s3 + $0x28] sm:$0xf]
      %v2801 = vld [vmem:[%s3 + $0x2c] sm:$0xf]
      %v2802 = vld [vmem:[%s3 + $0x30] sm:$0x3]
      %v2816 = vunpack.c.l.b16 %v2790
      %v2817 = vunpack.c.l.b16 %v2791
      %v2818 = vunpack.c.l.b16 %v2792
      %v2819 = vunpack.c.l.b16 %v2793
      %v2820 = vunpack.c.l.b16 %v2794
      %v2821 = vunpack.c.l.b16 %v2795
      %v2822 = vunpack.c.l.b16 %v2796
      %v2823 = vunpack.c.l.b16 %v2797
      %v2824 = vunpack.c.l.b16 %v2798
      %v2825 = vunpack.c.l.b16 %v2799
      %v2826 = vunpack.c.l.b16 %v2800
      %v2827 = vunpack.c.l.b16 %v2801
      %v2828 = vunpack.c.l.b16 %v2802
      %v2829 = vpack.c.b16 %v2817, %v2816
      %v2830 = vpack.c.b16 %v2819, %v2818
      %v2831 = vpack.c.b16 %v2821, %v2820
      %v2832 = vpack.c.b16 %v2823, %v2822
      %v2833 = vpack.c.b16 %v2825, %v2824
      %v2834 = vpack.c.b16 %v2827, %v2826
      %v2835 = vpack.c.b16 %v2828, %v2828
      %v2843 = vsel %vm2381, %v2788, 0
      %v2846 = vsel %vm2381, %v2789, 0
      %v2849 = vsel %vm2294, %v2835, 0
      %2851 = vmatprep.subr.bf16.mxu0 0
      %2852 = vmatpush1.bf16.msra.mxu0 %v2829
      %2853 = vmatprep.subr.bf16.mxu0 0
      %2854 = vmatpush1.bf16.msra.mxu0 %v2830
      %2855 = vmatprep.subr.bf16.mxu0 0
      %2856 = vmatpush1.bf16.msra.mxu0 %v2831
      %2857 = vmatprep.subr.bf16.mxu0 0
      %2858 = vmatpush1.bf16.msra.mxu0 %v2832
      %2859 = vmatprep.subr.bf16.mxu0 0
      %2860 = vmatpush1.bf16.msra.mxu0 %v2833
      %2861 = vmatprep.subr.bf16.mxu0 0
      %2862 = vmatpush1.bf16.msra.mxu0 %v2834
      %2863 = vmatprep.subr.bf16.mxu0 0
      %2864 = vmatpush1.bf16.msra.mxu0 %v2849
      %2865 = vmatprep.subr.bf16.mxu0 0
      %2866 = vmatpush1.bf16.msra.mxu0 0
      %2867 = vmatprep.subr.bf16.mxu0 0
      %2868 = vmatpush1.bf16.msra.mxu0 0
      %2869 = vmatprep.subr.bf16.mxu0 0
      %2870 = vmatpush1.bf16.msra.mxu0 0
      %2871 = vmatprep.subr.bf16.mxu0 0
      %2872 = vmatpush1.bf16.msra.mxu0 0
      %2873 = vmatprep.subr.bf16.mxu0 0
      %2874 = vmatpush1.bf16.msra.mxu0 0
      %2875 = vmatprep.subr.bf16.mxu0 0
      %2876 = vmatpush1.bf16.msra.mxu0 0
      %2877 = vmatprep.subr.bf16.mxu0 0
      %2878 = vmatpush1.bf16.msra.mxu0 0
      %2879 = vmatprep.subr.bf16.mxu0 0
      %2880 = vmatpush1.bf16.msra.mxu0 0
      %2881 = vmatprep.subr.bf16.mxu0 0
      %2882 = vmatpush1.bf16.msra.mxu0 0
      %2883 = vmatprep.mubr.bf16.mxu0 0
      %2884 = vmatmul.mubr.bf16.gmra.mrb[0].mxu0 %v2843
      %v2885 = vpop.f32.mrb[0].mxu0
      %v2886 = vadd.f32 0.0, %v2885
      %v2887 = vpop.f32.mrb[0].mxu0
      %v2888 = vpop.f32.mrb[0].mxu0
      %v2889 = vadd.f32 0.0, %v2888
      %v2890 = vpop.f32.mrb[0].mxu0
      %2891 = vmatprep.mubr.bf16.mxu0 0
      %2892 = vmatmul.mubr.bf16.gmra.mrb[0].mxu0 %v2846
      %v2893 = vpop.f32.mrb[0].mxu0
      %v2894 = vadd.f32 0.0, %v2893
      %v2895 = vpop.f32.mrb[0].mxu0
      %v2896 = vpop.f32.mrb[0].mxu0
      %v2897 = vadd.f32 0.0, %v2896
      %v2898 = vpop.f32.mrb[0].mxu0
      %2899 = vdwg.mxu0
      %v2900 = vpack.c.bf16 %v2889, %v2886
      %v2901 = vpack.c.bf16 %v2897, %v2894
      %v2902 = vld [vmem:[%s4] sm:$0xf]
      %v2903 = vld [vmem:[%s4 + $0x4] sm:$0xf]
      %v2904 = vld [vmem:[%s4 + $0x8] sm:$0xf]
      %v2905 = vld [vmem:[%s4 + $0xc] sm:$0xf]
      %v2906 = vld [vmem:[%s4 + $0x10] sm:$0x3]
      %v2912 = vunpack.c.l.b16 %v2902
      %v2913 = vunpack.c.l.b16 %v2903
      %v2914 = vunpack.c.l.b16 %v2904
      %v2915 = vunpack.c.l.b16 %v2905
      %v2916 = vunpack.c.l.b16 %v2906
      %v2917 = vpack.c.b16 %v2913, %v2912
      %v2918 = vpack.c.b16 %v2915, %v2914
      %v2919 = vpack.c.b16 %v2916, %v2916
      %vm2922 = vcmask 293888
      %v2924 = vsel %vm2922, %v2900, 0
      %v2927 = vsel %vm2922, %v2901, 0
      %v2930 = vsel %vm2294, %v2919, 0
      %2932 = vmatprep.subr.bf16.mxu0 0
      %2933 = vmatpush1.bf16.msra.mxu0 %v2917
      %2934 = vmatprep.subr.bf16.mxu0 0
      %2935 = vmatpush1.bf16.msra.mxu0 %v2918
      %2936 = vmatprep.subr.bf16.mxu0 0
      %2937 = vmatpush1.bf16.msra.mxu0 %v2930
      %2938 = vmatprep.subr.bf16.mxu0 0
      %2939 = vmatpush1.bf16.msra.mxu0 0
      %2940 = vmatprep.subr.bf16.mxu0 0
      %2941 = vmatpush1.bf16.msra.mxu0 0
      %2942 = vmatprep.subr.bf16.mxu0 0
      %2943 = vmatpush1.bf16.msra.mxu0 0
      %2944 = vmatprep.subr.bf16.mxu0 0
      %2945 = vmatpush1.bf16.msra.mxu0 0
      %2946 = vmatprep.subr.bf16.mxu0 0
      %2947 = vmatpush1.bf16.msra.mxu0 0
      %2948 = vmatprep.subr.bf16.mxu0 0
      %2949 = vmatpush1.bf16.msra.mxu0 0
      %2950 = vmatprep.subr.bf16.mxu0 0
      %2951 = vmatpush1.bf16.msra.mxu0 0
      %2952 = vmatprep.subr.bf16.mxu0 0
      %2953 = vmatpush1.bf16.msra.mxu0 0
      %2954 = vmatprep.subr.bf16.mxu0 0
      %2955 = vmatpush1.bf16.msra.mxu0 0
      %2956 = vmatprep.subr.bf16.mxu0 0
      %2957 = vmatpush1.bf16.msra.mxu0 0
      %2958 = vmatprep.subr.bf16.mxu0 0
      %2959 = vmatpush1.bf16.msra.mxu0 0
      %2960 = vmatprep.subr.bf16.mxu0 0
      %2961 = vmatpush1.bf16.msra.mxu0 0
      %2962 = vmatprep.subr.bf16.mxu0 0
      %2963 = vmatpush1.bf16.msra.mxu0 0
      %2964 = vmatprep.mubr.bf16.mxu0 0
      %2965 = vmatmul.mubr.bf16.gmra.mrb[0].mxu0 %v2924
      %v2966 = vpop.f32.mrb[0].mxu0
      %v2967 = vadd.f32 0.0, %v2966
      %v2968 = vpop.f32.mrb[0].mxu0
      %v2969 = vpop.f32.mrb[0].mxu0
      %v2970 = vadd.f32 0.0, %v2969
      %v2971 = vpop.f32.mrb[0].mxu0
      %2972 = vmatprep.mubr.bf16.mxu0 0
      %2973 = vmatmul.mubr.bf16.gmra.mrb[0].mxu0 %v2927
      %v2974 = vpop.f32.mrb[0].mxu0
      %v2975 = vadd.f32 0.0, %v2974
      %v2976 = vpop.f32.mrb[0].mxu0
      %v2977 = vpop.f32.mrb[0].mxu0
      %v2978 = vadd.f32 0.0, %v2977
      %v2979 = vpop.f32.mrb[0].mxu0
      %2980 = vdwg.mxu0
      %v2981 = vpack.c.bf16 %v2970, %v2967
      %v2982 = vpack.c.bf16 %v2978, %v2975
      %2983 = vst.msk [vmem:[#allocation2 + $0x8] sm:$0xff] %vm2381, %v2981
      %2984 = vst.msk [vmem:[#allocation2 + $0x28] sm:$0xff] %vm2381, %v2982
      %v2985 = vld [vmem:[#allocation2] sm:$0xff]
      %v2986 = vld [vmem:[#allocation2 + $0x8] sm:$0xff]
      %v2987 = vld [vmem:[#allocation2 + $0x20] sm:$0xff]
      %v2988 = vld [vmem:[#allocation2 + $0x28] sm:$0xff]
      %2993 = vrot.lane.b32.xlu0 %v2985, 11
      %v2994 = vpop.permute.xlu0 %2993
      %2995 = vrot.lane.b32.xlu0 %v2986, 11
      %v2996 = vpop.permute.xlu0 %2995
      %2997 = vrot.lane.b32.xlu0 %v2987, 11
      %v2998 = vpop.permute.xlu0 %2997
      %2999 = vrot.lane.b32.xlu0 %v2988, 11
      %v3000 = vpop.permute.xlu0 %2999
      %v3001 = vsel %vm2391, %v2994, %v2996
      %v3002 = vsel %vm2391, %v2998, %v3000
      %3005 = vst.msk [vmem:[#allocation3] sm:$0xff] %vm2381, %v3001
      %3006 = vst.msk [vmem:[#allocation3 + $0x18] sm:$0xff] %vm2381, %v3002
      %v3007 = vld [vmem:[#allocation2] sm:$0xff]
      %v3008 = vld [vmem:[#allocation2 + $0x8] sm:$0xff]
      %v3009 = vld [vmem:[#allocation2 + $0x20] sm:$0xff]
      %v3010 = vld [vmem:[#allocation2 + $0x28] sm:$0xff]
      %3015 = vrot.lane.b32.xlu0 %v3007, 10
      %v3016 = vpop.permute.xlu0 %3015
      %3017 = vrot.lane.b32.xlu0 %v3008, 10
      %v3018 = vpop.permute.xlu0 %3017
      %3019 = vrot.lane.b32.xlu0 %v3009, 10
      %v3020 = vpop.permute.xlu0 %3019
      %3021 = vrot.lane.b32.xlu0 %v3010, 10
      %v3022 = vpop.permute.xlu0 %3021
      %v3023 = vsel %vm2403, %v3016, %v3018
      %v3024 = vsel %vm2403, %v3020, %v3022
      %3027 = vst.msk [vmem:[#allocation3 + $0x30] sm:$0xff] %vm2381, %v3023
      %3028 = vst.msk [vmem:[#allocation3 + $0x48] sm:$0xff] %vm2381, %v3024
      %v3029 = vld [vmem:[#allocation2] sm:$0xff]
      %v3030 = vld [vmem:[#allocation2 + $0x8] sm:$0xff]
      %v3031 = vld [vmem:[#allocation2 + $0x20] sm:$0xff]
      %v3032 = vld [vmem:[#allocation2 + $0x28] sm:$0xff]
      %3037 = vrot.lane.b32.xlu0 %v3029, 9
      %v3038 = vpop.permute.xlu0 %3037
      %3039 = vrot.lane.b32.xlu0 %v3030, 9
      %v3040 = vpop.permute.xlu0 %3039
      %3041 = vrot.lane.b32.xlu0 %v3031, 9
      %v3042 = vpop.permute.xlu0 %3041
      %3043 = vrot.lane.b32.xlu0 %v3032, 9
      %v3044 = vpop.permute.xlu0 %3043
      %v3045 = vsel %vm2415, %v3038, %v3040
      %v3046 = vsel %vm2415, %v3042, %v3044
      %3049 = vst.msk [vmem:[#allocation3 + $0x60] sm:$0xff] %vm2381, %v3045
      %3050 = vst.msk [vmem:[#allocation3 + $0x78] sm:$0xff] %vm2381, %v3046
      %v3051 = vld [vmem:[#allocation2] sm:$0xff]
      %v3052 = vld [vmem:[#allocation2 + $0x8] sm:$0xff]
      %v3053 = vld [vmem:[#allocation2 + $0x20] sm:$0xff]
      %v3054 = vld [vmem:[#allocation2 + $0x28] sm:$0xff]
      %3059 = vrot.lane.b32.xlu0 %v3051, 1
      %v3060 = vpop.permute.xlu0 %3059
      %3061 = vrot.lane.b32.xlu0 %v3052, 1
      %v3062 = vpop.permute.xlu0 %3061
      %3063 = vrot.lane.b32.xlu0 %v3053, 1
      %v3064 = vpop.permute.xlu0 %3063
      %3065 = vrot.lane.b32.xlu0 %v3054, 1
      %v3066 = vpop.permute.xlu0 %3065
      %v3067 = vsel %vm1049, %v3060, %v3062
      %v3068 = vsel %vm1049, %v3064, %v3066
      %3071 = vst.msk [vmem:[#allocation3 + $0x90] sm:$0xff] %vm2381, %v3067
      %3072 = vst.msk [vmem:[#allocation3 + $0xa8] sm:$0xff] %vm2381, %v3068
      %v3073 = vld [vmem:[#allocation2 + $0x8] sm:$0xff]
      %v3074 = vld [vmem:[#allocation2 + $0x28] sm:$0xff]
      %3075 = vst.msk [vmem:[#allocation3 + $0xc0] sm:$0xff] %vm2381, %v3073
      %3076 = vst.msk [vmem:[#allocation3 + $0xd8] sm:$0xff] %vm2381, %v3074
      %v3077 = vld [vmem:[#allocation2 + $0x8] sm:$0xff]
      %v3078 = vld [vmem:[#allocation2 + $0x28] sm:$0xff]
      %3081 = vrot.lane.b32.xlu0 %v3077, 127
      %v3082 = vpop.permute.xlu0 %3081
      %3083 = vrot.lane.b32.xlu0 %v3078, 127
      %v3084 = vpop.permute.xlu0 %3083
      %3087 = vst.msk [vmem:[#allocation3 + $0xf0] sm:$0xff] %vm2381, %v3082
      %3088 = vst.msk [vmem:[#allocation3 + $0x108] sm:$0xff] %vm2381, %v3084
      %v3089 = vld [vmem:[#allocation2 + $0x8] sm:$0xff]
      %v3090 = vld [vmem:[#allocation2 + $0x28] sm:$0xff]
      %3093 = vrot.lane.b32.xlu0 %v3089, 119
      %v3094 = vpop.permute.xlu0 %3093
      %3095 = vrot.lane.b32.xlu0 %v3090, 119
      %v3096 = vpop.permute.xlu0 %3095
      %3099 = vst.msk [vmem:[#allocation3 + $0x120] sm:$0xff] %vm2381, %v3094
      %3100 = vst.msk [vmem:[#allocation3 + $0x138] sm:$0xff] %vm2381, %v3096
      %v3101 = vld [vmem:[#allocation2 + $0x8] sm:$0xff]
      %v3102 = vld [vmem:[#allocation2 + $0x28] sm:$0xff]
      %3105 = vrot.lane.b32.xlu0 %v3101, 118
      %v3106 = vpop.permute.xlu0 %3105
      %3107 = vrot.lane.b32.xlu0 %v3102, 118
      %v3108 = vpop.permute.xlu0 %3107
      %3111 = vst.msk [vmem:[#allocation3 + $0x150] sm:$0xff] %vm2381, %v3106
      %3112 = vst.msk [vmem:[#allocation3 + $0x168] sm:$0xff] %vm2381, %v3108
      %v3113 = vld [vmem:[#allocation2 + $0x8] sm:$0xff]
      %v3114 = vld [vmem:[#allocation2 + $0x28] sm:$0xff]
      %3117 = vrot.lane.b32.xlu0 %v3113, 117
      %v3118 = vpop.permute.xlu0 %3117
      %3119 = vrot.lane.b32.xlu0 %v3114, 117
      %v3120 = vpop.permute.xlu0 %3119
      %3123 = vst.msk [vmem:[#allocation3 + $0x180] sm:$0xff] %vm2381, %v3118
      %3124 = vst.msk [vmem:[#allocation3 + $0x198] sm:$0xff] %vm2381, %v3120
      %v3125 = vld [vmem:[%s842] sm:$0xff]
      %v3126 = vld [vmem:[%s842 + $0x8] sm:$0xf]
      %v3127 = vld [vmem:[%s842 + $0xc] sm:$0xff]
      %v3128 = vld [vmem:[%s842 + $0x14] sm:$0xf]
      %v3129 = vld [vmem:[%s847] sm:$0xff]
      %v3130 = vld [vmem:[%s847 + $0x8] sm:$0xff]
      %v3131 = vld [vmem:[#allocation3] sm:$0xff]
      %v3132 = vld [vmem:[#allocation3 + $0x18] sm:$0xff]
      %v3133 = vld [vmem:[#allocation3 + $0x30] sm:$0xff]
      %v3134 = vld [vmem:[#allocation3 + $0x48] sm:$0xff]
      %v3135 = vld [vmem:[#allocation3 + $0x60] sm:$0xff]
      %v3136 = vld [vmem:[#allocation3 + $0x78] sm:$0xff]
      %v3137 = vld [vmem:[#allocation3 + $0x90] sm:$0xff]
      %v3138 = vld [vmem:[#allocation3 + $0xa8] sm:$0xff]
      %v3139 = vld [vmem:[#allocation3 + $0xc0] sm:$0xff]
      %v3140 = vld [vmem:[#allocation3 + $0xd8] sm:$0xff]
      %v3141 = vld [vmem:[#allocation3 + $0xf0] sm:$0xff]
      %v3142 = vld [vmem:[#allocation3 + $0x108] sm:$0xff]
      %v3143 = vld [vmem:[#allocation3 + $0x120] sm:$0xff]
      %v3144 = vld [vmem:[#allocation3 + $0x138] sm:$0xff]
      %v3145 = vld [vmem:[#allocation3 + $0x150] sm:$0xff]
      %v3146 = vld [vmem:[#allocation3 + $0x168] sm:$0xff]
      %v3147 = vld [vmem:[#allocation3 + $0x180] sm:$0xff]
      %v3148 = vld [vmem:[#allocation3 + $0x198] sm:$0xff]
      %3150 = vset.pattern.permute.xlu0 0
      %3151 = vperm.xlu0 %3150, %v3129
      %v3152 = vpop.permute.xlu0 %3151
      %3155 = vset.pattern.permute.xlu0 0
      %3156 = vperm.xlu0 %3155, %v3130
      %v3157 = vpop.permute.xlu0 %3156
      %v3163 = vunpack.c.l.b16 %v3125
      %v3164 = vunpack.c.h.b16 %v3125
      %v3165 = vunpack.c.l.b16 %v3126
      %v3166 = vunpack.c.l.b16 %v3127
      %v3167 = vunpack.c.h.b16 %v3127
      %v3168 = vunpack.c.l.b16 %v3128
      %v3169 = vpack.c.b16 %v3166, %v3163
      %v3170 = vpack.c.b16 %v3167, %v3164
      %v3171 = vpack.c.b16 %v3168, %v3165
      %v3175 = vsel %vm1234, %v3171, 0
      %3177 = vmatprep.subr.bf16.mxu0 0
      %3178 = vmatpush1.bf16.msra.mxu0 %v3131
      %3179 = vmatprep.subr.bf16.mxu0 0
      %3180 = vmatpush1.bf16.msra.mxu0 %v3132
      %3181 = vmatprep.subr.bf16.mxu0 0
      %3182 = vmatpush1.bf16.msra.mxu0 %v3133
      %3183 = vmatprep.subr.bf16.mxu0 0
      %3184 = vmatpush1.bf16.msra.mxu0 %v3134
      %3185 = vmatprep.subr.bf16.mxu0 0
      %3186 = vmatpush1.bf16.msra.mxu0 %v3135
      %3187 = vmatprep.subr.bf16.mxu0 0
      %3188 = vmatpush1.bf16.msra.mxu0 %v3136
      %3189 = vmatprep.subr.bf16.mxu0 0
      %3190 = vmatpush1.bf16.msra.mxu0 %v3137
      %3191 = vmatprep.subr.bf16.mxu0 0
      %3192 = vmatpush1.bf16.msra.mxu0 %v3138
      %3193 = vmatprep.subr.bf16.mxu0 0
      %3194 = vmatpush1.bf16.msra.mxu0 %v3139
      %3195 = vmatprep.subr.bf16.mxu0 0
      %3196 = vmatpush1.bf16.msra.mxu0 %v3140
      %3197 = vmatprep.subr.bf16.mxu0 0
      %3198 = vmatpush1.bf16.msra.mxu0 %v3141
      %3199 = vmatprep.subr.bf16.mxu0 0
      %3200 = vmatpush1.bf16.msra.mxu0 %v3142
      %3201 = vmatprep.subr.bf16.mxu0 0
      %3202 = vmatpush1.bf16.msra.mxu0 %v3143
      %3203 = vmatprep.subr.bf16.mxu0 0
      %3204 = vmatpush1.bf16.msra.mxu0 %v3144
      %3205 = vmatprep.subr.bf16.mxu0 0
      %3206 = vmatpush1.bf16.msra.mxu0 %v3145
      %3207 = vmatprep.subr.bf16.mxu0 0
      %3208 = vmatpush1.bf16.msra.mxu0 %v3146
      %3209 = vmatprep.mubr.bf16.mxu0 %v3170
      %3210 = vmatmul.mubr.bf16.gmra.mrb[0].mxu0 %v3169
      %v3211 = vpop.f32.mrb[0].mxu0
      %v3212 = vadd.f32 %v3152, %v3211
      %v3213 = vpop.f32.mrb[0].mxu0
      %v3214 = vpop.f32.mrb[0].mxu0
      %v3215 = vadd.f32 %v3157, %v3214
      %v3216 = vpop.f32.mrb[0].mxu0
      %3217 = vdwg.mxu0
      %3218 = vmatprep.subr.bf16.mxu0 0
      %3219 = vmatpush1.bf16.msra.mxu0 %v3147
      %3220 = vmatprep.subr.bf16.mxu0 0
      %3221 = vmatpush1.bf16.msra.mxu0 %v3148
      %3222 = vmatprep.subr.bf16.mxu0 0
      %3223 = vmatpush1.bf16.msra.mxu0 0
      %3224 = vmatprep.subr.bf16.mxu0 0
      %3225 = vmatpush1.bf16.msra.mxu0 0
      %3226 = vmatprep.subr.bf16.mxu0 0
      %3227 = vmatpush1.bf16.msra.mxu0 0
      %3228 = vmatprep.subr.bf16.mxu0 0
      %3229 = vmatpush1.bf16.msra.mxu0 0
      %3230 = vmatprep.subr.bf16.mxu0 0
      %3231 = vmatpush1.bf16.msra.mxu0 0
      %3232 = vmatprep.subr.bf16.mxu0 0
      %3233 = vmatpush1.bf16.msra.mxu0 0
      %3234 = vmatprep.subr.bf16.mxu0 0
      %3235 = vmatpush1.bf16.msra.mxu0 0
      %3236 = vmatprep.subr.bf16.mxu0 0
      %3237 = vmatpush1.bf16.msra.mxu0 0
      %3238 = vmatprep.subr.bf16.mxu0 0
      %3239 = vmatpush1.bf16.msra.mxu0 0
      %3240 = vmatprep.subr.bf16.mxu0 0
      %3241 = vmatpush1.bf16.msra.mxu0 0
      %3242 = vmatprep.subr.bf16.mxu0 0
      %3243 = vmatpush1.bf16.msra.mxu0 0
      %3244 = vmatprep.subr.bf16.mxu0 0
      %3245 = vmatpush1.bf16.msra.mxu0 0
      %3246 = vmatprep.subr.bf16.mxu0 0
      %3247 = vmatpush1.bf16.msra.mxu0 0
      %3248 = vmatprep.subr.bf16.mxu0 0
      %3249 = vmatpush1.bf16.msra.mxu0 0
      %3250 = vmatprep.mubr.bf16.mxu0 0
      %3251 = vmatmul.mubr.bf16.gmra.mrb[0].mxu0 %v3175
      %v3252 = vpop.f32.mrb[0].mxu0
      %v3253 = vadd.f32 %v3212, %v3252
      %v3254 = vpop.f32.mrb[0].mxu0
      %v3255 = vpop.f32.mrb[0].mxu0
      %v3256 = vadd.f32 %v3215, %v3255
      %v3257 = vpop.f32.mrb[0].mxu0
      %3258 = vdwg.mxu0
      %v3259 = vlaneseq
      %v3260 = vshrl.u32 %v3259, 7
      %v3261 = vsub.s32 2, %v3260
      %v3262 = vrot.slane %v941, %v3261
      %v3263 = vmul.f32 %v3253, %v3262
      %v3264 = vmul.f32 %v3256, %v3262
      %v3265 = vsel %vm2381, %v3263, 0.0
      %3266 = vadd.xlane.f32.xlu0 %v3265
      %v3267 = vpop.xlane.xlu0 %3266
      %v3268 = vsel %vm2381, %v3264, 0.0
      %3269 = vadd.xlane.f32.xlu0 %v3268
      %v3270 = vpop.xlane.xlu0 %3269
      %v3271 = vmul.f32 %v3253, %v3253
      %v3272 = vmul.f32 %v3256, %v3256
      %v3273 = vmul.f32 %v3271, %v3262
      %v3274 = vmul.f32 %v3272, %v3262
      %v3275 = vsel %vm2381, %v3273, 0.0
      %3276 = vadd.xlane.f32.xlu0 %v3275
      %v3277 = vpop.xlane.xlu0 %3276
      %v3278 = vsel %vm2381, %v3274, 0.0
      %3279 = vadd.xlane.f32.xlu0 %v3278
      %v3280 = vpop.xlane.xlu0 %3279
      %v3281 = vmul.f32 %v3267, 0.015625
      %v3282 = vmul.f32 %v3270, 0.015625
      %v3283 = vmul.f32 %v3277, 0.015625
      %v3284 = vmul.f32 %v3280, 0.015625
      %v3285 = vmul.f32 %v3281, %v3281
      %v3286 = vmul.f32 %v3282, %v3282
      %v3287 = vsub.f32 %v3283, %v3285
      %v3288 = vsub.f32 %v3284, %v3286
      %v3289 = vmax.f32 %v3287, 0.0
      %v3290 = vmax.f32 %v3288, 0.0
      %v3291 = vadd.f32 %v3289, 1e-05
      %v3292 = vadd.f32 %v3290, 1e-05
      %v3293 = vrsqrt.pop %v3291
      %v3294 = vrsqrt.pop %v3292
      %v3295 = vmul.f32 %v3293, %v3129
      %v3296 = vmul.f32 %v3294, %v3130
      %v3297 = vmul.f32 %v3281, %v3295
      %v3298 = vmul.f32 %v3282, %v3296
      %3301 = vrot.lane.b32.xlu0 %v3297, 1
      %v3302 = vpop.permute.xlu0 %3301
      %3303 = vrot.lane.b32.xlu0 %v3298, 1
      %v3304 = vpop.permute.xlu0 %3303
      %v3307 = vsub.f32 %v3129, %v3302
      %v3308 = vsub.f32 %v3130, %v3304
      %3310 = vset.pattern.permute.xlu0 1
      %3311 = vperm.xlu0 %3310, %v3295
      %v3312 = vpop.permute.xlu0 %3311
      %3315 = vset.pattern.permute.xlu0 1
      %3316 = vperm.xlu0 %3315, %v3296
      %v3317 = vpop.permute.xlu0 %3316
      %v3319 = vmul.f32 %v3253, %v3312
      %v3320 = vmul.f32 %v3256, %v3317
      %3322 = vset.pattern.permute.xlu0 2
      %3323 = vperm.xlu0 %3322, %v3307
      %v3324 = vpop.permute.xlu0 %3323
      %3327 = vset.pattern.permute.xlu0 2
      %3328 = vperm.xlu0 %3327, %v3308
      %v3329 = vpop.permute.xlu0 %3328
      %v3331 = vadd.f32 %v3319, %v3324
      %v3332 = vadd.f32 %v3320, %v3329
      %v3333 = vmax.f32 %v3331, 0.0
      %v3334 = vmax.f32 %v3332, 0.0
      %v3335 = vmul.f32 %v3333, %v3262
      %v3336 = vmul.f32 %v3334, %v3262
      %v3337 = vpack.c.bf16 %v3336, %v3335
      %v3338 = vld [vmem:[%s5] sm:$0xff]
      %v3339 = vld [vmem:[%s5 + $0x8] sm:$0xf]
      %v3340 = vld [vmem:[%s5 + $0xc] sm:$0xff]
      %v3341 = vld [vmem:[%s5 + $0x14] sm:$0xf]
      %v3342 = vld [vmem:[%s5 + $0x18] sm:$0xff]
      %v3343 = vld [vmem:[%s5 + $0x20] sm:$0xf]
      %v3344 = vld [vmem:[%s5 + $0x24] sm:$0xff]
      %v3345 = vld [vmem:[%s5 + $0x2c] sm:$0xf]
      %v3346 = vld [vmem:[%s5 + $0x30] sm:$0xff]
      %v3347 = vld [vmem:[%s5 + $0x38] sm:$0xf]
      %v3348 = vld [vmem:[%s5 + $0x3c] sm:$0xff]
      %v3349 = vld [vmem:[%s5 + $0x44] sm:$0xf]
      %v3350 = vld [vmem:[%s5 + $0x48] sm:$0xff]
      %v3351 = vld [vmem:[%s5 + $0x50] sm:$0xf]
      %v3352 = vld [vmem:[%s5 + $0x54] sm:$0xff]
      %v3353 = vld [vmem:[%s5 + $0x5c] sm:$0xf]
      %v3354 = vld [vmem:[%s5 + $0x60] sm:$0xff]
      %v3355 = vld [vmem:[%s5 + $0x68] sm:$0xf]
      %v3356 = vld [vmem:[%s5 + $0x6c] sm:$0xff]
      %v3357 = vld [vmem:[%s5 + $0x74] sm:$0xf]
      %v3358 = vld [vmem:[%s5 + $0x78] sm:$0xff]
      %v3359 = vld [vmem:[%s5 + $0x80] sm:$0xf]
      %v3360 = vld [vmem:[%s5 + $0x84] sm:$0xff]
      %v3361 = vld [vmem:[%s5 + $0x8c] sm:$0xf]
      %v3362 = vld [vmem:[%s5 + $0x90] sm:$0x33]
      %v3363 = vld [vmem:[%s5 + $0x98] sm:$0x3]
      %v3390 = vunpack.c.l.b16 %v3338
      %v3391 = vunpack.c.h.b16 %v3338
      %v3392 = vunpack.c.l.b16 %v3339
      %v3393 = vunpack.c.l.b16 %v3340
      %v3394 = vunpack.c.h.b16 %v3340
      %v3395 = vunpack.c.l.b16 %v3341
      %v3396 = vunpack.c.l.b16 %v3342
      %v3397 = vunpack.c.h.b16 %v3342
      %v3398 = vunpack.c.l.b16 %v3343
      %v3399 = vunpack.c.l.b16 %v3344
      %v3400 = vunpack.c.h.b16 %v3344
      %v3401 = vunpack.c.l.b16 %v3345
      %v3402 = vunpack.c.l.b16 %v3346
      %v3403 = vunpack.c.h.b16 %v3346
      %v3404 = vunpack.c.l.b16 %v3347
      %v3405 = vunpack.c.l.b16 %v3348
      %v3406 = vunpack.c.h.b16 %v3348
      %v3407 = vunpack.c.l.b16 %v3349
      %v3408 = vunpack.c.l.b16 %v3350
      %v3409 = vunpack.c.h.b16 %v3350
      %v3410 = vunpack.c.l.b16 %v3351
      %v3411 = vunpack.c.l.b16 %v3352
      %v3412 = vunpack.c.h.b16 %v3352
      %v3413 = vunpack.c.l.b16 %v3353
      %v3414 = vunpack.c.l.b16 %v3354
      %v3415 = vunpack.c.h.b16 %v3354
      %v3416 = vunpack.c.l.b16 %v3355
      %v3417 = vunpack.c.l.b16 %v3356
      %v3418 = vunpack.c.h.b16 %v3356
      %v3419 = vunpack.c.l.b16 %v3357
      %v3420 = vunpack.c.l.b16 %v3358
      %v3421 = vunpack.c.h.b16 %v3358
      %v3422 = vunpack.c.l.b16 %v3359
      %v3423 = vunpack.c.l.b16 %v3360
      %v3424 = vunpack.c.h.b16 %v3360
      %v3425 = vunpack.c.l.b16 %v3361
      %v3426 = vunpack.c.l.b16 %v3362
      %v3427 = vunpack.c.h.b16 %v3362
      %v3428 = vunpack.c.l.b16 %v3363
      %v3429 = vpack.c.b16 %v3393, %v3390
      %v3430 = vpack.c.b16 %v3394, %v3391
      %v3431 = vpack.c.b16 %v3395, %v3392
      %v3432 = vpack.c.b16 %v3399, %v3396
      %v3433 = vpack.c.b16 %v3400, %v3397
      %v3434 = vpack.c.b16 %v3401, %v3398
      %v3435 = vpack.c.b16 %v3405, %v3402
      %v3436 = vpack.c.b16 %v3406, %v3403
      %v3437 = vpack.c.b16 %v3407, %v3404
      %v3438 = vpack.c.b16 %v3411, %v3408
      %v3439 = vpack.c.b16 %v3412, %v3409
      %v3440 = vpack.c.b16 %v3413, %v3410
      %v3441 = vpack.c.b16 %v3417, %v3414
      %v3442 = vpack.c.b16 %v3418, %v3415
      %v3443 = vpack.c.b16 %v3419, %v3416
      %v3444 = vpack.c.b16 %v3423, %v3420
      %v3445 = vpack.c.b16 %v3424, %v3421
      %v3446 = vpack.c.b16 %v3425, %v3422
      %v3447 = vpack.c.b16 %v3426, %v3426
      %v3448 = vpack.c.b16 %v3427, %v3427
      %v3449 = vpack.c.b16 %v3428, %v3428
      %v3469 = vsel %vm2381, %v3337, 0
      %v3472 = vsel %vm2294, %v3447, 0
      %v3475 = vsel %vm2294, %v3448, 0
      %v3478 = vsel %vm2294, %v3449, 0
      %3480 = vmatprep.subr.bf16.mxu0 %v3430
      %3481 = vmatpush1.bf16.msra.mxu0 %v3429
      %3482 = vmatprep.subr.bf16.mxu0 %v3433
      %3483 = vmatpush1.bf16.msra.mxu0 %v3432
      %3484 = vmatprep.subr.bf16.mxu0 %v3436
      %3485 = vmatpush1.bf16.msra.mxu0 %v3435
      %3486 = vmatprep.subr.bf16.mxu0 %v3439
      %3487 = vmatpush1.bf16.msra.mxu0 %v3438
      %3488 = vmatprep.subr.bf16.mxu0 %v3442
      %3489 = vmatpush1.bf16.msra.mxu0 %v3441
      %3490 = vmatprep.subr.bf16.mxu0 %v3445
      %3491 = vmatpush1.bf16.msra.mxu0 %v3444
      %3492 = vmatprep.subr.bf16.mxu0 %v3475
      %3493 = vmatpush1.bf16.msra.mxu0 %v3472
      %3494 = vmatprep.subr.bf16.mxu0 0
      %3495 = vmatpush1.bf16.msra.mxu0 0
      %3496 = vmatprep.subr.bf16.mxu0 0
      %3497 = vmatpush1.bf16.msra.mxu0 0
      %3498 = vmatprep.subr.bf16.mxu0 0
      %3499 = vmatpush1.bf16.msra.mxu0 0
      %3500 = vmatprep.subr.bf16.mxu0 0
      %3501 = vmatpush1.bf16.msra.mxu0 0
      %3502 = vmatprep.subr.bf16.mxu0 0
      %3503 = vmatpush1.bf16.msra.mxu0 0
      %3504 = vmatprep.subr.bf16.mxu0 0
      %3505 = vmatpush1.bf16.msra.mxu0 0
      %3506 = vmatprep.subr.bf16.mxu0 0
      %3507 = vmatpush1.bf16.msra.mxu0 0
      %3508 = vmatprep.subr.bf16.mxu0 0
      %3509 = vmatpush1.bf16.msra.mxu0 0
      %3510 = vmatprep.subr.bf16.mxu0 0
      %3511 = vmatpush1.bf16.msra.mxu0 0
      %3512 = vmatprep.mubr.bf16.mxu0 0
      %3513 = vmatmul.mubr.bf16.gmra.mrb[0].mxu0 %v3469
      %v3514 = vpop.f32.mrb[0].mxu0
      %v3515 = vadd.f32 0.0, %v3514
      %v3516 = vpop.f32.mrb[0].mxu0
      %v3517 = vadd.f32 0.0, %v3516
      %v3518 = vpop.f32.mrb[0].mxu0
      %v3519 = vadd.f32 0.0, %v3518
      %v3520 = vpop.f32.mrb[0].mxu0
      %v3521 = vadd.f32 0.0, %v3520
      %3522 = vdwg.mxu0
      %3523 = vmatprep.subr.bf16.mxu0 0
      %3524 = vmatpush1.bf16.msra.mxu0 %v3431
      %3525 = vmatprep.subr.bf16.mxu0 0
      %3526 = vmatpush1.bf16.msra.mxu0 %v3434
      %3527 = vmatprep.subr.bf16.mxu0 0
      %3528 = vmatpush1.bf16.msra.mxu0 %v3437
      %3529 = vmatprep.subr.bf16.mxu0 0
      %3530 = vmatpush1.bf16.msra.mxu0 %v3440
      %3531 = vmatprep.subr.bf16.mxu0 0
      %3532 = vmatpush1.bf16.msra.mxu0 %v3443
      %3533 = vmatprep.subr.bf16.mxu0 0
      %3534 = vmatpush1.bf16.msra.mxu0 %v3446
      %3535 = vmatprep.subr.bf16.mxu0 0
      %3536 = vmatpush1.bf16.msra.mxu0 %v3478
      %3537 = vmatprep.subr.bf16.mxu0 0
      %3538 = vmatpush1.bf16.msra.mxu0 0
      %3539 = vmatprep.subr.bf16.mxu0 0
      %3540 = vmatpush1.bf16.msra.mxu0 0
      %3541 = vmatprep.subr.bf16.mxu0 0
      %3542 = vmatpush1.bf16.msra.mxu0 0
      %3543 = vmatprep.subr.bf16.mxu0 0
      %3544 = vmatpush1.bf16.msra.mxu0 0
      %3545 = vmatprep.subr.bf16.mxu0 0
      %3546 = vmatpush1.bf16.msra.mxu0 0
      %3547 = vmatprep.subr.bf16.mxu0 0
      %3548 = vmatpush1.bf16.msra.mxu0 0
      %3549 = vmatprep.subr.bf16.mxu0 0
      %3550 = vmatpush1.bf16.msra.mxu0 0
      %3551 = vmatprep.subr.bf16.mxu0 0
      %3552 = vmatpush1.bf16.msra.mxu0 0
      %3553 = vmatprep.subr.bf16.mxu0 0
      %3554 = vmatpush1.bf16.msra.mxu0 0
      %3555 = vmatprep.mubr.bf16.mxu0 0
      %3556 = vmatmul.mubr.bf16.gmra.mrb[0].mxu0 %v3469
      %v3557 = vpop.f32.mrb[0].mxu0
      %v3558 = vadd.f32 0.0, %v3557
      %v3559 = vpop.f32.mrb[0].mxu0
      %v3560 = vpop.f32.mrb[0].mxu0
      %v3561 = vadd.f32 0.0, %v3560
      %v3562 = vpop.f32.mrb[0].mxu0
      %3563 = vdwg.mxu0
      %v3564 = vpack.c.bf16 %v3519, %v3515
      %v3565 = vpack.c.bf16 %v3521, %v3517
      %v3566 = vpack.c.bf16 %v3561, %v3558
      %3567 = vst [vmem:[#allocation2 + $0x8] sm:$0xff] %v3564
      %3568 = vst [vmem:[#allocation2 + $0x10] sm:$0xff] %v3565
      %3569 = vst.msk [vmem:[#allocation2 + $0x18] sm:$0xff] %vm888, %v3566
      %v3570 = vld [vmem:[#allocation2] sm:$0xff]
      %v3571 = vld [vmem:[#allocation2 + $0x8] sm:$0xff]
      %v3572 = vld [vmem:[#allocation2 + $0x10] sm:$0xff]
      %v3573 = vld [vmem:[#allocation2 + $0x18] sm:$0xff]
      %3578 = vrot.lane.b32.xlu0 %v3570, 19
      %v3579 = vpop.permute.xlu0 %3578
      %3580 = vrot.lane.b32.xlu0 %v3571, 19
      %v3581 = vpop.permute.xlu0 %3580
      %3582 = vrot.lane.b32.xlu0 %v3572, 19
      %v3583 = vpop.permute.xlu0 %3582
      %3584 = vrot.lane.b32.xlu0 %v3573, 19
      %v3585 = vpop.permute.xlu0 %3584
      %v3586 = vsel %vm971, %v3579, %v3581
      %v3587 = vsel %vm971, %v3581, %v3583
      %v3588 = vsel %vm971, %v3583, %v3585
      %3592 = vst [vmem:[#allocation3] sm:$0xff] %v3586
      %3593 = vst [vmem:[#allocation3 + $0x8] sm:$0xff] %v3587
      %3594 = vst.msk [vmem:[#allocation3 + $0x10] sm:$0xff] %vm888, %v3588
      %v3595 = vld [vmem:[#allocation2] sm:$0xff]
      %v3596 = vld [vmem:[#allocation2 + $0x8] sm:$0xff]
      %v3597 = vld [vmem:[#allocation2 + $0x10] sm:$0xff]
      %v3598 = vld [vmem:[#allocation2 + $0x18] sm:$0xff]
      %3603 = vrot.lane.b32.xlu0 %v3595, 18
      %v3604 = vpop.permute.xlu0 %3603
      %3605 = vrot.lane.b32.xlu0 %v3596, 18
      %v3606 = vpop.permute.xlu0 %3605
      %3607 = vrot.lane.b32.xlu0 %v3597, 18
      %v3608 = vpop.permute.xlu0 %3607
      %3609 = vrot.lane.b32.xlu0 %v3598, 18
      %v3610 = vpop.permute.xlu0 %3609
      %v3611 = vsel %vm997, %v3604, %v3606
      %v3612 = vsel %vm997, %v3606, %v3608
      %v3613 = vsel %vm997, %v3608, %v3610
      %3617 = vst [vmem:[#allocation3 + $0x30] sm:$0xff] %v3611
      %3618 = vst [vmem:[#allocation3 + $0x38] sm:$0xff] %v3612
      %3619 = vst.msk [vmem:[#allocation3 + $0x40] sm:$0xff] %vm888, %v3613
      %v3620 = vld [vmem:[#allocation2] sm:$0xff]
      %v3621 = vld [vmem:[#allocation2 + $0x8] sm:$0xff]
      %v3622 = vld [vmem:[#allocation2 + $0x10] sm:$0xff]
      %v3623 = vld [vmem:[#allocation2 + $0x18] sm:$0xff]
      %3628 = vrot.lane.b32.xlu0 %v3620, 17
      %v3629 = vpop.permute.xlu0 %3628
      %3630 = vrot.lane.b32.xlu0 %v3621, 17
      %v3631 = vpop.permute.xlu0 %3630
      %3632 = vrot.lane.b32.xlu0 %v3622, 17
      %v3633 = vpop.permute.xlu0 %3632
      %3634 = vrot.lane.b32.xlu0 %v3623, 17
      %v3635 = vpop.permute.xlu0 %3634
      %v3636 = vsel %vm1023, %v3629, %v3631
      %v3637 = vsel %vm1023, %v3631, %v3633
      %v3638 = vsel %vm1023, %v3633, %v3635
      %3642 = vst [vmem:[#allocation3 + $0x60] sm:$0xff] %v3636
      %3643 = vst [vmem:[#allocation3 + $0x68] sm:$0xff] %v3637
      %3644 = vst.msk [vmem:[#allocation3 + $0x70] sm:$0xff] %vm888, %v3638
      %v3645 = vld [vmem:[#allocation2] sm:$0xff]
      %v3646 = vld [vmem:[#allocation2 + $0x8] sm:$0xff]
      %v3647 = vld [vmem:[#allocation2 + $0x10] sm:$0xff]
      %v3648 = vld [vmem:[#allocation2 + $0x18] sm:$0xff]
      %3653 = vrot.lane.b32.xlu0 %v3645, 1
      %v3654 = vpop.permute.xlu0 %3653
      %3655 = vrot.lane.b32.xlu0 %v3646, 1
      %v3656 = vpop.permute.xlu0 %3655
      %3657 = vrot.lane.b32.xlu0 %v3647, 1
      %v3658 = vpop.permute.xlu0 %3657
      %3659 = vrot.lane.b32.xlu0 %v3648, 1
      %v3660 = vpop.permute.xlu0 %3659
      %v3661 = vsel %vm1049, %v3654, %v3656
      %v3662 = vsel %vm1049, %v3656, %v3658
      %v3663 = vsel %vm1049, %v3658, %v3660
      %3667 = vst [vmem:[#allocation3 + $0x90] sm:$0xff] %v3661
      %3668 = vst [vmem:[#allocation3 + $0x98] sm:$0xff] %v3662
      %3669 = vst.msk [vmem:[#allocation3 + $0xa0] sm:$0xff] %vm888, %v3663
      %v3670 = vld [vmem:[#allocation2 + $0x8] sm:$0xff]
      %v3671 = vld [vmem:[#allocation2 + $0x10] sm:$0xff]
      %v3672 = vld [vmem:[#allocation2 + $0x18] sm:$0xff]
      %3673 = vst [vmem:[#allocation3 + $0xc0] sm:$0xff] %v3670
      %3674 = vst [vmem:[#allocation3 + $0xc8] sm:$0xff] %v3671
      %3675 = vst.msk [vmem:[#allocation3 + $0xd0] sm:$0xff] %vm888, %v3672
      %v3676 = vld [vmem:[#allocation2 + $0x8] sm:$0xff]
      %v3677 = vld [vmem:[#allocation2 + $0x10] sm:$0xff]
      %v3678 = vld [vmem:[#allocation2 + $0x18] sm:$0xff]
      %3682 = vrot.lane.b32.xlu0 %v3676, 127
      %v3683 = vpop.permute.xlu0 %3682
      %3684 = vrot.lane.b32.xlu0 %v3677, 127
      %v3685 = vpop.permute.xlu0 %3684
      %3686 = vrot.lane.b32.xlu0 %v3678, 127
      %v3687 = vpop.permute.xlu0 %3686
      %v3688 = vsel %vm1077, %v3683, %v3685
      %v3689 = vsel %vm1077, %v3685, %v3687
      %3693 = vst [vmem:[#allocation3 + $0xf0] sm:$0xff] %v3688
      %3694 = vst [vmem:[#allocation3 + $0xf8] sm:$0xff] %v3689
      %3695 = vst.msk [vmem:[#allocation3 + $0x100] sm:$0xff] %vm888, %v3687
      %v3696 = vld [vmem:[#allocation2 + $0x8] sm:$0xff]
      %v3697 = vld [vmem:[#allocation2 + $0x10] sm:$0xff]
      %v3698 = vld [vmem:[#allocation2 + $0x18] sm:$0xff]
      %3702 = vrot.lane.b32.xlu0 %v3696, 111
      %v3703 = vpop.permute.xlu0 %3702
      %3704 = vrot.lane.b32.xlu0 %v3697, 111
      %v3705 = vpop.permute.xlu0 %3704
      %3706 = vrot.lane.b32.xlu0 %v3698, 111
      %v3707 = vpop.permute.xlu0 %3706
      %v3708 = vsel %vm1098, %v3703, %v3705
      %v3709 = vsel %vm1098, %v3705, %v3707
      %3713 = vst [vmem:[#allocation3 + $0x120] sm:$0xff] %v3708
      %3714 = vst [vmem:[#allocation3 + $0x128] sm:$0xff] %v3709
      %3715 = vst.msk [vmem:[#allocation3 + $0x130] sm:$0xff] %vm888, %v3707
      %v3716 = vld [vmem:[#allocation2 + $0x8] sm:$0xff]
      %v3717 = vld [vmem:[#allocation2 + $0x10] sm:$0xff]
      %v3718 = vld [vmem:[#allocation2 + $0x18] sm:$0xff]
      %3722 = vrot.lane.b32.xlu0 %v3716, 110
      %v3723 = vpop.permute.xlu0 %3722
      %3724 = vrot.lane.b32.xlu0 %v3717, 110
      %v3725 = vpop.permute.xlu0 %3724
      %3726 = vrot.lane.b32.xlu0 %v3718, 110
      %v3727 = vpop.permute.xlu0 %3726
      %v3728 = vsel %vm1119, %v3723, %v3725
      %v3729 = vsel %vm1119, %v3725, %v3727
      %3733 = vst [vmem:[#allocation3 + $0x150] sm:$0xff] %v3728
      %3734 = vst [vmem:[#allocation3 + $0x158] sm:$0xff] %v3729
      %3735 = vst.msk [vmem:[#allocation3 + $0x160] sm:$0xff] %vm888, %v3727
      %v3736 = vld [vmem:[#allocation2 + $0x8] sm:$0xff]
      %v3737 = vld [vmem:[#allocation2 + $0x10] sm:$0xff]
      %v3738 = vld [vmem:[#allocation2 + $0x18] sm:$0xff]
      %3742 = vrot.lane.b32.xlu0 %v3736, 109
      %v3743 = vpop.permute.xlu0 %3742
      %3744 = vrot.lane.b32.xlu0 %v3737, 109
      %v3745 = vpop.permute.xlu0 %3744
      %3746 = vrot.lane.b32.xlu0 %v3738, 109
      %v3747 = vpop.permute.xlu0 %3746
      %v3748 = vsel %vm1140, %v3743, %v3745
      %v3749 = vsel %vm1140, %v3745, %v3747
      %3753 = vst [vmem:[#allocation3 + $0x180] sm:$0xff] %v3748
      %3754 = vst [vmem:[#allocation3 + $0x188] sm:$0xff] %v3749
      %3755 = vst.msk [vmem:[#allocation3 + $0x190] sm:$0xff] %vm888, %v3747
      %v3756 = vld [vmem:[%s852] sm:$0xff]
      %v3757 = vld [vmem:[%s852 + $0x8] sm:$0xf]
      %v3758 = vld [vmem:[%s852 + $0xc] sm:$0xff]
      %v3759 = vld [vmem:[%s852 + $0x14] sm:$0xf]
      %v3760 = vld [vmem:[%s857] sm:$0xff]
      %v3761 = vld [vmem:[%s857 + $0x8] sm:$0xff]
      %v3762 = vld [vmem:[#allocation3] sm:$0xff]
      %v3763 = vld [vmem:[#allocation3 + $0x8] sm:$0xff]
      %v3764 = vld [vmem:[#allocation3 + $0x10] sm:$0xff]
      %v3765 = vld [vmem:[#allocation3 + $0x18] sm:$0xff]
      %v3766 = vld [vmem:[#allocation3 + $0x20] sm:$0xff]
      %v3767 = vld [vmem:[#allocation3 + $0x28] sm:$0xff]
      %v3768 = vld [vmem:[#allocation3 + $0x30] sm:$0xff]
      %v3769 = vld [vmem:[#allocation3 + $0x38] sm:$0xff]
      %v3770 = vld [vmem:[#allocation3 + $0x40] sm:$0xff]
      %v3771 = vld [vmem:[#allocation3 + $0x48] sm:$0xff]
      %v3772 = vld [vmem:[#allocation3 + $0x50] sm:$0xff]
      %v3773 = vld [vmem:[#allocation3 + $0x58] sm:$0xff]
      %v3774 = vld [vmem:[#allocation3 + $0x60] sm:$0xff]
      %v3775 = vld [vmem:[#allocation3 + $0x68] sm:$0xff]
      %v3776 = vld [vmem:[#allocation3 + $0x70] sm:$0xff]
      %v3777 = vld [vmem:[#allocation3 + $0x78] sm:$0xff]
      %v3778 = vld [vmem:[#allocation3 + $0x80] sm:$0xff]
      %v3779 = vld [vmem:[#allocation3 + $0x88] sm:$0xff]
      %v3780 = vld [vmem:[#allocation3 + $0x90] sm:$0xff]
      %v3781 = vld [vmem:[#allocation3 + $0x98] sm:$0xff]
      %v3782 = vld [vmem:[#allocation3 + $0xa0] sm:$0xff]
      %v3783 = vld [vmem:[#allocation3 + $0xa8] sm:$0xff]
      %v3784 = vld [vmem:[#allocation3 + $0xb0] sm:$0xff]
      %v3785 = vld [vmem:[#allocation3 + $0xb8] sm:$0xff]
      %v3786 = vld [vmem:[#allocation3 + $0xc0] sm:$0xff]
      %v3787 = vld [vmem:[#allocation3 + $0xc8] sm:$0xff]
      %v3788 = vld [vmem:[#allocation3 + $0xd0] sm:$0xff]
      %v3789 = vld [vmem:[#allocation3 + $0xd8] sm:$0xff]
      %v3790 = vld [vmem:[#allocation3 + $0xe0] sm:$0xff]
      %v3791 = vld [vmem:[#allocation3 + $0xe8] sm:$0xff]
      %v3792 = vld [vmem:[#allocation3 + $0xf0] sm:$0xff]
      %v3793 = vld [vmem:[#allocation3 + $0xf8] sm:$0xff]
      %v3794 = vld [vmem:[#allocation3 + $0x100] sm:$0xff]
      %v3795 = vld [vmem:[#allocation3 + $0x108] sm:$0xff]
      %v3796 = vld [vmem:[#allocation3 + $0x110] sm:$0xff]
      %v3797 = vld [vmem:[#allocation3 + $0x118] sm:$0xff]
      %v3798 = vld [vmem:[#allocation3 + $0x120] sm:$0xff]
      %v3799 = vld [vmem:[#allocation3 + $0x128] sm:$0xff]
      %v3800 = vld [vmem:[#allocation3 + $0x130] sm:$0xff]
      %v3801 = vld [vmem:[#allocation3 + $0x138] sm:$0xff]
      %v3802 = vld [vmem:[#allocation3 + $0x140] sm:$0xff]
      %v3803 = vld [vmem:[#allocation3 + $0x148] sm:$0xff]
      %v3804 = vld [vmem:[#allocation3 + $0x150] sm:$0xff]
      %v3805 = vld [vmem:[#allocation3 + $0x158] sm:$0xff]
      %v3806 = vld [vmem:[#allocation3 + $0x160] sm:$0xff]
      %v3807 = vld [vmem:[#allocation3 + $0x168] sm:$0xff]
      %v3808 = vld [vmem:[#allocation3 + $0x170] sm:$0xff]
      %v3809 = vld [vmem:[#allocation3 + $0x178] sm:$0xff]
      %v3810 = vld [vmem:[#allocation3 + $0x180] sm:$0xff]
      %v3811 = vld [vmem:[#allocation3 + $0x188] sm:$0xff]
      %v3812 = vld [vmem:[#allocation3 + $0x190] sm:$0xff]
      %v3813 = vld [vmem:[#allocation3 + $0x198] sm:$0xff]
      %v3814 = vld [vmem:[#allocation3 + $0x1a0] sm:$0xff]
      %v3815 = vld [vmem:[#allocation3 + $0x1a8] sm:$0xff]
      %3817 = vset.pattern.permute.xlu0 0
      %3818 = vperm.xlu0 %3817, %v3760
      %v3819 = vpop.permute.xlu0 %3818
      %3822 = vset.pattern.permute.xlu0 0
      %3823 = vperm.xlu0 %3822, %v3761
      %v3824 = vpop.permute.xlu0 %3823
      %v3830 = vunpack.c.l.b16 %v3756
      %v3831 = vunpack.c.h.b16 %v3756
      %v3832 = vunpack.c.l.b16 %v3757
      %v3833 = vunpack.c.l.b16 %v3758
      %v3834 = vunpack.c.h.b16 %v3758
      %v3835 = vunpack.c.l.b16 %v3759
      %v3836 = vpack.c.b16 %v3833, %v3830
      %v3837 = vpack.c.b16 %v3834, %v3831
      %v3838 = vpack.c.b16 %v3835, %v3832
      %v3842 = vsel %vm1234, %v3838, 0
      %3844 = vmatprep.subr.bf16.mxu0 %v3763
      %3845 = vmatpush1.bf16.msra.mxu0 %v3762
      %3846 = vmatprep.subr.bf16.mxu0 %v3766
      %3847 = vmatpush1.bf16.msra.mxu0 %v3765
      %3848 = vmatprep.subr.bf16.mxu0 %v3769
      %3849 = vmatpush1.bf16.msra.mxu0 %v3768
      %3850 = vmatprep.subr.bf16.mxu0 %v3772
      %3851 = vmatpush1.bf16.msra.mxu0 %v3771
      %3852 = vmatprep.subr.bf16.mxu0 %v3775
      %3853 = vmatpush1.bf16.msra.mxu0 %v3774
      %3854 = vmatprep.subr.bf16.mxu0 %v3778
      %3855 = vmatpush1.bf16.msra.mxu0 %v3777
      %3856 = vmatprep.subr.bf16.mxu0 %v3781
      %3857 = vmatpush1.bf16.msra.mxu0 %v3780
      %3858 = vmatprep.subr.bf16.mxu0 %v3784
      %3859 = vmatpush1.bf16.msra.mxu0 %v3783
      %3860 = vmatprep.subr.bf16.mxu0 %v3787
      %3861 = vmatpush1.bf16.msra.mxu0 %v3786
      %3862 = vmatprep.subr.bf16.mxu0 %v3790
      %3863 = vmatpush1.bf16.msra.mxu0 %v3789
      %3864 = vmatprep.subr.bf16.mxu0 %v3793
      %3865 = vmatpush1.bf16.msra.mxu0 %v3792
      %3866 = vmatprep.subr.bf16.mxu0 %v3796
      %3867 = vmatpush1.bf16.msra.mxu0 %v3795
      %3868 = vmatprep.subr.bf16.mxu0 %v3799
      %3869 = vmatpush1.bf16.msra.mxu0 %v3798
      %3870 = vmatprep.subr.bf16.mxu0 %v3802
      %3871 = vmatpush1.bf16.msra.mxu0 %v3801
      %3872 = vmatprep.subr.bf16.mxu0 %v3805
      %3873 = vmatpush1.bf16.msra.mxu0 %v3804
      %3874 = vmatprep.subr.bf16.mxu0 %v3808
      %3875 = vmatpush1.bf16.msra.mxu0 %v3807
      %3876 = vmatprep.mubr.bf16.mxu0 %v3837
      %3877 = vmatmul.mubr.bf16.gmra.mrb[0].mxu0 %v3836
      %v3878 = vpop.f32.mrb[0].mxu0
      %v3879 = vadd.f32 %v3819, %v3878
      %v3880 = vpop.f32.mrb[0].mxu0
      %v3881 = vadd.f32 %v3819, %v3880
      %v3882 = vpop.f32.mrb[0].mxu0
      %v3883 = vadd.f32 %v3824, %v3882
      %v3884 = vpop.f32.mrb[0].mxu0
      %v3885 = vadd.f32 %v3824, %v3884
      %3886 = vdwg.mxu0
      %3887 = vmatprep.subr.bf16.mxu0 %v3811
      %3888 = vmatpush1.bf16.msra.mxu0 %v3810
      %3889 = vmatprep.subr.bf16.mxu0 %v3814
      %3890 = vmatpush1.bf16.msra.mxu0 %v3813
      %3891 = vmatprep.subr.bf16.mxu0 0
      %3892 = vmatpush1.bf16.msra.mxu0 0
      %3893 = vmatprep.subr.bf16.mxu0 0
      %3894 = vmatpush1.bf16.msra.mxu0 0
      %3895 = vmatprep.subr.bf16.mxu0 0
      %3896 = vmatpush1.bf16.msra.mxu0 0
      %3897 = vmatprep.subr.bf16.mxu0 0
      %3898 = vmatpush1.bf16.msra.mxu0 0
      %3899 = vmatprep.subr.bf16.mxu0 0
      %3900 = vmatpush1.bf16.msra.mxu0 0
      %3901 = vmatprep.subr.bf16.mxu0 0
      %3902 = vmatpush1.bf16.msra.mxu0 0
      %3903 = vmatprep.subr.bf16.mxu0 0
      %3904 = vmatpush1.bf16.msra.mxu0 0
      %3905 = vmatprep.subr.bf16.mxu0 0
      %3906 = vmatpush1.bf16.msra.mxu0 0
      %3907 = vmatprep.subr.bf16.mxu0 0
      %3908 = vmatpush1.bf16.msra.mxu0 0
      %3909 = vmatprep.subr.bf16.mxu0 0
      %3910 = vmatpush1.bf16.msra.mxu0 0
      %3911 = vmatprep.subr.bf16.mxu0 0
      %3912 = vmatpush1.bf16.msra.mxu0 0
      %3913 = vmatprep.subr.bf16.mxu0 0
      %3914 = vmatpush1.bf16.msra.mxu0 0
      %3915 = vmatprep.subr.bf16.mxu0 0
      %3916 = vmatpush1.bf16.msra.mxu0 0
      %3917 = vmatprep.subr.bf16.mxu0 0
      %3918 = vmatpush1.bf16.msra.mxu0 0
      %3919 = vmatprep.mubr.bf16.mxu0 0
      %3920 = vmatmul.mubr.bf16.gmra.mrb[0].mxu0 %v3842
      %v3921 = vpop.f32.mrb[0].mxu0
      %v3922 = vadd.f32 %v3879, %v3921
      %v3923 = vpop.f32.mrb[0].mxu0
      %v3924 = vadd.f32 %v3881, %v3923
      %v3925 = vpop.f32.mrb[0].mxu0
      %v3926 = vadd.f32 %v3883, %v3925
      %v3927 = vpop.f32.mrb[0].mxu0
      %v3928 = vadd.f32 %v3885, %v3927
      %3929 = vdwg.mxu0
      %3930 = vmatprep.subr.bf16.mxu0 0
      %3931 = vmatpush1.bf16.msra.mxu0 %v3764
      %3932 = vmatprep.subr.bf16.mxu0 0
      %3933 = vmatpush1.bf16.msra.mxu0 %v3767
      %3934 = vmatprep.subr.bf16.mxu0 0
      %3935 = vmatpush1.bf16.msra.mxu0 %v3770
      %3936 = vmatprep.subr.bf16.mxu0 0
      %3937 = vmatpush1.bf16.msra.mxu0 %v3773
      %3938 = vmatprep.subr.bf16.mxu0 0
      %3939 = vmatpush1.bf16.msra.mxu0 %v3776
      %3940 = vmatprep.subr.bf16.mxu0 0
      %3941 = vmatpush1.bf16.msra.mxu0 %v3779
      %3942 = vmatprep.subr.bf16.mxu0 0
      %3943 = vmatpush1.bf16.msra.mxu0 %v3782
      %3944 = vmatprep.subr.bf16.mxu0 0
      %3945 = vmatpush1.bf16.msra.mxu0 %v3785
      %3946 = vmatprep.subr.bf16.mxu0 0
      %3947 = vmatpush1.bf16.msra.mxu0 %v3788
      %3948 = vmatprep.subr.bf16.mxu0 0
      %3949 = vmatpush1.bf16.msra.mxu0 %v3791
      %3950 = vmatprep.subr.bf16.mxu0 0
      %3951 = vmatpush1.bf16.msra.mxu0 %v3794
      %3952 = vmatprep.subr.bf16.mxu0 0
      %3953 = vmatpush1.bf16.msra.mxu0 %v3797
      %3954 = vmatprep.subr.bf16.mxu0 0
      %3955 = vmatpush1.bf16.msra.mxu0 %v3800
      %3956 = vmatprep.subr.bf16.mxu0 0
      %3957 = vmatpush1.bf16.msra.mxu0 %v3803
      %3958 = vmatprep.subr.bf16.mxu0 0
      %3959 = vmatpush1.bf16.msra.mxu0 %v3806
      %3960 = vmatprep.subr.bf16.mxu0 0
      %3961 = vmatpush1.bf16.msra.mxu0 %v3809
      %3962 = vmatprep.mubr.bf16.mxu0 %v3837
      %3963 = vmatmul.mubr.bf16.gmra.mrb[0].mxu0 %v3836
      %v3964 = vpop.f32.mrb[0].mxu0
      %v3965 = vadd.f32 %v3819, %v3964
      %v3966 = vpop.f32.mrb[0].mxu0
      %v3967 = vpop.f32.mrb[0].mxu0
      %v3968 = vadd.f32 %v3824, %v3967
      %v3969 = vpop.f32.mrb[0].mxu0
      %3970 = vdwg.mxu0
      %3971 = vmatprep.subr.bf16.mxu0 0
      %3972 = vmatpush1.bf16.msra.mxu0 %v3812
      %3973 = vmatprep.subr.bf16.mxu0 0
      %3974 = vmatpush1.bf16.msra.mxu0 %v3815
      %3975 = vmatprep.subr.bf16.mxu0 0
      %3976 = vmatpush1.bf16.msra.mxu0 0
      %3977 = vmatprep.subr.bf16.mxu0 0
      %3978 = vmatpush1.bf16.msra.mxu0 0
      %3979 = vmatprep.subr.bf16.mxu0 0
      %3980 = vmatpush1.bf16.msra.mxu0 0
      %3981 = vmatprep.subr.bf16.mxu0 0
      %3982 = vmatpush1.bf16.msra.mxu0 0
      %3983 = vmatprep.subr.bf16.mxu0 0
      %3984 = vmatpush1.bf16.msra.mxu0 0
      %3985 = vmatprep.subr.bf16.mxu0 0
      %3986 = vmatpush1.bf16.msra.mxu0 0
      %3987 = vmatprep.subr.bf16.mxu0 0
      %3988 = vmatpush1.bf16.msra.mxu0 0
      %3989 = vmatprep.subr.bf16.mxu0 0
      %3990 = vmatpush1.bf16.msra.mxu0 0
      %3991 = vmatprep.subr.bf16.mxu0 0
      %3992 = vmatpush1.bf16.msra.mxu0 0
      %3993 = vmatprep.subr.bf16.mxu0 0
      %3994 = vmatpush1.bf16.msra.mxu0 0
      %3995 = vmatprep.subr.bf16.mxu0 0
      %3996 = vmatpush1.bf16.msra.mxu0 0
      %3997 = vmatprep.subr.bf16.mxu0 0
      %3998 = vmatpush1.bf16.msra.mxu0 0
      %3999 = vmatprep.subr.bf16.mxu0 0
      %4000 = vmatpush1.bf16.msra.mxu0 0
      %4001 = vmatprep.subr.bf16.mxu0 0
      %4002 = vmatpush1.bf16.msra.mxu0 0
      %4003 = vmatprep.mubr.bf16.mxu0 0
      %4004 = vmatmul.mubr.bf16.gmra.mrb[0].mxu0 %v3842
      %v4005 = vpop.f32.mrb[0].mxu0
      %v4006 = vadd.f32 %v3965, %v4005
      %v4007 = vpop.f32.mrb[0].mxu0
      %v4008 = vpop.f32.mrb[0].mxu0
      %v4009 = vadd.f32 %v3968, %v4008
      %v4010 = vpop.f32.mrb[0].mxu0
      %4011 = vdwg.mxu0
      %v4012 = vmul.f32 %v3922, %v1426
      %v4013 = vmul.f32 %v3924, %v1430
      %v4014 = vmul.f32 %v4006, %v1434
      %v4015 = vmul.f32 %v3926, %v1426
      %v4016 = vmul.f32 %v3928, %v1430
      %v4017 = vmul.f32 %v4009, %v1434
      %v4018 = vadd.f32 %v4012, %v4013
      %v4019 = vsel %vm888, %v4014, 0.0
      %v4020 = vadd.f32 %v4018, %v4019
      %4021 = vadd.xlane.f32.xlu0 %v4020
      %v4022 = vpop.xlane.xlu0 %4021
      %v4023 = vadd.f32 %v4015, %v4016
      %v4024 = vsel %vm888, %v4017, 0.0
      %v4025 = vadd.f32 %v4023, %v4024
      %4026 = vadd.xlane.f32.xlu0 %v4025
      %v4027 = vpop.xlane.xlu0 %4026
      %v4028 = vmul.f32 %v3922, %v3922
      %v4029 = vmul.f32 %v3924, %v3924
      %v4030 = vmul.f32 %v4006, %v4006
      %v4031 = vmul.f32 %v3926, %v3926
      %v4032 = vmul.f32 %v3928, %v3928
      %v4033 = vmul.f32 %v4009, %v4009
      %v4034 = vmul.f32 %v4028, %v1426
      %v4035 = vmul.f32 %v4029, %v1430
      %v4036 = vmul.f32 %v4030, %v1434
      %v4037 = vmul.f32 %v4031, %v1426
      %v4038 = vmul.f32 %v4032, %v1430
      %v4039 = vmul.f32 %v4033, %v1434
      %v4040 = vadd.f32 %v4034, %v4035
      %v4041 = vsel %vm888, %v4036, 0.0
      %v4042 = vadd.f32 %v4040, %v4041
      %4043 = vadd.xlane.f32.xlu0 %v4042
      %v4044 = vpop.xlane.xlu0 %4043
      %v4045 = vadd.f32 %v4037, %v4038
      %v4046 = vsel %vm888, %v4039, 0.0
      %v4047 = vadd.f32 %v4045, %v4046
      %4048 = vadd.xlane.f32.xlu0 %v4047
      %v4049 = vpop.xlane.xlu0 %4048
      %v4050 = vmul.f32 %v4022, 0.00390625
      %v4051 = vmul.f32 %v4027, 0.00390625
      %v4052 = vmul.f32 %v4044, 0.00390625
      %v4053 = vmul.f32 %v4049, 0.00390625
      %v4054 = vmul.f32 %v4050, %v4050
      %v4055 = vmul.f32 %v4051, %v4051
      %v4056 = vsub.f32 %v4052, %v4054
      %v4057 = vsub.f32 %v4053, %v4055
      %v4058 = vmax.f32 %v4056, 0.0
      %v4059 = vmax.f32 %v4057, 0.0
      %v4060 = vadd.f32 %v4058, 1e-05
      %v4061 = vadd.f32 %v4059, 1e-05
      %v4062 = vrsqrt.pop %v4060
      %v4063 = vrsqrt.pop %v4061
      %v4064 = vmul.f32 %v4062, %v3760
      %v4065 = vmul.f32 %v4063, %v3761
      %v4066 = vmul.f32 %v4050, %v4064
      %v4067 = vmul.f32 %v4051, %v4065
      %4070 = vrot.lane.b32.xlu0 %v4066, 1
      %v4071 = vpop.permute.xlu0 %4070
      %4072 = vrot.lane.b32.xlu0 %v4067, 1
      %v4073 = vpop.permute.xlu0 %4072
      %v4076 = vsub.f32 %v3760, %v4071
      %v4077 = vsub.f32 %v3761, %v4073
      %4079 = vset.pattern.permute.xlu0 1
      %4080 = vperm.xlu0 %4079, %v4064
      %v4081 = vpop.permute.xlu0 %4080
      %4084 = vset.pattern.permute.xlu0 1
      %4085 = vperm.xlu0 %4084, %v4065
      %v4086 = vpop.permute.xlu0 %4085
      %v4088 = vmul.f32 %v3922, %v4081
      %v4089 = vmul.f32 %v3924, %v4081
      %v4090 = vmul.f32 %v4006, %v4081
      %v4091 = vmul.f32 %v3926, %v4086
      %v4092 = vmul.f32 %v3928, %v4086
      %v4093 = vmul.f32 %v4009, %v4086
      %4095 = vset.pattern.permute.xlu0 2
      %4096 = vperm.xlu0 %4095, %v4076
      %v4097 = vpop.permute.xlu0 %4096
      %4100 = vset.pattern.permute.xlu0 2
      %4101 = vperm.xlu0 %4100, %v4077
      %v4102 = vpop.permute.xlu0 %4101
      %v4104 = vadd.f32 %v4088, %v4097
      %v4105 = vadd.f32 %v4089, %v4097
      %v4106 = vadd.f32 %v4090, %v4097
      %v4107 = vadd.f32 %v4091, %v4102
      %v4108 = vadd.f32 %v4092, %v4102
      %v4109 = vadd.f32 %v4093, %v4102
      %v4110 = vmax.f32 %v4104, 0.0
      %v4111 = vmax.f32 %v4105, 0.0
      %v4112 = vmax.f32 %v4106, 0.0
      %v4113 = vmax.f32 %v4107, 0.0
      %v4114 = vmax.f32 %v4108, 0.0
      %v4115 = vmax.f32 %v4109, 0.0
      %v4116 = vmul.f32 %v4110, %v1426
      %v4117 = vmul.f32 %v4111, %v1430
      %v4118 = vmul.f32 %v4112, %v1434
      %v4119 = vmul.f32 %v4113, %v1426
      %v4120 = vmul.f32 %v4114, %v1430
      %v4121 = vmul.f32 %v4115, %v1434
      %v4122 = vpack.c.bf16 %v4119, %v4116
      %v4123 = vpack.c.bf16 %v4120, %v4117
      %v4124 = vpack.c.bf16 %v4121, %v4118
      %4125 = vst [vmem:[#allocation2 + $0x8] sm:$0xff] %v4122
      %4126 = vst [vmem:[#allocation2 + $0x10] sm:$0xff] %v4123
      %4127 = vst.msk [vmem:[#allocation2 + $0x18] sm:$0xff] %vm888, %v4124
      %v4128 = vld [vmem:[#allocation2] sm:$0xff]
      %v4129 = vld [vmem:[#allocation2 + $0x8] sm:$0xff]
      %v4130 = vld [vmem:[#allocation2 + $0x10] sm:$0xff]
      %v4131 = vld [vmem:[#allocation2 + $0x18] sm:$0xff]
      %4136 = vrot.lane.b32.xlu0 %v4128, 19
      %v4137 = vpop.permute.xlu0 %4136
      %4138 = vrot.lane.b32.xlu0 %v4129, 19
      %v4139 = vpop.permute.xlu0 %4138
      %4140 = vrot.lane.b32.xlu0 %v4130, 19
      %v4141 = vpop.permute.xlu0 %4140
      %4142 = vrot.lane.b32.xlu0 %v4131, 19
      %v4143 = vpop.permute.xlu0 %4142
      %v4144 = vsel %vm971, %v4137, %v4139
      %v4145 = vsel %vm971, %v4139, %v4141
      %v4146 = vsel %vm971, %v4141, %v4143
      %4150 = vst [vmem:[#allocation3] sm:$0xff] %v4144
      %4151 = vst [vmem:[#allocation3 + $0x8] sm:$0xff] %v4145
      %4152 = vst.msk [vmem:[#allocation3 + $0x10] sm:$0xff] %vm888, %v4146
      %v4153 = vld [vmem:[#allocation2] sm:$0xff]
      %v4154 = vld [vmem:[#allocation2 + $0x8] sm:$0xff]
      %v4155 = vld [vmem:[#allocation2 + $0x10] sm:$0xff]
      %v4156 = vld [vmem:[#allocation2 + $0x18] sm:$0xff]
      %4161 = vrot.lane.b32.xlu0 %v4153, 18
      %v4162 = vpop.permute.xlu0 %4161
      %4163 = vrot.lane.b32.xlu0 %v4154, 18
      %v4164 = vpop.permute.xlu0 %4163
      %4165 = vrot.lane.b32.xlu0 %v4155, 18
      %v4166 = vpop.permute.xlu0 %4165
      %4167 = vrot.lane.b32.xlu0 %v4156, 18
      %v4168 = vpop.permute.xlu0 %4167
      %v4169 = vsel %vm997, %v4162, %v4164
      %v4170 = vsel %vm997, %v4164, %v4166
      %v4171 = vsel %vm997, %v4166, %v4168
      %4175 = vst [vmem:[#allocation3 + $0x30] sm:$0xff] %v4169
      %4176 = vst [vmem:[#allocation3 + $0x38] sm:$0xff] %v4170
      %4177 = vst.msk [vmem:[#allocation3 + $0x40] sm:$0xff] %vm888, %v4171
      %v4178 = vld [vmem:[#allocation2] sm:$0xff]
      %v4179 = vld [vmem:[#allocation2 + $0x8] sm:$0xff]
      %v4180 = vld [vmem:[#allocation2 + $0x10] sm:$0xff]
      %v4181 = vld [vmem:[#allocation2 + $0x18] sm:$0xff]
      %4186 = vrot.lane.b32.xlu0 %v4178, 17
      %v4187 = vpop.permute.xlu0 %4186
      %4188 = vrot.lane.b32.xlu0 %v4179, 17
      %v4189 = vpop.permute.xlu0 %4188
      %4190 = vrot.lane.b32.xlu0 %v4180, 17
      %v4191 = vpop.permute.xlu0 %4190
      %4192 = vrot.lane.b32.xlu0 %v4181, 17
      %v4193 = vpop.permute.xlu0 %4192
      %v4194 = vsel %vm1023, %v4187, %v4189
      %v4195 = vsel %vm1023, %v4189, %v4191
      %v4196 = vsel %vm1023, %v4191, %v4193
      %4200 = vst [vmem:[#allocation3 + $0x60] sm:$0xff] %v4194
      %4201 = vst [vmem:[#allocation3 + $0x68] sm:$0xff] %v4195
      %4202 = vst.msk [vmem:[#allocation3 + $0x70] sm:$0xff] %vm888, %v4196
      %v4203 = vld [vmem:[#allocation2] sm:$0xff]
      %v4204 = vld [vmem:[#allocation2 + $0x8] sm:$0xff]
      %v4205 = vld [vmem:[#allocation2 + $0x10] sm:$0xff]
      %v4206 = vld [vmem:[#allocation2 + $0x18] sm:$0xff]
      %4211 = vrot.lane.b32.xlu0 %v4203, 1
      %v4212 = vpop.permute.xlu0 %4211
      %4213 = vrot.lane.b32.xlu0 %v4204, 1
      %v4214 = vpop.permute.xlu0 %4213
      %4215 = vrot.lane.b32.xlu0 %v4205, 1
      %v4216 = vpop.permute.xlu0 %4215
      %4217 = vrot.lane.b32.xlu0 %v4206, 1
      %v4218 = vpop.permute.xlu0 %4217
      %v4219 = vsel %vm1049, %v4212, %v4214
      %v4220 = vsel %vm1049, %v4214, %v4216
      %v4221 = vsel %vm1049, %v4216, %v4218
      %4225 = vst [vmem:[#allocation3 + $0x90] sm:$0xff] %v4219
      %4226 = vst [vmem:[#allocation3 + $0x98] sm:$0xff] %v4220
      %4227 = vst.msk [vmem:[#allocation3 + $0xa0] sm:$0xff] %vm888, %v4221
      %v4228 = vld [vmem:[#allocation2 + $0x8] sm:$0xff]
      %v4229 = vld [vmem:[#allocation2 + $0x10] sm:$0xff]
      %v4230 = vld [vmem:[#allocation2 + $0x18] sm:$0xff]
      %4231 = vst [vmem:[#allocation3 + $0xc0] sm:$0xff] %v4228
      %4232 = vst [vmem:[#allocation3 + $0xc8] sm:$0xff] %v4229
      %4233 = vst.msk [vmem:[#allocation3 + $0xd0] sm:$0xff] %vm888, %v4230
      %v4234 = vld [vmem:[#allocation2 + $0x8] sm:$0xff]
      %v4235 = vld [vmem:[#allocation2 + $0x10] sm:$0xff]
      %v4236 = vld [vmem:[#allocation2 + $0x18] sm:$0xff]
      %4240 = vrot.lane.b32.xlu0 %v4234, 127
      %v4241 = vpop.permute.xlu0 %4240
      %4242 = vrot.lane.b32.xlu0 %v4235, 127
      %v4243 = vpop.permute.xlu0 %4242
      %4244 = vrot.lane.b32.xlu0 %v4236, 127
      %v4245 = vpop.permute.xlu0 %4244
      %v4246 = vsel %vm1077, %v4241, %v4243
      %v4247 = vsel %vm1077, %v4243, %v4245
      %4251 = vst [vmem:[#allocation3 + $0xf0] sm:$0xff] %v4246
      %4252 = vst [vmem:[#allocation3 + $0xf8] sm:$0xff] %v4247
      %4253 = vst.msk [vmem:[#allocation3 + $0x100] sm:$0xff] %vm888, %v4245
      %v4254 = vld [vmem:[#allocation2 + $0x8] sm:$0xff]
      %v4255 = vld [vmem:[#allocation2 + $0x10] sm:$0xff]
      %v4256 = vld [vmem:[#allocation2 + $0x18] sm:$0xff]
      %4260 = vrot.lane.b32.xlu0 %v4254, 111
      %v4261 = vpop.permute.xlu0 %4260
      %4262 = vrot.lane.b32.xlu0 %v4255, 111
      %v4263 = vpop.permute.xlu0 %4262
      %4264 = vrot.lane.b32.xlu0 %v4256, 111
      %v4265 = vpop.permute.xlu0 %4264
      %v4266 = vsel %vm1098, %v4261, %v4263
      %v4267 = vsel %vm1098, %v4263, %v4265
      %4271 = vst [vmem:[#allocation3 + $0x120] sm:$0xff] %v4266
      %4272 = vst [vmem:[#allocation3 + $0x128] sm:$0xff] %v4267
      %4273 = vst.msk [vmem:[#allocation3 + $0x130] sm:$0xff] %vm888, %v4265
      %v4274 = vld [vmem:[#allocation2 + $0x8] sm:$0xff]
      %v4275 = vld [vmem:[#allocation2 + $0x10] sm:$0xff]
      %v4276 = vld [vmem:[#allocation2 + $0x18] sm:$0xff]
      %4280 = vrot.lane.b32.xlu0 %v4274, 110
      %v4281 = vpop.permute.xlu0 %4280
      %4282 = vrot.lane.b32.xlu0 %v4275, 110
      %v4283 = vpop.permute.xlu0 %4282
      %4284 = vrot.lane.b32.xlu0 %v4276, 110
      %v4285 = vpop.permute.xlu0 %4284
      %v4286 = vsel %vm1119, %v4281, %v4283
      %v4287 = vsel %vm1119, %v4283, %v4285
      %4291 = vst [vmem:[#allocation3 + $0x150] sm:$0xff] %v4286
      %4292 = vst [vmem:[#allocation3 + $0x158] sm:$0xff] %v4287
      %4293 = vst.msk [vmem:[#allocation3 + $0x160] sm:$0xff] %vm888, %v4285
      %v4294 = vld [vmem:[#allocation2 + $0x8] sm:$0xff]
      %v4295 = vld [vmem:[#allocation2 + $0x10] sm:$0xff]
      %v4296 = vld [vmem:[#allocation2 + $0x18] sm:$0xff]
      %4300 = vrot.lane.b32.xlu0 %v4294, 109
      %v4301 = vpop.permute.xlu0 %4300
      %4302 = vrot.lane.b32.xlu0 %v4295, 109
      %v4303 = vpop.permute.xlu0 %4302
      %4304 = vrot.lane.b32.xlu0 %v4296, 109
      %v4305 = vpop.permute.xlu0 %4304
      %v4306 = vsel %vm1140, %v4301, %v4303
      %v4307 = vsel %vm1140, %v4303, %v4305
      %4311 = vst [vmem:[#allocation3 + $0x180] sm:$0xff] %v4306
      %4312 = vst [vmem:[#allocation3 + $0x188] sm:$0xff] %v4307
      %4313 = vst.msk [vmem:[#allocation3 + $0x190] sm:$0xff] %vm888, %v4305
      %v4314 = vld [vmem:[%s862] sm:$0x3f]
      %v4315 = vld [vmem:[%s866] sm:$0xf]
      %v4316 = vld [vmem:[#allocation3] sm:$0xff]
      %v4317 = vld [vmem:[#allocation3 + $0x8] sm:$0xff]
      %v4318 = vld [vmem:[#allocation3 + $0x10] sm:$0xff]
      %v4319 = vld [vmem:[#allocation3 + $0x18] sm:$0xff]
      %v4320 = vld [vmem:[#allocation3 + $0x20] sm:$0xff]
      %v4321 = vld [vmem:[#allocation3 + $0x28] sm:$0xff]
      %v4322 = vld [vmem:[#allocation3 + $0x30] sm:$0xff]
      %v4323 = vld [vmem:[#allocation3 + $0x38] sm:$0xff]
      %v4324 = vld [vmem:[#allocation3 + $0x40] sm:$0xff]
      %v4325 = vld [vmem:[#allocation3 + $0x48] sm:$0xff]
      %v4326 = vld [vmem:[#allocation3 + $0x50] sm:$0xff]
      %v4327 = vld [vmem:[#allocation3 + $0x58] sm:$0xff]
      %v4328 = vld [vmem:[#allocation3 + $0x60] sm:$0xff]
      %v4329 = vld [vmem:[#allocation3 + $0x68] sm:$0xff]
      %v4330 = vld [vmem:[#allocation3 + $0x70] sm:$0xff]
      %v4331 = vld [vmem:[#allocation3 + $0x78] sm:$0xff]
      %v4332 = vld [vmem:[#allocation3 + $0x80] sm:$0xff]
      %v4333 = vld [vmem:[#allocation3 + $0x88] sm:$0xff]
      %v4334 = vld [vmem:[#allocation3 + $0x90] sm:$0xff]
      %v4335 = vld [vmem:[#allocation3 + $0x98] sm:$0xff]
      %v4336 = vld [vmem:[#allocation3 + $0xa0] sm:$0xff]
      %v4337 = vld [vmem:[#allocation3 + $0xa8] sm:$0xff]
      %v4338 = vld [vmem:[#allocation3 + $0xb0] sm:$0xff]
      %v4339 = vld [vmem:[#allocation3 + $0xb8] sm:$0xff]
      %v4340 = vld [vmem:[#allocation3 + $0xc0] sm:$0xff]
      %v4341 = vld [vmem:[#allocation3 + $0xc8] sm:$0xff]
      %v4342 = vld [vmem:[#allocation3 + $0xd0] sm:$0xff]
      %v4343 = vld [vmem:[#allocation3 + $0xd8] sm:$0xff]
      %v4344 = vld [vmem:[#allocation3 + $0xe0] sm:$0xff]
      %v4345 = vld [vmem:[#allocation3 + $0xe8] sm:$0xff]
      %v4346 = vld [vmem:[#allocation3 + $0xf0] sm:$0xff]
      %v4347 = vld [vmem:[#allocation3 + $0xf8] sm:$0xff]
      %v4348 = vld [vmem:[#allocation3 + $0x100] sm:$0xff]
      %v4349 = vld [vmem:[#allocation3 + $0x108] sm:$0xff]
      %v4350 = vld [vmem:[#allocation3 + $0x110] sm:$0xff]
      %v4351 = vld [vmem:[#allocation3 + $0x118] sm:$0xff]
      %v4352 = vld [vmem:[#allocation3 + $0x120] sm:$0xff]
      %v4353 = vld [vmem:[#allocation3 + $0x128] sm:$0xff]
      %v4354 = vld [vmem:[#allocation3 + $0x130] sm:$0xff]
      %v4355 = vld [vmem:[#allocation3 + $0x138] sm:$0xff]
      %v4356 = vld [vmem:[#allocation3 + $0x140] sm:$0xff]
      %v4357 = vld [vmem:[#allocation3 + $0x148] sm:$0xff]
      %v4358 = vld [vmem:[#allocation3 + $0x150] sm:$0xff]
      %v4359 = vld [vmem:[#allocation3 + $0x158] sm:$0xff]
      %v4360 = vld [vmem:[#allocation3 + $0x160] sm:$0xff]
      %v4361 = vld [vmem:[#allocation3 + $0x168] sm:$0xff]
      %v4362 = vld [vmem:[#allocation3 + $0x170] sm:$0xff]
      %v4363 = vld [vmem:[#allocation3 + $0x178] sm:$0xff]
      %v4364 = vld [vmem:[#allocation3 + $0x180] sm:$0xff]
      %v4365 = vld [vmem:[#allocation3 + $0x188] sm:$0xff]
      %v4366 = vld [vmem:[#allocation3 + $0x190] sm:$0xff]
      %v4367 = vld [vmem:[#allocation3 + $0x198] sm:$0xff]
      %v4368 = vld [vmem:[#allocation3 + $0x1a0] sm:$0xff]
      %v4369 = vld [vmem:[#allocation3 + $0x1a8] sm:$0xff]
      %4371 = vset.pattern.permute.xlu0 0
      %4372 = vperm.xlu0 %4371, %v4315
      %v4373 = vpop.permute.xlu0 %4372
      %v4376 = vcombine.high %v4314, %v4314
      %v4378 = vunpack.c.l.s4 1983009808
      %v4379 = vunpack.c.0.s8 %v4378
      %v4380 = vlaneseq
      %v4381 = vshrl.u32 %v4380, 7
      %v4382 = vsub.s32 %v4379, %v4381
      %v4383 = vrot.slane %v4314, %v4382
      %v4385 = vunpack.c.l.s4 1983009808
      %v4386 = vunpack.c.0.s8 %v4385
      %v4387 = vlaneseq
      %v4388 = vshrl.u32 %v4387, 7
      %v4389 = vsub.s32 %v4386, %v4388
      %v4390 = vrot.slane %v4376, %v4389
      %v4391 = vcombine.high %v4383, %v4383
      %v4395 = vsel %vm1234, %v4390, 0
      %4397 = vmatprep.subr.bf16.mxu0 %v4317
      %4398 = vmatpush1.bf16.msra.mxu0 %v4316
      %4399 = vmatprep.subr.bf16.mxu0 %v4320
      %4400 = vmatpush1.bf16.msra.mxu0 %v4319
      %4401 = vmatprep.subr.bf16.mxu0 %v4323
      %4402 = vmatpush1.bf16.msra.mxu0 %v4322
      %4403 = vmatprep.subr.bf16.mxu0 %v4326
      %4404 = vmatpush1.bf16.msra.mxu0 %v4325
      %4405 = vmatprep.subr.bf16.mxu0 %v4329
      %4406 = vmatpush1.bf16.msra.mxu0 %v4328
      %4407 = vmatprep.subr.bf16.mxu0 %v4332
      %4408 = vmatpush1.bf16.msra.mxu0 %v4331
      %4409 = vmatprep.subr.bf16.mxu0 %v4335
      %4410 = vmatpush1.bf16.msra.mxu0 %v4334
      %4411 = vmatprep.subr.bf16.mxu0 %v4338
      %4412 = vmatpush1.bf16.msra.mxu0 %v4337
      %4413 = vmatprep.subr.bf16.mxu0 %v4341
      %4414 = vmatpush1.bf16.msra.mxu0 %v4340
      %4415 = vmatprep.subr.bf16.mxu0 %v4344
      %4416 = vmatpush1.bf16.msra.mxu0 %v4343
      %4417 = vmatprep.subr.bf16.mxu0 %v4347
      %4418 = vmatpush1.bf16.msra.mxu0 %v4346
      %4419 = vmatprep.subr.bf16.mxu0 %v4350
      %4420 = vmatpush1.bf16.msra.mxu0 %v4349
      %4421 = vmatprep.subr.bf16.mxu0 %v4353
      %4422 = vmatpush1.bf16.msra.mxu0 %v4352
      %4423 = vmatprep.subr.bf16.mxu0 %v4356
      %4424 = vmatpush1.bf16.msra.mxu0 %v4355
      %4425 = vmatprep.subr.bf16.mxu0 %v4359
      %4426 = vmatpush1.bf16.msra.mxu0 %v4358
      %4427 = vmatprep.subr.bf16.mxu0 %v4362
      %4428 = vmatpush1.bf16.msra.mxu0 %v4361
      %4429 = vmatprep.mubr.bf16.mxu0 %v4391
      %4430 = vmatmul.mubr.bf16.gmra.mrb[0].mxu0 %v4383
      %v4431 = vpop.f32.mrb[0].mxu0
      %v4432 = vadd.f32 %v4373, %v4431
      %v4433 = vpop.f32.mrb[0].mxu0
      %v4434 = vadd.f32 %v4373, %v4433
      %v4435 = vpop.f32.mrb[0].mxu0
      %v4436 = vpop.f32.mrb[0].mxu0
      %4437 = vdwg.mxu0
      %4438 = vmatprep.subr.bf16.mxu0 %v4365
      %4439 = vmatpush1.bf16.msra.mxu0 %v4364
      %4440 = vmatprep.subr.bf16.mxu0 %v4368
      %4441 = vmatpush1.bf16.msra.mxu0 %v4367
      %4442 = vmatprep.subr.bf16.mxu0 0
      %4443 = vmatpush1.bf16.msra.mxu0 0
      %4444 = vmatprep.subr.bf16.mxu0 0
      %4445 = vmatpush1.bf16.msra.mxu0 0
      %4446 = vmatprep.subr.bf16.mxu0 0
      %4447 = vmatpush1.bf16.msra.mxu0 0
      %4448 = vmatprep.subr.bf16.mxu0 0
      %4449 = vmatpush1.bf16.msra.mxu0 0
      %4450 = vmatprep.subr.bf16.mxu0 0
      %4451 = vmatpush1.bf16.msra.mxu0 0
      %4452 = vmatprep.subr.bf16.mxu0 0
      %4453 = vmatpush1.bf16.msra.mxu0 0
      %4454 = vmatprep.subr.bf16.mxu0 0
      %4455 = vmatpush1.bf16.msra.mxu0 0
      %4456 = vmatprep.subr.bf16.mxu0 0
      %4457 = vmatpush1.bf16.msra.mxu0 0
      %4458 = vmatprep.subr.bf16.mxu0 0
      %4459 = vmatpush1.bf16.msra.mxu0 0
      %4460 = vmatprep.subr.bf16.mxu0 0
      %4461 = vmatpush1.bf16.msra.mxu0 0
      %4462 = vmatprep.subr.bf16.mxu0 0
      %4463 = vmatpush1.bf16.msra.mxu0 0
      %4464 = vmatprep.subr.bf16.mxu0 0
      %4465 = vmatpush1.bf16.msra.mxu0 0
      %4466 = vmatprep.subr.bf16.mxu0 0
      %4467 = vmatpush1.bf16.msra.mxu0 0
      %4468 = vmatprep.subr.bf16.mxu0 0
      %4469 = vmatpush1.bf16.msra.mxu0 0
      %4470 = vmatprep.mubr.bf16.mxu0 0
      %4471 = vmatmul.mubr.bf16.gmra.mrb[0].mxu0 %v4395
      %v4472 = vpop.f32.mrb[0].mxu0
      %v4473 = vadd.f32 %v4432, %v4472
      %v4474 = vpop.f32.mrb[0].mxu0
      %v4475 = vadd.f32 %v4434, %v4474
      %v4476 = vpop.f32.mrb[0].mxu0
      %v4477 = vpop.f32.mrb[0].mxu0
      %4478 = vdwg.mxu0
      %4479 = vmatprep.subr.bf16.mxu0 0
      %4480 = vmatpush1.bf16.msra.mxu0 %v4318
      %4481 = vmatprep.subr.bf16.mxu0 0
      %4482 = vmatpush1.bf16.msra.mxu0 %v4321
      %4483 = vmatprep.subr.bf16.mxu0 0
      %4484 = vmatpush1.bf16.msra.mxu0 %v4324
      %4485 = vmatprep.subr.bf16.mxu0 0
      %4486 = vmatpush1.bf16.msra.mxu0 %v4327
      %4487 = vmatprep.subr.bf16.mxu0 0
      %4488 = vmatpush1.bf16.msra.mxu0 %v4330
      %4489 = vmatprep.subr.bf16.mxu0 0
      %4490 = vmatpush1.bf16.msra.mxu0 %v4333
      %4491 = vmatprep.subr.bf16.mxu0 0
      %4492 = vmatpush1.bf16.msra.mxu0 %v4336
      %4493 = vmatprep.subr.bf16.mxu0 0
      %4494 = vmatpush1.bf16.msra.mxu0 %v4339
      %4495 = vmatprep.subr.bf16.mxu0 0
      %4496 = vmatpush1.bf16.msra.mxu0 %v4342
      %4497 = vmatprep.subr.bf16.mxu0 0
      %4498 = vmatpush1.bf16.msra.mxu0 %v4345
      %4499 = vmatprep.subr.bf16.mxu0 0
      %4500 = vmatpush1.bf16.msra.mxu0 %v4348
      %4501 = vmatprep.subr.bf16.mxu0 0
      %4502 = vmatpush1.bf16.msra.mxu0 %v4351
      %4503 = vmatprep.subr.bf16.mxu0 0
      %4504 = vmatpush1.bf16.msra.mxu0 %v4354
      %4505 = vmatprep.subr.bf16.mxu0 0
      %4506 = vmatpush1.bf16.msra.mxu0 %v4357
      %4507 = vmatprep.subr.bf16.mxu0 0
      %4508 = vmatpush1.bf16.msra.mxu0 %v4360
      %4509 = vmatprep.subr.bf16.mxu0 0
      %4510 = vmatpush1.bf16.msra.mxu0 %v4363
      %4511 = vmatprep.mubr.bf16.mxu0 %v4391
      %4512 = vmatmul.mubr.bf16.gmra.mrb[0].mxu0 %v4383
      %v4513 = vpop.f32.mrb[0].mxu0
      %v4514 = vadd.f32 %v4373, %v4513
      %v4515 = vpop.f32.mrb[0].mxu0
      %v4516 = vpop.f32.mrb[0].mxu0
      %v4517 = vpop.f32.mrb[0].mxu0
      %4518 = vdwg.mxu0
      %4519 = vmatprep.subr.bf16.mxu0 0
      %4520 = vmatpush1.bf16.msra.mxu0 %v4366
      %4521 = vmatprep.subr.bf16.mxu0 0
      %4522 = vmatpush1.bf16.msra.mxu0 %v4369
      %4523 = vmatprep.subr.bf16.mxu0 0
      %4524 = vmatpush1.bf16.msra.mxu0 0
      %4525 = vmatprep.subr.bf16.mxu0 0
      %4526 = vmatpush1.bf16.msra.mxu0 0
      %4527 = vmatprep.subr.bf16.mxu0 0
      %4528 = vmatpush1.bf16.msra.mxu0 0
      %4529 = vmatprep.subr.bf16.mxu0 0
      %4530 = vmatpush1.bf16.msra.mxu0 0
      %4531 = vmatprep.subr.bf16.mxu0 0
      %4532 = vmatpush1.bf16.msra.mxu0 0
      %4533 = vmatprep.subr.bf16.mxu0 0
      %4534 = vmatpush1.bf16.msra.mxu0 0
      %4535 = vmatprep.subr.bf16.mxu0 0
      %4536 = vmatpush1.bf16.msra.mxu0 0
      %4537 = vmatprep.subr.bf16.mxu0 0
      %4538 = vmatpush1.bf16.msra.mxu0 0
      %4539 = vmatprep.subr.bf16.mxu0 0
      %4540 = vmatpush1.bf16.msra.mxu0 0
      %4541 = vmatprep.subr.bf16.mxu0 0
      %4542 = vmatpush1.bf16.msra.mxu0 0
      %4543 = vmatprep.subr.bf16.mxu0 0
      %4544 = vmatpush1.bf16.msra.mxu0 0
      %4545 = vmatprep.subr.bf16.mxu0 0
      %4546 = vmatpush1.bf16.msra.mxu0 0
      %4547 = vmatprep.subr.bf16.mxu0 0
      %4548 = vmatpush1.bf16.msra.mxu0 0
      %4549 = vmatprep.subr.bf16.mxu0 0
      %4550 = vmatpush1.bf16.msra.mxu0 0
      %4551 = vmatprep.mubr.bf16.mxu0 0
      %4552 = vmatmul.mubr.bf16.gmra.mrb[0].mxu0 %v4395
      %v4553 = vpop.f32.mrb[0].mxu0
      %v4554 = vadd.f32 %v4514, %v4553
      %v4555 = vpop.f32.mrb[0].mxu0
      %v4556 = vpop.f32.mrb[0].mxu0
      %v4557 = vpop.f32.mrb[0].mxu0
      %4558 = vdwg.mxu0
      %v4559 = vpack.c.bf16 %v4473, %v4473
      %v4560 = vpack.c.bf16 %v4475, %v4475
      %v4561 = vpack.c.bf16 %v4554, %v4554
      %v4562 = vld [vmem:[%s6] sm:$0xff]
      %v4563 = vld [vmem:[%s6 + $0x8] sm:$0xff]
      %v4564 = vld [vmem:[%s6 + $0x10] sm:$0xff]
      %v4565 = vld [vmem:[%s6 + $0x18] sm:$0xff]
      %v4566 = vld [vmem:[%s6 + $0x20] sm:$0xff]
      %v4567 = vld [vmem:[%s6 + $0x28] sm:$0xff]
      %v4568 = vld [vmem:[%s6 + $0x30] sm:$0xff]
      %v4569 = vld [vmem:[%s6 + $0x38] sm:$0xff]
      %v4570 = vld [vmem:[%s6 + $0x40] sm:$0xff]
      %v4571 = vld [vmem:[%s6 + $0x48] sm:$0xff]
      %v4572 = vld [vmem:[%s6 + $0x50] sm:$0xff]
      %v4573 = vld [vmem:[%s6 + $0x58] sm:$0xff]
      %v4574 = vld [vmem:[%s6 + $0x60] sm:$0xff]
      %v4575 = vld [vmem:[%s6 + $0x68] sm:$0xff]
      %v4576 = vld [vmem:[%s6 + $0x70] sm:$0xff]
      %v4577 = vld [vmem:[%s6 + $0x78] sm:$0xff]
      %v4578 = vld [vmem:[%s6 + $0x80] sm:$0xff]
      %v4579 = vld [vmem:[%s6 + $0x88] sm:$0xff]
      %v4580 = vld [vmem:[%s6 + $0x90] sm:$0xff]
      %v4581 = vld [vmem:[%s6 + $0x98] sm:$0xff]
      %v4582 = vld [vmem:[%s6 + $0xa0] sm:$0xff]
      %v4583 = vld [vmem:[%s6 + $0xa8] sm:$0xff]
      %v4584 = vld [vmem:[%s6 + $0xb0] sm:$0xff]
      %v4585 = vld [vmem:[%s6 + $0xb8] sm:$0xff]
      %v4586 = vld [vmem:[%s6 + $0xc0] sm:$0xff]
      %v4587 = vld [vmem:[%s6 + $0xc8] sm:$0xff]
      %v4588 = vld [vmem:[%s6 + $0xd0] sm:$0xff]
      %v4589 = vld [vmem:[%s6 + $0xd8] sm:$0xff]
      %v4590 = vld [vmem:[%s6 + $0xe0] sm:$0xff]
      %v4591 = vld [vmem:[%s6 + $0xe8] sm:$0xff]
      %v4592 = vld [vmem:[%s6 + $0xf0] sm:$0xff]
      %v4593 = vld [vmem:[%s6 + $0xf8] sm:$0xff]
      %v4594 = vld [vmem:[%s6 + $0x100] sm:$0xff]
      %v4595 = vld [vmem:[%s6 + $0x108] sm:$0xff]
      %v4596 = vld [vmem:[%s6 + $0x110] sm:$0xff]
      %v4597 = vld [vmem:[%s6 + $0x118] sm:$0xff]
      %v4598 = vld [vmem:[%s6 + $0x120] sm:$0xff]
      %v4599 = vld [vmem:[%s6 + $0x128] sm:$0xff]
      %v4600 = vld [vmem:[%s6 + $0x130] sm:$0xff]
      %v4601 = vld [vmem:[%s6 + $0x138] sm:$0xff]
      %v4602 = vld [vmem:[%s6 + $0x140] sm:$0x33]
      %v4644 = vunpack.c.l.b16 %v4562
      %v4645 = vunpack.c.h.b16 %v4562
      %v4646 = vunpack.c.l.b16 %v4563
      %v4647 = vunpack.c.h.b16 %v4563
      %v4648 = vunpack.c.l.b16 %v4564
      %v4649 = vunpack.c.h.b16 %v4564
      %v4650 = vunpack.c.l.b16 %v4565
      %v4651 = vunpack.c.h.b16 %v4565
      %v4652 = vunpack.c.l.b16 %v4566
      %v4653 = vunpack.c.h.b16 %v4566
      %v4654 = vunpack.c.l.b16 %v4567
      %v4655 = vunpack.c.h.b16 %v4567
      %v4656 = vunpack.c.l.b16 %v4568
      %v4657 = vunpack.c.h.b16 %v4568
      %v4658 = vunpack.c.l.b16 %v4569
      %v4659 = vunpack.c.h.b16 %v4569
      %v4660 = vunpack.c.l.b16 %v4570
      %v4661 = vunpack.c.h.b16 %v4570
      %v4662 = vunpack.c.l.b16 %v4571
      %v4663 = vunpack.c.h.b16 %v4571
      %v4664 = vunpack.c.l.b16 %v4572
      %v4665 = vunpack.c.h.b16 %v4572
      %v4666 = vunpack.c.l.b16 %v4573
      %v4667 = vunpack.c.h.b16 %v4573
      %v4668 = vunpack.c.l.b16 %v4574
      %v4669 = vunpack.c.h.b16 %v4574
      %v4670 = vunpack.c.l.b16 %v4575
      %v4671 = vunpack.c.h.b16 %v4575
      %v4672 = vunpack.c.l.b16 %v4576
      %v4673 = vunpack.c.h.b16 %v4576
      %v4674 = vunpack.c.l.b16 %v4577
      %v4675 = vunpack.c.h.b16 %v4577
      %v4676 = vunpack.c.l.b16 %v4578
      %v4677 = vunpack.c.h.b16 %v4578
      %v4678 = vunpack.c.l.b16 %v4579
      %v4679 = vunpack.c.h.b16 %v4579
      %v4680 = vunpack.c.l.b16 %v4580
      %v4681 = vunpack.c.h.b16 %v4580
      %v4682 = vunpack.c.l.b16 %v4581
      %v4683 = vunpack.c.h.b16 %v4581
      %v4684 = vunpack.c.l.b16 %v4582
      %v4685 = vunpack.c.h.b16 %v4582
      %v4686 = vunpack.c.l.b16 %v4583
      %v4687 = vunpack.c.h.b16 %v4583
      %v4688 = vunpack.c.l.b16 %v4584
      %v4689 = vunpack.c.h.b16 %v4584
      %v4690 = vunpack.c.l.b16 %v4585
      %v4691 = vunpack.c.h.b16 %v4585
      %v4692 = vunpack.c.l.b16 %v4586
      %v4693 = vunpack.c.h.b16 %v4586
      %v4694 = vunpack.c.l.b16 %v4587
      %v4695 = vunpack.c.h.b16 %v4587
      %v4696 = vunpack.c.l.b16 %v4588
      %v4697 = vunpack.c.h.b16 %v4588
      %v4698 = vunpack.c.l.b16 %v4589
      %v4699 = vunpack.c.h.b16 %v4589
      %v4700 = vunpack.c.l.b16 %v4590
      %v4701 = vunpack.c.h.b16 %v4590
      %v4702 = vunpack.c.l.b16 %v4591
      %v4703 = vunpack.c.h.b16 %v4591
      %v4704 = vunpack.c.l.b16 %v4592
      %v4705 = vunpack.c.h.b16 %v4592
      %v4706 = vunpack.c.l.b16 %v4593
      %v4707 = vunpack.c.h.b16 %v4593
      %v4708 = vunpack.c.l.b16 %v4594
      %v4709 = vunpack.c.h.b16 %v4594
      %v4710 = vunpack.c.l.b16 %v4595
      %v4711 = vunpack.c.h.b16 %v4595
      %v4712 = vunpack.c.l.b16 %v4596
      %v4713 = vunpack.c.h.b16 %v4596
      %v4714 = vunpack.c.l.b16 %v4597
      %v4715 = vunpack.c.h.b16 %v4597
      %v4716 = vunpack.c.l.b16 %v4598
      %v4717 = vunpack.c.h.b16 %v4598
      %v4718 = vunpack.c.l.b16 %v4599
      %v4719 = vunpack.c.h.b16 %v4599
      %v4720 = vunpack.c.l.b16 %v4600
      %v4721 = vunpack.c.h.b16 %v4600
      %v4722 = vunpack.c.l.b16 %v4601
      %v4723 = vunpack.c.h.b16 %v4601
      %v4724 = vunpack.c.l.b16 %v4602
      %v4725 = vunpack.c.h.b16 %v4602
      %v4726 = vpack.c.b16 %v4646, %v4644
      %v4727 = vpack.c.b16 %v4647, %v4645
      %v4728 = vpack.c.b16 %v4650, %v4648
      %v4729 = vpack.c.b16 %v4651, %v4649
      %v4730 = vpack.c.b16 %v4654, %v4652
      %v4731 = vpack.c.b16 %v4655, %v4653
      %v4732 = vpack.c.b16 %v4658, %v4656
      %v4733 = vpack.c.b16 %v4659, %v4657
      %v4734 = vpack.c.b16 %v4662, %v4660
      %v4735 = vpack.c.b16 %v4663, %v4661
      %v4736 = vpack.c.b16 %v4666, %v4664
      %v4737 = vpack.c.b16 %v4667, %v4665
      %v4738 = vpack.c.b16 %v4670, %v4668
      %v4739 = vpack.c.b16 %v4671, %v4669
      %v4740 = vpack.c.b16 %v4674, %v4672
      %v4741 = vpack.c.b16 %v4675, %v4673
      %v4742 = vpack.c.b16 %v4678, %v4676
      %v4743 = vpack.c.b16 %v4679, %v4677
      %v4744 = vpack.c.b16 %v4682, %v4680
      %v4745 = vpack.c.b16 %v4683, %v4681
      %v4746 = vpack.c.b16 %v4686, %v4684
      %v4747 = vpack.c.b16 %v4687, %v4685
      %v4748 = vpack.c.b16 %v4690, %v4688
      %v4749 = vpack.c.b16 %v4691, %v4689
      %v4750 = vpack.c.b16 %v4694, %v4692
      %v4751 = vpack.c.b16 %v4695, %v4693
      %v4752 = vpack.c.b16 %v4698, %v4696
      %v4753 = vpack.c.b16 %v4699, %v4697
      %v4754 = vpack.c.b16 %v4702, %v4700
      %v4755 = vpack.c.b16 %v4703, %v4701
      %v4756 = vpack.c.b16 %v4706, %v4704
      %v4757 = vpack.c.b16 %v4707, %v4705
      %v4758 = vpack.c.b16 %v4710, %v4708
      %v4759 = vpack.c.b16 %v4711, %v4709
      %v4760 = vpack.c.b16 %v4714, %v4712
      %v4761 = vpack.c.b16 %v4715, %v4713
      %v4762 = vpack.c.b16 %v4718, %v4716
      %v4763 = vpack.c.b16 %v4719, %v4717
      %v4764 = vpack.c.b16 %v4722, %v4720
      %v4765 = vpack.c.b16 %v4723, %v4721
      %v4766 = vpack.c.b16 %v4724, %v4724
      %v4767 = vpack.c.b16 %v4725, %v4725
      %v4809 = vsel %vm888, %v4561, 0
      %v4812 = vsel %vm2294, %v4766, 0
      %v4815 = vsel %vm2294, %v4767, 0
      %4817 = vmatprep.subr.bf16.mxu0 %v4727
      %4818 = vmatpush1.bf16.msra.mxu0 %v4726
      %4819 = vmatprep.subr.bf16.mxu0 %v4729
      %4820 = vmatpush1.bf16.msra.mxu0 %v4728
      %4821 = vmatprep.subr.bf16.mxu0 %v4731
      %4822 = vmatpush1.bf16.msra.mxu0 %v4730
      %4823 = vmatprep.subr.bf16.mxu0 %v4733
      %4824 = vmatpush1.bf16.msra.mxu0 %v4732
      %4825 = vmatprep.subr.bf16.mxu0 %v4735
      %4826 = vmatpush1.bf16.msra.mxu0 %v4734
      %4827 = vmatprep.subr.bf16.mxu0 %v4737
      %4828 = vmatpush1.bf16.msra.mxu0 %v4736
      %4829 = vmatprep.subr.bf16.mxu0 %v4739
      %4830 = vmatpush1.bf16.msra.mxu0 %v4738
      %4831 = vmatprep.subr.bf16.mxu0 %v4741
      %4832 = vmatpush1.bf16.msra.mxu0 %v4740
      %4833 = vmatprep.subr.bf16.mxu0 %v4743
      %4834 = vmatpush1.bf16.msra.mxu0 %v4742
      %4835 = vmatprep.subr.bf16.mxu0 %v4745
      %4836 = vmatpush1.bf16.msra.mxu0 %v4744
      %4837 = vmatprep.subr.bf16.mxu0 %v4747
      %4838 = vmatpush1.bf16.msra.mxu0 %v4746
      %4839 = vmatprep.subr.bf16.mxu0 %v4749
      %4840 = vmatpush1.bf16.msra.mxu0 %v4748
      %4841 = vmatprep.subr.bf16.mxu0 %v4751
      %4842 = vmatpush1.bf16.msra.mxu0 %v4750
      %4843 = vmatprep.subr.bf16.mxu0 %v4753
      %4844 = vmatpush1.bf16.msra.mxu0 %v4752
      %4845 = vmatprep.subr.bf16.mxu0 %v4755
      %4846 = vmatpush1.bf16.msra.mxu0 %v4754
      %4847 = vmatprep.subr.bf16.mxu0 %v4757
      %4848 = vmatpush1.bf16.msra.mxu0 %v4756
      %4849 = vmatprep.mubr.bf16.mxu0 %v4560
      %4850 = vmatmul.mubr.bf16.gmra.mrb[0].mxu0 %v4559
      %v4851 = vpop.f32.mrb[0].mxu0
      %v4852 = vadd.f32 0.0, %v4851
      %v4853 = vpop.f32.mrb[0].mxu0
      %v4854 = vadd.f32 0.0, %v4853
      %v4855 = vpop.f32.mrb[0].mxu0
      %v4856 = vpop.f32.mrb[0].mxu0
      %4857 = vdwg.mxu0
      %4858 = vmatprep.subr.bf16.mxu0 %v4759
      %4859 = vmatpush1.bf16.msra.mxu0 %v4758
      %4860 = vmatprep.subr.bf16.mxu0 %v4761
      %4861 = vmatpush1.bf16.msra.mxu0 %v4760
      %4862 = vmatprep.subr.bf16.mxu0 %v4763
      %4863 = vmatpush1.bf16.msra.mxu0 %v4762
      %4864 = vmatprep.subr.bf16.mxu0 %v4765
      %4865 = vmatpush1.bf16.msra.mxu0 %v4764
      %4866 = vmatprep.subr.bf16.mxu0 %v4815
      %4867 = vmatpush1.bf16.msra.mxu0 %v4812
      %4868 = vmatprep.subr.bf16.mxu0 0
      %4869 = vmatpush1.bf16.msra.mxu0 0
      %4870 = vmatprep.subr.bf16.mxu0 0
      %4871 = vmatpush1.bf16.msra.mxu0 0
      %4872 = vmatprep.subr.bf16.mxu0 0
      %4873 = vmatpush1.bf16.msra.mxu0 0
      %4874 = vmatprep.subr.bf16.mxu0 0
      %4875 = vmatpush1.bf16.msra.mxu0 0
      %4876 = vmatprep.subr.bf16.mxu0 0
      %4877 = vmatpush1.bf16.msra.mxu0 0
      %4878 = vmatprep.subr.bf16.mxu0 0
      %4879 = vmatpush1.bf16.msra.mxu0 0
      %4880 = vmatprep.subr.bf16.mxu0 0
      %4881 = vmatpush1.bf16.msra.mxu0 0
      %4882 = vmatprep.subr.bf16.mxu0 0
      %4883 = vmatpush1.bf16.msra.mxu0 0
      %4884 = vmatprep.subr.bf16.mxu0 0
      %4885 = vmatpush1.bf16.msra.mxu0 0
      %4886 = vmatprep.subr.bf16.mxu0 0
      %4887 = vmatpush1.bf16.msra.mxu0 0
      %4888 = vmatprep.subr.bf16.mxu0 0
      %4889 = vmatpush1.bf16.msra.mxu0 0
      %4890 = vmatprep.mubr.bf16.mxu0 0
      %4891 = vmatmul.mubr.bf16.gmra.mrb[0].mxu0 %v4809
      %v4892 = vpop.f32.mrb[0].mxu0
      %v4893 = vadd.f32 %v4852, %v4892
      %v4894 = vpop.f32.mrb[0].mxu0
      %v4895 = vadd.f32 %v4854, %v4894
      %v4896 = vpop.f32.mrb[0].mxu0
      %v4897 = vpop.f32.mrb[0].mxu0
      %4898 = vdwg.mxu0
      %v4899 = vtanh.pop %v4893
      %v4900 = vtanh.pop %v4895
      %v4903 = vcombine.low %v4899, %v4900
      %4905 = vst [vmem:[%s875] sm:$0xff] %v4903
      %p4906 = scmp.lt.s32.totalorder %s34, 1
      %s4907 = scalar_select %p4906, %s34, 1
      %p4908 = scmp.lt.s32.totalorder %s35, 1
      %s4909 = scalar_select %p4908, %s35, 1
      %s4910 = smul.addr %s4909, 2
      %s4911 = smul.addr %s4907, 4
      %s4912 = sadd.s32 %s4910, %s4911
      %s4913 = smul.addr %s4912, 4
      %s4914 = scalar_lea.vmem %s19, %s4913
      // Predicated region
      $region97: #{travelgan_forward.1} parent=95 // pred_check
        %p4915 = pneg %p528
      $region98: #{travelgan_forward.1} parent=95 // pred_check_branch
        %4917 = sbr.rel (%p4915) target = $region100
      $region99: #{travelgan_forward.1} parent=95 // pred_region
        _
      $region100: #{travelgan_forward.1} parent=95 // pred_fallthru
        _
    $region96: #{travelgan_forward.1} parent=5 // pred_fallthru
      _
    %p4918 = scmp.le.s32.totalorder 2, %s25
    // Predicated region
    $region101: #{travelgan_forward.1} parent=5 // pred_check
      %p4919 = pneg %p4918
    $region102: #{travelgan_forward.1} parent=5 // pred_check_branch
      %4921 = sbr.rel (%p4919) target = $region104
    $region103: #{travelgan_forward.1} parent=5 // pred_region
      %s4922 = ssub.s32 %s25, 2
      // Predicated region
      $region105: #{travelgan_forward.1} parent=103 // pred_check
        %p4923 = pneg %p534
      $region106: #{travelgan_forward.1} parent=103 // pred_check_branch
        %4925 = sbr.rel (%p4923) target = $region108
      $region107: #{travelgan_forward.1} parent=103 // pred_region
        %p4926 = scmp.lt.s32.totalorder %s36, 1
        %s4927 = scalar_select %p4926, %s36, 1
        %p4928 = scmp.lt.s32.totalorder %s37, 1
        %s4929 = scalar_select %p4928, %s37, 1
        %s4930 = smul.addr %s4929, 2
        %s4931 = smul.addr %s4927, 4
        %s4932 = sadd.s32 %s4930, %s4931
        %s4933 = smul.addr %s4932, 4
        %s4934 = scalar_lea.vmem %s19, %s4933
      $region108: #{travelgan_forward.1} parent=103 // pred_fallthru
        _
    $region104: #{travelgan_forward.1} parent=5 // pred_fallthru
      _
  $region6: #{travelgan_forward.1} parent=0 // loop_footer
    %s29 = sadd.s32 1, %s25
  $region7: #{travelgan_forward.1} parent=0 // loop_footer_branch
    %24 = sbr.rel target = $region3
  $region8: #{travelgan_forward.1} parent=0 // loop_exit
    _

</llo_original>
